<compile_context>
chip_gen: v5e
topology: v5e:2x2
jax: 0.10.0
libtpu: 0.0.40
codegen_flags: <defaults>
</compile_context>

<pallas_src>
import jax
import jax.numpy as jnp
from jax.experimental import pallas as pl
from jax.experimental.pallas import tpu as pltpu

GELU_C0 = 0.7978845608028654
GELU_C1 = 0.044715


def _gated_mlp_kernel(x_ref, wi_ref, wo_ref, o_ref):
    """One d_model tile: o += (gelu(x@Wi0_t) * (x@Wi1_t)) @ Wo_t; log_softmax at end."""
    k = pl.program_id(0)
    tk = wi_ref.shape[-1] // 2            # static d_model tile width

    @pl.when(k == 0)
    def _():
        o_ref[...] = jnp.zeros_like(o_ref)

    x = x_ref[...]                        # (B, IN) bf16, VMEM-resident across steps
    wi = wi_ref[0]                        # (IN, 2*tk) bf16: [wi0 tile | wi1 tile]
    # One fused MXU matmul for both wi projections, f32 accumulation.
    h = jnp.dot(x, wi, preferred_element_type=jnp.float32)   # (B, 2*tk) f32
    h0 = h[:, :tk]
    h1 = h[:, tk:]

    # OpenAI tanh-approx GELU (matches gelu_impl in the PyTorch module).
    g = 0.5 * h0 * (1.0 + jnp.tanh(GELU_C0 * h0 * (1.0 + GELU_C1 * h0 * h0)))
    hidden = g * h1                                            # (B, tk) f32
    # dropout(p=0.1) is identity in eval mode (see TODO above).

    o_ref[...] += jnp.dot(hidden, wo_ref[...],
                          preferred_element_type=jnp.float32)  # (B, OUT)

    # Fused epilogue: numerically stable log_softmax on the final accumulated logits.
    @pl.when(k == pl.num_programs(0) - 1)
    def _():
        logits = o_ref[...]
        m = jnp.max(logits, axis=-1, keepdims=True)
        lse = m + jnp.log(jnp.sum(jnp.exp(logits - m), axis=-1, keepdims=True))
        o_ref[...] = logits - lse


def prepare_params(wi0, wi1, wo, *, tk=2048, weight_dtype=jnp.bfloat16):
    """One-time (init) weight transform: tile + interleave Wi0/Wi1 and cast to bf16.

    Returns:
      wi: (num_tiles, IN, 2*tk) weight_dtype; per tile t the columns are
          [wi0[:, t*tk:(t+1)*tk] | wi1[:, t*tk:(t+1)*tk]] so each grid step issues
          one fully contiguous weight DMA.
      wo: (D, OUT) float32 (tiny byte stream; streamed per (tk, OUT) tile).
    """
    IN, D = wi0.shape
    assert wi1.shape == (IN, D), "wi0/wi1 shape mismatch"
    assert wo.shape[0] == D, "wo rows must match d_model"
    tk = min(tk, D)
    assert tk % 128 == 0, "tk must be a multiple of 128 (lane alignment)"
    assert D % tk == 0, "d_model must divide evenly into tiles of width tk"
    num_tiles = D // tk
    wi = jnp.concatenate(
        [wi0.reshape(IN, num_tiles, tk).transpose(1, 0, 2),
         wi1.reshape(IN, num_tiles, tk).transpose(1, 0, 2)],
        axis=-1,
    ).astype(weight_dtype)                           # (num_tiles, IN, 2*tk)
    return {"wi": wi, "wo": wo.astype(jnp.float32)}


def _vmem_limit_bytes():
    """Generation-aware VMEM budget (v5e/v6e: 128 MiB physical, v7x: 64 MiB)."""
    try:
        cap = pltpu.get_tpu_info().vmem_capacity_bytes
    except Exception:                                # conservative fallback
        cap = 64 * 1024 * 1024
    return int(max(32 * 1024 * 1024, min(cap * 3 // 4, 96 * 1024 * 1024)))


def parallel_dense_relu_dense(x_nchw, params):
    """Forward pass.  x_nchw: (B, C, H, W) f32.  params: output of prepare_params."""
    wi = params["wi"]                                # (num_tiles, IN, 2*tk) bf16
    wo = params["wo"]                                # (D, OUT) f32
    num_tiles, IN, two_tk = wi.shape
    tk = two_tk // 2                                 # tk derived from the layout itself
    D, OUT = wo.shape
    assert D == num_tiles * tk, "wi tiling inconsistent with wo"

    B = x_nchw.shape[0]
    x = x_nchw.reshape(B, -1).astype(wi.dtype)       # row-major like torch .view
    assert x.shape[1] == IN

    return pl.pallas_call(
        _gated_mlp_kernel,
        out_shape=jax.ShapeDtypeStruct((B, OUT), jnp.float32),
        grid_spec=pltpu.PrefetchScalarGridSpec(
            num_scalar_prefetch=0,
            grid=(num_tiles,),
            in_specs=[
                pl.BlockSpec((B, IN), lambda k: (0, 0)),            # x resident
                pl.BlockSpec((1, IN, two_tk), lambda k: (k, 0, 0)),  # contiguous Wi tile
                pl.BlockSpec((tk, OUT), lambda k: (k, 0)),          # streamed Wo tile
            ],
            out_specs=pl.BlockSpec((B, OUT), lambda k: (0, 0)),     # resident accumulator
        ),
        compiler_params=pltpu.CompilerParams(
            dimension_semantics=("arbitrary",),      # d_model reduction axis
            vmem_limit_bytes=_vmem_limit_bytes(),
        ),
    )(x, wi, wo)


def _reference(x_nchw, wi0, wi1, wo, weight_dtype=jnp.bfloat16):
    """Pure-JAX reference using the same bf16 input/weight cast as the kernel."""
    B = x_nchw.shape[0]
    x = x_nchw.reshape(B, -1).astype(weight_dtype)
    h0 = jnp.dot(x, wi0.astype(weight_dtype), preferred_element_type=jnp.float32)
    h1 = jnp.dot(x, wi1.astype(weight_dtype), preferred_element_type=jnp.float32)
    g = 0.5 * h0 * (1.0 + jnp.tanh(GELU_C0 * h0 * (1.0 + GELU_C1 * h0 * h0)))
    logits = jnp.dot(g * h1, wo.astype(jnp.float32),
                     preferred_element_type=jnp.float32)
    return jax.nn.log_softmax(logits, axis=1)


if __name__ == "__main__":
    # Small, module-consistent shapes: MNIST input (B, 1, 28, 28) -> IN = 784,
    # d_model shrunk from 40960 to 4096 for the demo, OUT = 10.
    B, C, H, W = 8, 1, 28, 28
    IN = C * H * W
    D = 4096
    OUT = 10

    key = jax.random.PRNGKey(0)
    kx, k0, k1, k2 = jax.random.split(key, 4)
    x = jax.random.normal(kx, (B, C, H, W), dtype=jnp.float32)
    wi0 = jax.random.normal(k0, (IN, D), dtype=jnp.float32) * 0.02
    wi1 = jax.random.normal(k1, (IN, D), dtype=jnp.float32) * 0.02
    wo = jax.random.normal(k2, (D, OUT), dtype=jnp.float32) * 0.02

    # One-time (init) weight layout + dtype transform; tk=1024 -> 4 grid steps here.
    params = prepare_params(wi0, wi1, wo, tk=1024)

    out = parallel_dense_relu_dense(x, params)
    out = jax.block_until_ready(out)

    ref = _reference(x, wi0, wi1, wo)
    assert out.shape == (B, OUT)
    assert jnp.allclose(out, ref, atol=2e-3, rtol=2e-3), "mismatch vs reference"
    print("KERNEL_OK")
</pallas_src>

<mosaic_0001>
module attributes {stable_mosaic.version = 11 : i64} {
  func.func @_gated_mlp_kernel(%arg0: i32, %arg1: memref<8x784xbf16, #tpu.memory_space<vmem>>, %arg2: memref<1x784x2048xbf16, #tpu.memory_space<vmem>>, %arg3: memref<1024x10xf32, #tpu.memory_space<vmem>>, %arg4: memref<8x10xf32, #tpu.memory_space<vmem>>) attributes {dimension_semantics = [#tpu.dimension_semantics<arbitrary>], iteration_bounds = array<i64: 4>, scalar_prefetch = 0 : i64, scratch_operands = 0 : i64, tpu.core_type = #tpu.core_type<tc>, window_params = [{pipeline_mode = #tpu.pipeline_mode<synchronous>, transform_indices = @transform_0, window_bounds = array<i64: 8, 784>}, {transform_indices = @transform_1, window_bounds = array<i64: 1, 784, 2048>}, {transform_indices = @transform_2, window_bounds = array<i64: 1024, 10>}, {pipeline_mode = #tpu.pipeline_mode<synchronous>, transform_indices = @transform_3, window_bounds = array<i64: 8, 10>}]} {
    %c0_i32 = arith.constant 0 : i32
    %0 = arith.cmpi eq, %arg0, %c0_i32 : i32
    %1 = arith.extui %0 : i1 to i32
    %c0_i32_0 = arith.constant 0 : i32
    %2 = arith.cmpi ne, %1, %c0_i32_0 : i32
    scf.if %2 {
      %cst_18 = arith.constant 0.000000e+00 : f32
      %32 = vector.broadcast %cst_18 : f32 to vector<8x10xf32>
      %c0_19 = arith.constant 0 : index
      %c0_20 = arith.constant 0 : index
      %33 = vector.load %arg4[%c0_19, %c0_20] : memref<8x10xf32, #tpu.memory_space<vmem>>, vector<8x10xf32>
      tpu.vector_store %arg4[%c0_19, %c0_20], %32 {strides = array<i32>} : memref<8x10xf32, #tpu.memory_space<vmem>>, vector<8x10xf32>,
    } else {
    }
    %c0 = arith.constant 0 : index
    %c0_1 = arith.constant 0 : index
    %3 = vector.load %arg1[%c0, %c0_1] : memref<8x784xbf16, #tpu.memory_space<vmem>>, vector<8x784xbf16>
    %c0_2 = arith.constant 0 : index
    %c0_3 = arith.constant 0 : index
    %c0_4 = arith.constant 0 : index
    %4 = vector.load %arg2[%c0_2, %c0_3, %c0_4] : memref<1x784x2048xbf16, #tpu.memory_space<vmem>>, vector<1x784x2048xbf16>
    %5 = vector.shape_cast %4 : vector<1x784x2048xbf16> to vector<784x2048xbf16>
    %cst = arith.constant dense<0.000000e+00> : vector<8x2048xf32>
    %6 = tpu.matmul %3, %5, %cst {dimension_numbers = #tpu.dot_dimension_numbers<[1], [0], [0], [1], [0, 0, 1, 1], [], []>} : vector<8x784xbf16>, vector<784x2048xbf16>, vector<8x2048xf32> -> vector<8x2048xf32>
    %7 = vector.extract_strided_slice %6 {offsets = [0, 0], sizes = [8, 1024], strides = [1, 1]} : vector<8x2048xf32> to vector<8x1024xf32>
    %8 = vector.extract_strided_slice %6 {offsets = [0, 1024], sizes = [8, 1024], strides = [1, 1]} : vector<8x2048xf32> to vector<8x1024xf32>
    %cst_5 = arith.constant 5.000000e-01 : f32
    %9 = vector.broadcast %cst_5 : f32 to vector<8x1024xf32>
    %10 = arith.mulf %9, %7 : vector<8x1024xf32>
    %cst_6 = arith.constant 0.797884583 : f32
    %11 = vector.broadcast %cst_6 : f32 to vector<8x1024xf32>
    %12 = arith.mulf %11, %7 : vector<8x1024xf32>
    %cst_7 = arith.constant 4.471500e-02 : f32
    %13 = vector.broadcast %cst_7 : f32 to vector<8x1024xf32>
    %14 = arith.mulf %13, %7 : vector<8x1024xf32>
    %15 = arith.mulf %14, %7 : vector<8x1024xf32>
    %cst_8 = arith.constant 1.000000e+00 : f32
    %16 = vector.broadcast %cst_8 : f32 to vector<8x1024xf32>
    %17 = arith.addf %16, %15 : vector<8x1024xf32>
    %18 = arith.mulf %12, %17 : vector<8x1024xf32>
    %19 = math.tanh %18 : vector<8x1024xf32>
    %cst_9 = arith.constant 1.000000e+00 : f32
    %20 = vector.broadcast %cst_9 : f32 to vector<8x1024xf32>
    %21 = arith.addf %20, %19 : vector<8x1024xf32>
    %22 = arith.mulf %10, %21 : vector<8x1024xf32>
    %23 = arith.mulf %22, %8 : vector<8x1024xf32>
    %c0_10 = arith.constant 0 : index
    %c0_11 = arith.constant 0 : index
    %24 = vector.load %arg4[%c0_10, %c0_11] : memref<8x10xf32, #tpu.memory_space<vmem>>, vector<8x10xf32>
    %c0_12 = arith.constant 0 : index
    %c0_13 = arith.constant 0 : index
    %25 = vector.load %arg3[%c0_12, %c0_13] : memref<1024x10xf32, #tpu.memory_space<vmem>>, vector<1024x10xf32>
    %cst_14 = arith.constant dense<0.000000e+00> : vector<8x10xf32>
    %26 = tpu.matmul %23, %25, %cst_14 {dimension_numbers = #tpu.dot_dimension_numbers<[1], [0], [0], [1], [0, 0, 1, 1], [], []>} : vector<8x1024xf32>, vector<1024x10xf32>, vector<8x10xf32> -> vector<8x10xf32>
    %27 = arith.addf %24, %26 : vector<8x10xf32>
    %c0_15 = arith.constant 0 : index
    %c0_16 = arith.constant 0 : index
    %28 = vector.load %arg4[%c0_15, %c0_16] : memref<8x10xf32, #tpu.memory_space<vmem>>, vector<8x10xf32>
    tpu.vector_store %arg4[%c0_15, %c0_16], %27 {strides = array<i32>} : memref<8x10xf32, #tpu.memory_space<vmem>>, vector<8x10xf32>,
    %c3_i32 = arith.constant 3 : i32
    %29 = arith.cmpi eq, %arg0, %c3_i32 : i32
    %30 = arith.extui %29 : i1 to i32
    %c0_i32_17 = arith.constant 0 : i32
    %31 = arith.cmpi ne, %30, %c0_i32_17 : i32
    scf.if %31 {
      %c0_18 = arith.constant 0 : index
      %c0_19 = arith.constant 0 : index
      %32 = vector.load %arg4[%c0_18, %c0_19] : memref<8x10xf32, #tpu.memory_space<vmem>>, vector<8x10xf32>
      %cst_20 = arith.constant dense<0xFF800000> : vector<8xf32>
      %33 = vector.multi_reduction <maximumf>, %32, %cst_20 [1] : vector<8x10xf32> to vector<8xf32>
      %34 = vector.shape_cast %33 : vector<8xf32> to vector<8x1xf32>
      %35 = vector.broadcast %34 : vector<8x1xf32> to vector<8x10xf32>
      %36 = arith.subf %32, %35 : vector<8x10xf32>
      %37 = math.exp %36 : vector<8x10xf32>
      %cst_21 = arith.constant dense<0.000000e+00> : vector<8xf32>
      %38 = vector.multi_reduction <add>, %37, %cst_21 [1] : vector<8x10xf32> to vector<8xf32>
      %39 = vector.shape_cast %38 : vector<8xf32> to vector<8x1xf32>
      %40 = math.log %39 : vector<8x1xf32>
      %41 = arith.addf %34, %40 : vector<8x1xf32>
      %42 = vector.broadcast %41 : vector<8x1xf32> to vector<8x10xf32>
      %43 = arith.subf %32, %42 : vector<8x10xf32>
      %c0_22 = arith.constant 0 : index
      %c0_23 = arith.constant 0 : index
      %44 = vector.load %arg4[%c0_22, %c0_23] : memref<8x10xf32, #tpu.memory_space<vmem>>, vector<8x10xf32>
      tpu.vector_store %arg4[%c0_22, %c0_23], %43 {strides = array<i32>} : memref<8x10xf32, #tpu.memory_space<vmem>>, vector<8x10xf32>,
    } else {
    }
    return
  }
  func.func @transform_0(%arg0: i32) -> (i32, i32) {
    %c0_i32 = arith.constant 0 : i32
    %c0_i32_0 = arith.constant 0 : i32
    %c0_i32_1 = arith.constant 0 : i32
    return %c0_i32, %c0_i32_0 : i32, i32
  }
  func.func @transform_1(%arg0: i32) -> (i32, i32, i32) {
    %c0_i32 = arith.constant 0 : i32
    %c0_i32_0 = arith.constant 0 : i32
    %c0_i32_1 = arith.constant 0 : i32
    return %arg0, %c0_i32, %c0_i32_0 : i32, i32, i32
  }
  func.func @transform_2(%arg0: i32) -> (i32, i32) {
    %c0_i32 = arith.constant 0 : i32
    %c0_i32_0 = arith.constant 0 : i32
    return %arg0, %c0_i32 : i32, i32
  }
  func.func @transform_3(%arg0: i32) -> (i32, i32) {
    %c0_i32 = arith.constant 0 : i32
    %c0_i32_0 = arith.constant 0 : i32
    %c0_i32_1 = arith.constant 0 : i32
    return %c0_i32, %c0_i32_0 : i32, i32
  }
}

</mosaic_0001>

<llo_original>
// kernel: tpu_custom_call.1
$region0: #{tpu_custom_call.1}
  #allocation0 [shape = 'u32[]', space=smem, size = 0x4, offset = 0x4, fixed_abs, tag = 'smem constant byte address 0x4 - core index']
  #allocation1 [shape = 'u32[72,128]{1,0:T(1,128)}', space=vmem, size = 0x9000, scoped, tag = 'internal scratch']
  %s0 = inlined_call_operand.hbm [shape: bf16[8,784], index: 0, kind: input, shape index: {}]
  %s1 = inlined_call_operand.hbm [shape: bf16[4,784,2048], index: 1, kind: input, shape index: {}]
  %s2 = inlined_call_operand.vmem [shape: f32[4096,10], index: 2, kind: input, shape index: {}]
  %s3 = inlined_call_operand.hbm [shape: f32[8,10], index: 3, kind: output, shape index: {}]
  %s4 = sld [smem:[#allocation0]]
  $region61: #{tpu_custom_call.1} parent=0
    _
  %s6 = ssub.s32 1, %s4
  %s7 = scalar_select 0, %s6, %s4
  $region1: #{tpu_custom_call.1} parent=0
    #allocation2 [shape = 'u8[14336]{0}', space=vmem, size = 0x3800, scoped, tag = 'input window, operand 0, single buffered']
    #allocation3 [shape = 's32[2]{0}', space=sflag, size = 0x8, scoped, tag = 'scoped memory for tpu_custom_call.1']
    #allocation4 [shape = 's32[2]{0}', space=sflag, size = 0x8, scoped, tag = 'scoped memory for tpu_custom_call.1']
    #allocation5 [shape = 'u8[6422528]{0}', space=vmem, size = 0x620000, scoped, tag = 'input window, operand 1']
    #allocation6 [shape = 's32[2]{0}', space=sflag, size = 0x8, scoped, tag = 'scoped memory for tpu_custom_call.1']
    #allocation7 [shape = 'u8[4096]{0}', space=vmem, size = 0x1000, scoped, tag = 'output window, operand 0, single buffered']
    %8 = vsyncpa [#allocation3], 0
    %9 = vsyncpa [#allocation6], 0
    %s10 = scalar_lea.sflag [#allocation6], 1
    %11 = vsyncpa %s10, 0
    %12 = vsyncpa [#allocation4], 0
    loop: start=0, step=1, limit=6
    $region2: #{tpu_custom_call.1} parent=1 // loop_pre_header
      _
    $region3: #{tpu_custom_call.1} parent=1 // loop_header
      %s14 = sphi 0, %s18
      %p15 = scmp.ge.s32.totalorder %s14, 6
      %s22 = sphi 0, %s22
      %s24 = sphi 0, %s22
      %s25 = sphi 0, %s24
      %s39 = sphi 0, %s25
      %s45 = sphi 0, %s47
      %s48 = sphi 0, %s45
      %s49 = sphi 0, %s48
      %s65 = sphi 0, %s49
      %s71 = sphi 0, %s73
      %s74 = sphi 0, %s71
      %s75 = sphi 0, %s74
      %s91 = sphi 0, %s75
      %s95 = sphi 0, %s95
      %s97 = sphi 0, %s95
      %s98 = sphi 0, %s97
      %s112 = sphi 0, %s98
    $region4: #{tpu_custom_call.1} parent=1 // loop_header_branch
      %17 = sbr.rel (%p15) target = $region8
    $region5: #{tpu_custom_call.1} parent=1 // loop_body
      %s19 = ssub.s32 %s14, 1
      %s20 = ssub.s32 %s14, 2
      %s21 = sadd.s32 %s14, 1
      %s23 = sadd.s32 %s22, 1
      %p26 = scmp.eq.s32.totalorder %s14, 3
      %p27 = scmp.ne.s32.totalorder %s22, %s24
      %p28 = scmp.eq.s32.totalorder %s14, 0
      %p29 = por %p27, %p28
      %p30 = scmp.ne.s32.totalorder %s22, %s24
      %p31 = scmp.eq.s32.totalorder %s19, 3
      %p32 = por %p30, %p31
      %p33 = scmp.ne.s32.totalorder %s24, %s25
      %p34 = scmp.eq.s32.totalorder %s19, 0
      %p35 = por %p33, %p34
      %p36 = scmp.ne.s32.totalorder %s24, %s25
      %p37 = scmp.eq.s32.totalorder %s20, 3
      %p38 = por %p36, %p37
      %p40 = scmp.ne.s32.totalorder %s25, %s39
      %p41 = scmp.eq.s32.totalorder %s20, 0
      %p42 = por %p40, %p41
      %s43 = ssub.s32 %s14, %s21
      %p44 = scmp.eq.s32.totalorder %s43, 0
      %s46 = sadd.s32 %s45, 1
      %s47 = scalar_select %p44, %s45, %s46
      %p50 = pneg %p44
      %p51 = scmp.eq.s32.totalorder %s14, 3
      %p52 = por %p50, %p51
      %p53 = scmp.ne.s32.totalorder %s45, %s48
      %p54 = scmp.eq.s32.totalorder %s14, 0
      %p55 = por %p53, %p54
      %p56 = scmp.ne.s32.totalorder %s45, %s48
      %p57 = scmp.eq.s32.totalorder %s19, 3
      %p58 = por %p56, %p57
      %p59 = scmp.ne.s32.totalorder %s48, %s49
      %p60 = scmp.eq.s32.totalorder %s19, 0
      %p61 = por %p59, %p60
      %p62 = scmp.ne.s32.totalorder %s48, %s49
      %p63 = scmp.eq.s32.totalorder %s20, 3
      %p64 = por %p62, %p63
      %p66 = scmp.ne.s32.totalorder %s49, %s65
      %p67 = scmp.eq.s32.totalorder %s20, 0
      %p68 = por %p66, %p67
      %s69 = ssub.s32 %s14, %s21
      %p70 = scmp.eq.s32.totalorder %s69, 0
      %s72 = sadd.s32 %s71, 1
      %s73 = scalar_select %p70, %s71, %s72
      %p76 = pneg %p70
      %p77 = scmp.eq.s32.totalorder %s14, 3
      %p78 = por %p76, %p77
      %p79 = scmp.ne.s32.totalorder %s71, %s74
      %p80 = scmp.eq.s32.totalorder %s14, 0
      %p81 = por %p79, %p80
      %p82 = scmp.ne.s32.totalorder %s71, %s74
      %p83 = scmp.eq.s32.totalorder %s19, 3
      %p84 = por %p82, %p83
      %p85 = scmp.ne.s32.totalorder %s74, %s75
      %p86 = scmp.eq.s32.totalorder %s19, 0
      %p87 = por %p85, %p86
      %p88 = scmp.ne.s32.totalorder %s74, %s75
      %p89 = scmp.eq.s32.totalorder %s20, 3
      %p90 = por %p88, %p89
      %p92 = scmp.ne.s32.totalorder %s75, %s91
      %p93 = scmp.eq.s32.totalorder %s20, 0
      %p94 = por %p92, %p93
      %s96 = sadd.s32 %s95, 1
      %p99 = scmp.eq.s32.totalorder %s14, 3
      %p100 = scmp.ne.s32.totalorder %s95, %s97
      %p101 = scmp.eq.s32.totalorder %s14, 0
      %p102 = por %p100, %p101
      %p103 = scmp.ne.s32.totalorder %s95, %s97
      %p104 = scmp.eq.s32.totalorder %s19, 3
      %p105 = por %p103, %p104
      %p106 = scmp.ne.s32.totalorder %s97, %s98
      %p107 = scmp.eq.s32.totalorder %s19, 0
      %p108 = por %p106, %p107
      %p109 = scmp.ne.s32.totalorder %s97, %s98
      %p110 = scmp.eq.s32.totalorder %s20, 3
      %p111 = por %p109, %p110
      %p113 = scmp.ne.s32.totalorder %s98, %s112
      %p114 = scmp.eq.s32.totalorder %s20, 0
      %p115 = por %p113, %p114
      %p116 = scmp.le.s32.totalorder 1, %s14
      %p117 = scmp.lt.s32.totalorder %s14, 5
      %p118 = pnand %p116, %p117
      %p119 = pneg %p118
      // Predicated region
      $region9: #{tpu_custom_call.1} parent=5 // pred_check
        _
      $region10: #{tpu_custom_call.1} parent=5 // pred_check_branch
        %121 = sbr.rel (%p118) target = $region12
      $region11: #{tpu_custom_call.1} parent=5 // pred_region
        %s122 = ssub.s32 %s14, 1
        // Predicated region
        $region13: #{tpu_custom_call.1} parent=11 // pred_check
          %p123 = pneg %p35
        $region14: #{tpu_custom_call.1} parent=11 // pred_check_branch
          %125 = sbr.rel (%p123) target = $region16
        $region15: #{tpu_custom_call.1} parent=11 // pred_region
          %127 = vsyncadd [#allocation3], 0
          %s129 = sshll.u32 %s0, 4
          %s130 = int_to_ptr.hbm [resolvable:$true] %s129
          %s131 = sshll.u32 [#allocation2], 4
          %s132 = int_to_ptr.vmem [resolvable:$true] %s131
          %134 = dma.hbm_to_vmem [thread:$0]  %s130, 448, %s132, [#allocation3]
        $region16: #{tpu_custom_call.1} parent=11 // pred_fallthru
          _
      $region12: #{tpu_custom_call.1} parent=5 // pred_fallthru
        _
      %p135 = scmp.lt.s32.totalorder %s14, 4
      // Predicated region
      $region17: #{tpu_custom_call.1} parent=5 // pred_check
        %p136 = pneg %p135
      $region18: #{tpu_custom_call.1} parent=5 // pred_check_branch
        %138 = sbr.rel (%p136) target = $region20
      $region19: #{tpu_custom_call.1} parent=5 // pred_region
        // Predicated region
        $region21: #{tpu_custom_call.1} parent=19 // pred_check
          %p139 = pneg %p55
        $region22: #{tpu_custom_call.1} parent=19 // pred_check_branch
          %141 = sbr.rel (%p139) target = $region24
        $region23: #{tpu_custom_call.1} parent=19 // pred_region
          %s142 = sand.u32 %s45, 1
          %s143 = scalar_lea.sflag [#allocation6], %s142
          %s144 = sand.u32 %s45, 1
          %s145 = smul.addr %s144, 6272
          %s146 = scalar_lea.vmem [#allocation5], %s145
          %148 = vsyncadd %s143, 0
          %s149 = smul.addr %s14, 1568
          %s150 = smul.addr %s149, 4
          %s151 = scalar_lea.hbm %s1, %s150
          %s152 = sshll.u32 %s151, 4
          %s153 = int_to_ptr.hbm [resolvable:$true] %s152
          %s154 = sshll.u32 %s146, 4
          %s155 = int_to_ptr.vmem [resolvable:$true] %s154
          %160 = dma.hbm_to_vmem [thread:$0]  %s153, 100352, %s155, %s143, 1024, 1024, 64
        $region24: #{tpu_custom_call.1} parent=19 // pred_fallthru
          _
        // Predicated region
        $region25: #{tpu_custom_call.1} parent=19 // pred_check
          %p161 = pneg %p81
        $region26: #{tpu_custom_call.1} parent=19 // pred_check_branch
          %163 = sbr.rel (%p161) target = $region28
        $region27: #{tpu_custom_call.1} parent=19 // pred_region
          %s164 = smul.u32 128, %s14
          %p165 = scmp.lt.s32.totalorder %s164, 511
          %s166 = scalar_select %p165, %s164, 511
          %s167 = smul.addr %s166, 8
          %s168 = scalar_lea.vmem %s2, %s167
          %s169 = smul.u32 128, %s14
        $region28: #{tpu_custom_call.1} parent=19 // pred_fallthru
          _
      $region20: #{tpu_custom_call.1} parent=5 // pred_fallthru
        _
      %p170 = scmp.le.s32.totalorder 1, %s14
      %p171 = scmp.lt.s32.totalorder %s14, 5
      %p172 = pnand %p170, %p171
      %p173 = pneg %p172
      // Predicated region
      $region29: #{tpu_custom_call.1} parent=5 // pred_check
        _
      $region30: #{tpu_custom_call.1} parent=5 // pred_check_branch
        %175 = sbr.rel (%p172) target = $region32
      $region31: #{tpu_custom_call.1} parent=5 // pred_region
        %s176 = ssub.s32 %s14, 1
        // Predicated region
        $region33: #{tpu_custom_call.1} parent=31 // pred_check
          %p177 = pneg %p35
        $region34: #{tpu_custom_call.1} parent=31 // pred_check_branch
          %179 = sbr.rel (%p177) target = $region36
        $region35: #{tpu_custom_call.1} parent=31 // pred_region
          %181 = dma.done [#allocation3], 448
        $region36: #{tpu_custom_call.1} parent=31 // pred_fallthru
          _
        %s182 = sand.u32 %s48, 1
        %s183 = scalar_lea.sflag [#allocation6], %s182
        %s184 = sand.u32 %s48, 1
        %s185 = smul.addr %s184, 6272
        %s186 = scalar_lea.vmem [#allocation5], %s185
        // Predicated region
        $region37: #{tpu_custom_call.1} parent=31 // pred_check
          %p187 = pneg %p61
        $region38: #{tpu_custom_call.1} parent=31 // pred_check_branch
          %189 = sbr.rel (%p187) target = $region40
        $region39: #{tpu_custom_call.1} parent=31 // pred_region
          %191 = dma.done %s183, 100352
        $region40: #{tpu_custom_call.1} parent=31 // pred_fallthru
          _
        %p192 = pneg %p35
        %p193 = pneg %p32
        %s194 = sand.u32 %s48, 1
        %s195 = scalar_lea.sflag [#allocation6], %s194
        %s196 = sand.u32 %s48, 1
        %s197 = smul.addr %s196, 6272
        %s198 = scalar_lea.vmem [#allocation5], %s197
        %p199 = pneg %p61
        %p200 = pneg %p58
        %s201 = smul.u32 128, %s19
        %p202 = scmp.lt.s32.totalorder %s201, 511
        %s203 = scalar_select %p202, %s201, 511
        %s204 = smul.addr %s203, 8
        %s205 = scalar_lea.vmem %s2, %s204
        %p206 = pneg %p87
        %p207 = pneg %p84
        %p208 = pneg %p108
        %p209 = pneg %p105
        %s210 = smul.u32 128, %s19
        %p211 = scmp.lt.s32.totalorder %s210, 511
        %s212 = scalar_select %p211, %s210, 511
        %s213 = smul.addr %s212, 8
        %s214 = scalar_lea.vmem %s2, %s213
        %s215 = smul.u32 128, %s19
        %p217 = scmp.eq.s32.totalorder %s19, 0
        // Predicated region
        $region41: #{tpu_custom_call.1} parent=31 // pred_check
          %p218 = pneg %p217
        $region42: #{tpu_custom_call.1} parent=31 // pred_check_branch
          %220 = sbr.rel (%p218) target = $region44
        $region43: #{tpu_custom_call.1} parent=31 // pred_region
          %vm221 = vcmask 80896
          %222 = vst.msk [vmem:[#allocation7] sm:$0xff] %vm221, 0.0
        $region44: #{tpu_custom_call.1} parent=31 // pred_fallthru
          _
        %v223 = vld [vmem:[#allocation2] sm:$0xff]
        %v224 = vld [vmem:[#allocation2 + $0x8] sm:$0xff]
        %v225 = vld [vmem:[#allocation2 + $0x10] sm:$0xff]
        %v226 = vld [vmem:[#allocation2 + $0x18] sm:$0xf]
        %v227 = vld [vmem:[%s186] sm:$0xff]
        %v228 = vld [vmem:[%s186 + $0x8] sm:$0xff]
        %v229 = vld [vmem:[%s186 + $0x10] sm:$0xff]
        %v230 = vld [vmem:[%s186 + $0x18] sm:$0xff]
        %v231 = vld [vmem:[%s186 + $0x20] sm:$0xff]
        %v232 = vld [vmem:[%s186 + $0x28] sm:$0xff]
        %v233 = vld [vmem:[%s186 + $0x30] sm:$0xff]
        %v234 = vld [vmem:[%s186 + $0x38] sm:$0xff]
        %v235 = vld [vmem:[%s186 + $0x40] sm:$0xff]
        %v236 = vld [vmem:[%s186 + $0x48] sm:$0xff]
        %v237 = vld [vmem:[%s186 + $0x50] sm:$0xff]
        %v238 = vld [vmem:[%s186 + $0x58] sm:$0xff]
        %v239 = vld [vmem:[%s186 + $0x60] sm:$0xff]
        %v240 = vld [vmem:[%s186 + $0x68] sm:$0xff]
        %v241 = vld [vmem:[%s186 + $0x70] sm:$0xff]
        %v242 = vld [vmem:[%s186 + $0x78] sm:$0xff]
        %v243 = vld [vmem:[%s186 + $0x80] sm:$0xff]
        %v244 = vld [vmem:[%s186 + $0x88] sm:$0xff]
        %v245 = vld [vmem:[%s186 + $0x90] sm:$0xff]
        %v246 = vld [vmem:[%s186 + $0x98] sm:$0xff]
        %v247 = vld [vmem:[%s186 + $0xa0] sm:$0xff]
        %v248 = vld [vmem:[%s186 + $0xa8] sm:$0xff]
        %v249 = vld [vmem:[%s186 + $0xb0] sm:$0xff]
        %v250 = vld [vmem:[%s186 + $0xb8] sm:$0xff]
        %v251 = vld [vmem:[%s186 + $0xc0] sm:$0xff]
        %v252 = vld [vmem:[%s186 + $0xc8] sm:$0xff]
        %v253 = vld [vmem:[%s186 + $0xd0] sm:$0xff]
        %v254 = vld [vmem:[%s186 + $0xd8] sm:$0xff]
        %v255 = vld [vmem:[%s186 + $0xe0] sm:$0xff]
        %v256 = vld [vmem:[%s186 + $0xe8] sm:$0xff]
        %v257 = vld [vmem:[%s186 + $0xf0] sm:$0xff]
        %v258 = vld [vmem:[%s186 + $0xf8] sm:$0xff]
        %v259 = vld [vmem:[%s186 + $0x100] sm:$0xff]
        %v260 = vld [vmem:[%s186 + $0x108] sm:$0xff]
        %v261 = vld [vmem:[%s186 + $0x110] sm:$0xff]
        %v262 = vld [vmem:[%s186 + $0x118] sm:$0xff]
        %v263 = vld [vmem:[%s186 + $0x120] sm:$0xff]
        %v264 = vld [vmem:[%s186 + $0x128] sm:$0xff]
        %v265 = vld [vmem:[%s186 + $0x130] sm:$0xff]
        %v266 = vld [vmem:[%s186 + $0x138] sm:$0xff]
        %v267 = vld [vmem:[%s186 + $0x140] sm:$0xff]
        %v268 = vld [vmem:[%s186 + $0x148] sm:$0xff]
        %v269 = vld [vmem:[%s186 + $0x150] sm:$0xff]
        %v270 = vld [vmem:[%s186 + $0x158] sm:$0xff]
        %v271 = vld [vmem:[%s186 + $0x160] sm:$0xff]
        %v272 = vld [vmem:[%s186 + $0x168] sm:$0xff]
        %v273 = vld [vmem:[%s186 + $0x170] sm:$0xff]
        %v274 = vld [vmem:[%s186 + $0x178] sm:$0xff]
        %v275 = vld [vmem:[%s186 + $0x180] sm:$0xff]
        %v276 = vld [vmem:[%s186 + $0x188] sm:$0xff]
        %v277 = vld [vmem:[%s186 + $0x190] sm:$0xff]
        %v278 = vld [vmem:[%s186 + $0x198] sm:$0xff]
        %v279 = vld [vmem:[%s186 + $0x1a0] sm:$0xff]
        %v280 = vld [vmem:[%s186 + $0x1a8] sm:$0xff]
        %v281 = vld [vmem:[%s186 + $0x1b0] sm:$0xff]
        %v282 = vld [vmem:[%s186 + $0x1b8] sm:$0xff]
        %v283 = vld [vmem:[%s186 + $0x1c0] sm:$0xff]
        %v284 = vld [vmem:[%s186 + $0x1c8] sm:$0xff]
        %v285 = vld [vmem:[%s186 + $0x1d0] sm:$0xff]
        %v286 = vld [vmem:[%s186 + $0x1d8] sm:$0xff]
        %v287 = vld [vmem:[%s186 + $0x1e0] sm:$0xff]
        %v288 = vld [vmem:[%s186 + $0x1e8] sm:$0xff]
        %v289 = vld [vmem:[%s186 + $0x1f0] sm:$0xff]
        %v290 = vld [vmem:[%s186 + $0x1f8] sm:$0xff]
        %v291 = vld [vmem:[%s186 + $0x200] sm:$0xff]
        %v292 = vld [vmem:[%s186 + $0x208] sm:$0xff]
        %v293 = vld [vmem:[%s186 + $0x210] sm:$0xff]
        %v294 = vld [vmem:[%s186 + $0x218] sm:$0xff]
        %v295 = vld [vmem:[%s186 + $0x220] sm:$0xff]
        %v296 = vld [vmem:[%s186 + $0x228] sm:$0xff]
        %v297 = vld [vmem:[%s186 + $0x230] sm:$0xff]
        %v298 = vld [vmem:[%s186 + $0x238] sm:$0xff]
        %v299 = vld [vmem:[%s186 + $0x240] sm:$0xff]
        %v300 = vld [vmem:[%s186 + $0x248] sm:$0xff]
        %v301 = vld [vmem:[%s186 + $0x250] sm:$0xff]
        %v302 = vld [vmem:[%s186 + $0x258] sm:$0xff]
        %v303 = vld [vmem:[%s186 + $0x260] sm:$0xff]
        %v304 = vld [vmem:[%s186 + $0x268] sm:$0xff]
        %v305 = vld [vmem:[%s186 + $0x270] sm:$0xff]
        %v306 = vld [vmem:[%s186 + $0x278] sm:$0xff]
        %v307 = vld [vmem:[%s186 + $0x280] sm:$0xff]
        %v308 = vld [vmem:[%s186 + $0x288] sm:$0xff]
        %v309 = vld [vmem:[%s186 + $0x290] sm:$0xff]
        %v310 = vld [vmem:[%s186 + $0x298] sm:$0xff]
        %v311 = vld [vmem:[%s186 + $0x2a0] sm:$0xff]
        %v312 = vld [vmem:[%s186 + $0x2a8] sm:$0xff]
        %v313 = vld [vmem:[%s186 + $0x2b0] sm:$0xff]
        %v314 = vld [vmem:[%s186 + $0x2b8] sm:$0xff]
        %v315 = vld [vmem:[%s186 + $0x2c0] sm:$0xff]
        %v316 = vld [vmem:[%s186 + $0x2c8] sm:$0xff]
        %v317 = vld [vmem:[%s186 + $0x2d0] sm:$0xff]
        %v318 = vld [vmem:[%s186 + $0x2d8] sm:$0xff]
        %v319 = vld [vmem:[%s186 + $0x2e0] sm:$0xff]
        %v320 = vld [vmem:[%s186 + $0x2e8] sm:$0xff]
        %v321 = vld [vmem:[%s186 + $0x2f0] sm:$0xff]
        %v322 = vld [vmem:[%s186 + $0x2f8] sm:$0xff]
        %v323 = vld [vmem:[%s186 + $0x300] sm:$0xff]
        %v324 = vld [vmem:[%s186 + $0x308] sm:$0xff]
        %v325 = vld [vmem:[%s186 + $0x310] sm:$0xff]
        %v326 = vld [vmem:[%s186 + $0x318] sm:$0xff]
        %v327 = vld [vmem:[%s186 + $0x320] sm:$0xff]
        %v328 = vld [vmem:[%s186 + $0x328] sm:$0xff]
        %v329 = vld [vmem:[%s186 + $0x330] sm:$0xff]
        %v330 = vld [vmem:[%s186 + $0x338] sm:$0xff]
        %v331 = vld [vmem:[%s186 + $0x340] sm:$0xff]
        %v332 = vld [vmem:[%s186 + $0x348] sm:$0xff]
        %v333 = vld [vmem:[%s186 + $0x350] sm:$0xff]
        %v334 = vld [vmem:[%s186 + $0x358] sm:$0xff]
        %v335 = vld [vmem:[%s186 + $0x360] sm:$0xff]
        %v336 = vld [vmem:[%s186 + $0x368] sm:$0xff]
        %v337 = vld [vmem:[%s186 + $0x370] sm:$0xff]
        %v338 = vld [vmem:[%s186 + $0x378] sm:$0xff]
        %v339 = vld [vmem:[%s186 + $0x380] sm:$0xff]
        %v340 = vld [vmem:[%s186 + $0x388] sm:$0xff]
        %v341 = vld [vmem:[%s186 + $0x390] sm:$0xff]
        %v342 = vld [vmem:[%s186 + $0x398] sm:$0xff]
        %v343 = vld [vmem:[%s186 + $0x3a0] sm:$0xff]
        %v344 = vld [vmem:[%s186 + $0x3a8] sm:$0xff]
        %v345 = vld [vmem:[%s186 + $0x3b0] sm:$0xff]
        %v346 = vld [vmem:[%s186 + $0x3b8] sm:$0xff]
        %v347 = vld [vmem:[%s186 + $0x3c0] sm:$0xff]
        %v348 = vld [vmem:[%s186 + $0x3c8] sm:$0xff]
        %v349 = vld [vmem:[%s186 + $0x3d0] sm:$0xff]
        %v350 = vld [vmem:[%s186 + $0x3d8] sm:$0xff]
        %v351 = vld [vmem:[%s186 + $0x3e0] sm:$0xff]
        %v352 = vld [vmem:[%s186 + $0x3e8] sm:$0xff]
        %v353 = vld [vmem:[%s186 + $0x3f0] sm:$0xff]
        %v354 = vld [vmem:[%s186 + $0x3f8] sm:$0xff]
        %v355 = vld [vmem:[%s186 + $0x400] sm:$0xff]
        %v356 = vld [vmem:[%s186 + $0x408] sm:$0xff]
        %v357 = vld [vmem:[%s186 + $0x410] sm:$0xff]
        %v358 = vld [vmem:[%s186 + $0x418] sm:$0xff]
        %v359 = vld [vmem:[%s186 + $0x420] sm:$0xff]
        %v360 = vld [vmem:[%s186 + $0x428] sm:$0xff]
        %v361 = vld [vmem:[%s186 + $0x430] sm:$0xff]
        %v362 = vld [vmem:[%s186 + $0x438] sm:$0xff]
        %v363 = vld [vmem:[%s186 + $0x440] sm:$0xff]
        %v364 = vld [vmem:[%s186 + $0x448] sm:$0xff]
        %v365 = vld [vmem:[%s186 + $0x450] sm:$0xff]
        %v366 = vld [vmem:[%s186 + $0x458] sm:$0xff]
        %v367 = vld [vmem:[%s186 + $0x460] sm:$0xff]
        %v368 = vld [vmem:[%s186 + $0x468] sm:$0xff]
        %v369 = vld [vmem:[%s186 + $0x470] sm:$0xff]
        %v370 = vld [vmem:[%s186 + $0x478] sm:$0xff]
        %v371 = vld [vmem:[%s186 + $0x480] sm:$0xff]
        %v372 = vld [vmem:[%s186 + $0x488] sm:$0xff]
        %v373 = vld [vmem:[%s186 + $0x490] sm:$0xff]
        %v374 = vld [vmem:[%s186 + $0x498] sm:$0xff]
        %v375 = vld [vmem:[%s186 + $0x4a0] sm:$0xff]
        %v376 = vld [vmem:[%s186 + $0x4a8] sm:$0xff]
        %v377 = vld [vmem:[%s186 + $0x4b0] sm:$0xff]
        %v378 = vld [vmem:[%s186 + $0x4b8] sm:$0xff]
        %v379 = vld [vmem:[%s186 + $0x4c0] sm:$0xff]
        %v380 = vld [vmem:[%s186 + $0x4c8] sm:$0xff]
        %v381 = vld [vmem:[%s186 + $0x4d0] sm:$0xff]
        %v382 = vld [vmem:[%s186 + $0x4d8] sm:$0xff]
        %v383 = vld [vmem:[%s186 + $0x4e0] sm:$0xff]
        %v384 = vld [vmem:[%s186 + $0x4e8] sm:$0xff]
        %v385 = vld [vmem:[%s186 + $0x4f0] sm:$0xff]
        %v386 = vld [vmem:[%s186 + $0x4f8] sm:$0xff]
        %v387 = vld [vmem:[%s186 + $0x500] sm:$0xff]
        %v388 = vld [vmem:[%s186 + $0x508] sm:$0xff]
        %v389 = vld [vmem:[%s186 + $0x510] sm:$0xff]
        %v390 = vld [vmem:[%s186 + $0x518] sm:$0xff]
        %v391 = vld [vmem:[%s186 + $0x520] sm:$0xff]
        %v392 = vld [vmem:[%s186 + $0x528] sm:$0xff]
        %v393 = vld [vmem:[%s186 + $0x530] sm:$0xff]
        %v394 = vld [vmem:[%s186 + $0x538] sm:$0xff]
        %v395 = vld [vmem:[%s186 + $0x540] sm:$0xff]
        %v396 = vld [vmem:[%s186 + $0x548] sm:$0xff]
        %v397 = vld [vmem:[%s186 + $0x550] sm:$0xff]
        %v398 = vld [vmem:[%s186 + $0x558] sm:$0xff]
        %v399 = vld [vmem:[%s186 + $0x560] sm:$0xff]
        %v400 = vld [vmem:[%s186 + $0x568] sm:$0xff]
        %v401 = vld [vmem:[%s186 + $0x570] sm:$0xff]
        %v402 = vld [vmem:[%s186 + $0x578] sm:$0xff]
        %v403 = vld [vmem:[%s186 + $0x580] sm:$0xff]
        %v404 = vld [vmem:[%s186 + $0x588] sm:$0xff]
        %v405 = vld [vmem:[%s186 + $0x590] sm:$0xff]
        %v406 = vld [vmem:[%s186 + $0x598] sm:$0xff]
        %v407 = vld [vmem:[%s186 + $0x5a0] sm:$0xff]
        %v408 = vld [vmem:[%s186 + $0x5a8] sm:$0xff]
        %v409 = vld [vmem:[%s186 + $0x5b0] sm:$0xff]
        %v410 = vld [vmem:[%s186 + $0x5b8] sm:$0xff]
        %v411 = vld [vmem:[%s186 + $0x5c0] sm:$0xff]
        %v412 = vld [vmem:[%s186 + $0x5c8] sm:$0xff]
        %v413 = vld [vmem:[%s186 + $0x5d0] sm:$0xff]
        %v414 = vld [vmem:[%s186 + $0x5d8] sm:$0xff]
        %v415 = vld [vmem:[%s186 + $0x5e0] sm:$0xff]
        %v416 = vld [vmem:[%s186 + $0x5e8] sm:$0xff]
        %v417 = vld [vmem:[%s186 + $0x5f0] sm:$0xff]
        %v418 = vld [vmem:[%s186 + $0x5f8] sm:$0xff]
        %v419 = vld [vmem:[%s186 + $0x600] sm:$0xff]
        %v420 = vld [vmem:[%s186 + $0x608] sm:$0xff]
        %v421 = vld [vmem:[%s186 + $0x610] sm:$0xff]
        %v422 = vld [vmem:[%s186 + $0x618] sm:$0xff]
        %v423 = vld [vmem:[%s186 + $0x620] sm:$0xff]
        %v424 = vld [vmem:[%s186 + $0x628] sm:$0xff]
        %v425 = vld [vmem:[%s186 + $0x630] sm:$0xff]
        %v426 = vld [vmem:[%s186 + $0x638] sm:$0xff]
        %v427 = vld [vmem:[%s186 + $0x640] sm:$0xff]
        %v428 = vld [vmem:[%s186 + $0x648] sm:$0xff]
        %v429 = vld [vmem:[%s186 + $0x650] sm:$0xff]
        %v430 = vld [vmem:[%s186 + $0x658] sm:$0xff]
        %v431 = vld [vmem:[%s186 + $0x660] sm:$0xff]
        %v432 = vld [vmem:[%s186 + $0x668] sm:$0xff]
        %v433 = vld [vmem:[%s186 + $0x670] sm:$0xff]
        %v434 = vld [vmem:[%s186 + $0x678] sm:$0xff]
        %v435 = vld [vmem:[%s186 + $0x680] sm:$0xff]
        %v436 = vld [vmem:[%s186 + $0x688] sm:$0xff]
        %v437 = vld [vmem:[%s186 + $0x690] sm:$0xff]
        %v438 = vld [vmem:[%s186 + $0x698] sm:$0xff]
        %v439 = vld [vmem:[%s186 + $0x6a0] sm:$0xff]
        %v440 = vld [vmem:[%s186 + $0x6a8] sm:$0xff]
        %v441 = vld [vmem:[%s186 + $0x6b0] sm:$0xff]
        %v442 = vld [vmem:[%s186 + $0x6b8] sm:$0xff]
        %v443 = vld [vmem:[%s186 + $0x6c0] sm:$0xff]
        %v444 = vld [vmem:[%s186 + $0x6c8] sm:$0xff]
        %v445 = vld [vmem:[%s186 + $0x6d0] sm:$0xff]
        %v446 = vld [vmem:[%s186 + $0x6d8] sm:$0xff]
        %v447 = vld [vmem:[%s186 + $0x6e0] sm:$0xff]
        %v448 = vld [vmem:[%s186 + $0x6e8] sm:$0xff]
        %v449 = vld [vmem:[%s186 + $0x6f0] sm:$0xff]
        %v450 = vld [vmem:[%s186 + $0x6f8] sm:$0xff]
        %v451 = vld [vmem:[%s186 + $0x700] sm:$0xff]
        %v452 = vld [vmem:[%s186 + $0x708] sm:$0xff]
        %v453 = vld [vmem:[%s186 + $0x710] sm:$0xff]
        %v454 = vld [vmem:[%s186 + $0x718] sm:$0xff]
        %v455 = vld [vmem:[%s186 + $0x720] sm:$0xff]
        %v456 = vld [vmem:[%s186 + $0x728] sm:$0xff]
        %v457 = vld [vmem:[%s186 + $0x730] sm:$0xff]
        %v458 = vld [vmem:[%s186 + $0x738] sm:$0xff]
        %v459 = vld [vmem:[%s186 + $0x740] sm:$0xff]
        %v460 = vld [vmem:[%s186 + $0x748] sm:$0xff]
        %v461 = vld [vmem:[%s186 + $0x750] sm:$0xff]
        %v462 = vld [vmem:[%s186 + $0x758] sm:$0xff]
        %v463 = vld [vmem:[%s186 + $0x760] sm:$0xff]
        %v464 = vld [vmem:[%s186 + $0x768] sm:$0xff]
        %v465 = vld [vmem:[%s186 + $0x770] sm:$0xff]
        %v466 = vld [vmem:[%s186 + $0x778] sm:$0xff]
        %v467 = vld [vmem:[%s186 + $0x780] sm:$0xff]
        %v468 = vld [vmem:[%s186 + $0x788] sm:$0xff]
        %v469 = vld [vmem:[%s186 + $0x790] sm:$0xff]
        %v470 = vld [vmem:[%s186 + $0x798] sm:$0xff]
        %v471 = vld [vmem:[%s186 + $0x7a0] sm:$0xff]
        %v472 = vld [vmem:[%s186 + $0x7a8] sm:$0xff]
        %v473 = vld [vmem:[%s186 + $0x7b0] sm:$0xff]
        %v474 = vld [vmem:[%s186 + $0x7b8] sm:$0xff]
        %v475 = vld [vmem:[%s186 + $0x7c0] sm:$0xff]
        %v476 = vld [vmem:[%s186 + $0x7c8] sm:$0xff]
        %v477 = vld [vmem:[%s186 + $0x7d0] sm:$0xff]
        %v478 = vld [vmem:[%s186 + $0x7d8] sm:$0xff]
        %v479 = vld [vmem:[%s186 + $0x7e0] sm:$0xff]
        %v480 = vld [vmem:[%s186 + $0x7e8] sm:$0xff]
        %v481 = vld [vmem:[%s186 + $0x7f0] sm:$0xff]
        %v482 = vld [vmem:[%s186 + $0x7f8] sm:$0xff]
        %v483 = vld [vmem:[%s186 + $0x800] sm:$0xff]
        %v484 = vld [vmem:[%s186 + $0x808] sm:$0xff]
        %v485 = vld [vmem:[%s186 + $0x810] sm:$0xff]
        %v486 = vld [vmem:[%s186 + $0x818] sm:$0xff]
        %v487 = vld [vmem:[%s186 + $0x820] sm:$0xff]
        %v488 = vld [vmem:[%s186 + $0x828] sm:$0xff]
        %v489 = vld [vmem:[%s186 + $0x830] sm:$0xff]
        %v490 = vld [vmem:[%s186 + $0x838] sm:$0xff]
        %v491 = vld [vmem:[%s186 + $0x840] sm:$0xff]
        %v492 = vld [vmem:[%s186 + $0x848] sm:$0xff]
        %v493 = vld [vmem:[%s186 + $0x850] sm:$0xff]
        %v494 = vld [vmem:[%s186 + $0x858] sm:$0xff]
        %v495 = vld [vmem:[%s186 + $0x860] sm:$0xff]
        %v496 = vld [vmem:[%s186 + $0x868] sm:$0xff]
        %v497 = vld [vmem:[%s186 + $0x870] sm:$0xff]
        %v498 = vld [vmem:[%s186 + $0x878] sm:$0xff]
        %v499 = vld [vmem:[%s186 + $0x880] sm:$0xff]
        %v500 = vld [vmem:[%s186 + $0x888] sm:$0xff]
        %v501 = vld [vmem:[%s186 + $0x890] sm:$0xff]
        %v502 = vld [vmem:[%s186 + $0x898] sm:$0xff]
        %v503 = vld [vmem:[%s186 + $0x8a0] sm:$0xff]
        %v504 = vld [vmem:[%s186 + $0x8a8] sm:$0xff]
        %v505 = vld [vmem:[%s186 + $0x8b0] sm:$0xff]
        %v506 = vld [vmem:[%s186 + $0x8b8] sm:$0xff]
        %v507 = vld [vmem:[%s186 + $0x8c0] sm:$0xff]
        %v508 = vld [vmem:[%s186 + $0x8c8] sm:$0xff]
        %v509 = vld [vmem:[%s186 + $0x8d0] sm:$0xff]
        %v510 = vld [vmem:[%s186 + $0x8d8] sm:$0xff]
        %v511 = vld [vmem:[%s186 + $0x8e0] sm:$0xff]
        %v512 = vld [vmem:[%s186 + $0x8e8] sm:$0xff]
        %v513 = vld [vmem:[%s186 + $0x8f0] sm:$0xff]
        %v514 = vld [vmem:[%s186 + $0x8f8] sm:$0xff]
        %v515 = vld [vmem:[%s186 + $0x900] sm:$0xff]
        %v516 = vld [vmem:[%s186 + $0x908] sm:$0xff]
        %v517 = vld [vmem:[%s186 + $0x910] sm:$0xff]
        %v518 = vld [vmem:[%s186 + $0x918] sm:$0xff]
        %v519 = vld [vmem:[%s186 + $0x920] sm:$0xff]
        %v520 = vld [vmem:[%s186 + $0x928] sm:$0xff]
        %v521 = vld [vmem:[%s186 + $0x930] sm:$0xff]
        %v522 = vld [vmem:[%s186 + $0x938] sm:$0xff]
        %v523 = vld [vmem:[%s186 + $0x940] sm:$0xff]
        %v524 = vld [vmem:[%s186 + $0x948] sm:$0xff]
        %v525 = vld [vmem:[%s186 + $0x950] sm:$0xff]
        %v526 = vld [vmem:[%s186 + $0x958] sm:$0xff]
        %v527 = vld [vmem:[%s186 + $0x960] sm:$0xff]
        %v528 = vld [vmem:[%s186 + $0x968] sm:$0xff]
        %v529 = vld [vmem:[%s186 + $0x970] sm:$0xff]
        %v530 = vld [vmem:[%s186 + $0x978] sm:$0xff]
        %v531 = vld [vmem:[%s186 + $0x980] sm:$0xff]
        %v532 = vld [vmem:[%s186 + $0x988] sm:$0xff]
        %v533 = vld [vmem:[%s186 + $0x990] sm:$0xff]
        %v534 = vld [vmem:[%s186 + $0x998] sm:$0xff]
        %v535 = vld [vmem:[%s186 + $0x9a0] sm:$0xff]
        %v536 = vld [vmem:[%s186 + $0x9a8] sm:$0xff]
        %v537 = vld [vmem:[%s186 + $0x9b0] sm:$0xff]
        %v538 = vld [vmem:[%s186 + $0x9b8] sm:$0xff]
        %v539 = vld [vmem:[%s186 + $0x9c0] sm:$0xff]
        %v540 = vld [vmem:[%s186 + $0x9c8] sm:$0xff]
        %v541 = vld [vmem:[%s186 + $0x9d0] sm:$0xff]
        %v542 = vld [vmem:[%s186 + $0x9d8] sm:$0xff]
        %v543 = vld [vmem:[%s186 + $0x9e0] sm:$0xff]
        %v544 = vld [vmem:[%s186 + $0x9e8] sm:$0xff]
        %v545 = vld [vmem:[%s186 + $0x9f0] sm:$0xff]
        %v546 = vld [vmem:[%s186 + $0x9f8] sm:$0xff]
        %v547 = vld [vmem:[%s186 + $0xa00] sm:$0xff]
        %v548 = vld [vmem:[%s186 + $0xa08] sm:$0xff]
        %v549 = vld [vmem:[%s186 + $0xa10] sm:$0xff]
        %v550 = vld [vmem:[%s186 + $0xa18] sm:$0xff]
        %v551 = vld [vmem:[%s186 + $0xa20] sm:$0xff]
        %v552 = vld [vmem:[%s186 + $0xa28] sm:$0xff]
        %v553 = vld [vmem:[%s186 + $0xa30] sm:$0xff]
        %v554 = vld [vmem:[%s186 + $0xa38] sm:$0xff]
        %v555 = vld [vmem:[%s186 + $0xa40] sm:$0xff]
        %v556 = vld [vmem:[%s186 + $0xa48] sm:$0xff]
        %v557 = vld [vmem:[%s186 + $0xa50] sm:$0xff]
        %v558 = vld [vmem:[%s186 + $0xa58] sm:$0xff]
        %v559 = vld [vmem:[%s186 + $0xa60] sm:$0xff]
        %v560 = vld [vmem:[%s186 + $0xa68] sm:$0xff]
        %v561 = vld [vmem:[%s186 + $0xa70] sm:$0xff]
        %v562 = vld [vmem:[%s186 + $0xa78] sm:$0xff]
        %v563 = vld [vmem:[%s186 + $0xa80] sm:$0xff]
        %v564 = vld [vmem:[%s186 + $0xa88] sm:$0xff]
        %v565 = vld [vmem:[%s186 + $0xa90] sm:$0xff]
        %v566 = vld [vmem:[%s186 + $0xa98] sm:$0xff]
        %v567 = vld [vmem:[%s186 + $0xaa0] sm:$0xff]
        %v568 = vld [vmem:[%s186 + $0xaa8] sm:$0xff]
        %v569 = vld [vmem:[%s186 + $0xab0] sm:$0xff]
        %v570 = vld [vmem:[%s186 + $0xab8] sm:$0xff]
        %v571 = vld [vmem:[%s186 + $0xac0] sm:$0xff]
        %v572 = vld [vmem:[%s186 + $0xac8] sm:$0xff]
        %v573 = vld [vmem:[%s186 + $0xad0] sm:$0xff]
        %v574 = vld [vmem:[%s186 + $0xad8] sm:$0xff]
        %v575 = vld [vmem:[%s186 + $0xae0] sm:$0xff]
        %v576 = vld [vmem:[%s186 + $0xae8] sm:$0xff]
        %v577 = vld [vmem:[%s186 + $0xaf0] sm:$0xff]
        %v578 = vld [vmem:[%s186 + $0xaf8] sm:$0xff]
        %v579 = vld [vmem:[%s186 + $0xb00] sm:$0xff]
        %v580 = vld [vmem:[%s186 + $0xb08] sm:$0xff]
        %v581 = vld [vmem:[%s186 + $0xb10] sm:$0xff]
        %v582 = vld [vmem:[%s186 + $0xb18] sm:$0xff]
        %v583 = vld [vmem:[%s186 + $0xb20] sm:$0xff]
        %v584 = vld [vmem:[%s186 + $0xb28] sm:$0xff]
        %v585 = vld [vmem:[%s186 + $0xb30] sm:$0xff]
        %v586 = vld [vmem:[%s186 + $0xb38] sm:$0xff]
        %v587 = vld [vmem:[%s186 + $0xb40] sm:$0xff]
        %v588 = vld [vmem:[%s186 + $0xb48] sm:$0xff]
        %v589 = vld [vmem:[%s186 + $0xb50] sm:$0xff]
        %v590 = vld [vmem:[%s186 + $0xb58] sm:$0xff]
        %v591 = vld [vmem:[%s186 + $0xb60] sm:$0xff]
        %v592 = vld [vmem:[%s186 + $0xb68] sm:$0xff]
        %v593 = vld [vmem:[%s186 + $0xb70] sm:$0xff]
        %v594 = vld [vmem:[%s186 + $0xb78] sm:$0xff]
        %v595 = vld [vmem:[%s186 + $0xb80] sm:$0xff]
        %v596 = vld [vmem:[%s186 + $0xb88] sm:$0xff]
        %v597 = vld [vmem:[%s186 + $0xb90] sm:$0xff]
        %v598 = vld [vmem:[%s186 + $0xb98] sm:$0xff]
        %v599 = vld [vmem:[%s186 + $0xba0] sm:$0xff]
        %v600 = vld [vmem:[%s186 + $0xba8] sm:$0xff]
        %v601 = vld [vmem:[%s186 + $0xbb0] sm:$0xff]
        %v602 = vld [vmem:[%s186 + $0xbb8] sm:$0xff]
        %v603 = vld [vmem:[%s186 + $0xbc0] sm:$0xff]
        %v604 = vld [vmem:[%s186 + $0xbc8] sm:$0xff]
        %v605 = vld [vmem:[%s186 + $0xbd0] sm:$0xff]
        %v606 = vld [vmem:[%s186 + $0xbd8] sm:$0xff]
        %v607 = vld [vmem:[%s186 + $0xbe0] sm:$0xff]
        %v608 = vld [vmem:[%s186 + $0xbe8] sm:$0xff]
        %v609 = vld [vmem:[%s186 + $0xbf0] sm:$0xff]
        %v610 = vld [vmem:[%s186 + $0xbf8] sm:$0xff]
        %v611 = vld [vmem:[%s186 + $0xc00] sm:$0xff]
        %v612 = vld [vmem:[%s186 + $0xc08] sm:$0xff]
        %v613 = vld [vmem:[%s186 + $0xc10] sm:$0xff]
        %v614 = vld [vmem:[%s186 + $0xc18] sm:$0xff]
        %v615 = vld [vmem:[%s186 + $0xc20] sm:$0xff]
        %v616 = vld [vmem:[%s186 + $0xc28] sm:$0xff]
        %v617 = vld [vmem:[%s186 + $0xc30] sm:$0xff]
        %v618 = vld [vmem:[%s186 + $0xc38] sm:$0xff]
        %v619 = vld [vmem:[%s186 + $0xc40] sm:$0xff]
        %v620 = vld [vmem:[%s186 + $0xc48] sm:$0xff]
        %v621 = vld [vmem:[%s186 + $0xc50] sm:$0xff]
        %v622 = vld [vmem:[%s186 + $0xc58] sm:$0xff]
        %v623 = vld [vmem:[%s186 + $0xc60] sm:$0xff]
        %v624 = vld [vmem:[%s186 + $0xc68] sm:$0xff]
        %v625 = vld [vmem:[%s186 + $0xc70] sm:$0xff]
        %v626 = vld [vmem:[%s186 + $0xc78] sm:$0xff]
        %v627 = vld [vmem:[%s186 + $0xc80] sm:$0xff]
        %v628 = vld [vmem:[%s186 + $0xc88] sm:$0xff]
        %v629 = vld [vmem:[%s186 + $0xc90] sm:$0xff]
        %v630 = vld [vmem:[%s186 + $0xc98] sm:$0xff]
        %v631 = vld [vmem:[%s186 + $0xca0] sm:$0xff]
        %v632 = vld [vmem:[%s186 + $0xca8] sm:$0xff]
        %v633 = vld [vmem:[%s186 + $0xcb0] sm:$0xff]
        %v634 = vld [vmem:[%s186 + $0xcb8] sm:$0xff]
        %v635 = vld [vmem:[%s186 + $0xcc0] sm:$0xff]
        %v636 = vld [vmem:[%s186 + $0xcc8] sm:$0xff]
        %v637 = vld [vmem:[%s186 + $0xcd0] sm:$0xff]
        %v638 = vld [vmem:[%s186 + $0xcd8] sm:$0xff]
        %v639 = vld [vmem:[%s186 + $0xce0] sm:$0xff]
        %v640 = vld [vmem:[%s186 + $0xce8] sm:$0xff]
        %v641 = vld [vmem:[%s186 + $0xcf0] sm:$0xff]
        %v642 = vld [vmem:[%s186 + $0xcf8] sm:$0xff]
        %v643 = vld [vmem:[%s186 + $0xd00] sm:$0xff]
        %v644 = vld [vmem:[%s186 + $0xd08] sm:$0xff]
        %v645 = vld [vmem:[%s186 + $0xd10] sm:$0xff]
        %v646 = vld [vmem:[%s186 + $0xd18] sm:$0xff]
        %v647 = vld [vmem:[%s186 + $0xd20] sm:$0xff]
        %v648 = vld [vmem:[%s186 + $0xd28] sm:$0xff]
        %v649 = vld [vmem:[%s186 + $0xd30] sm:$0xff]
        %v650 = vld [vmem:[%s186 + $0xd38] sm:$0xff]
        %v651 = vld [vmem:[%s186 + $0xd40] sm:$0xff]
        %v652 = vld [vmem:[%s186 + $0xd48] sm:$0xff]
        %v653 = vld [vmem:[%s186 + $0xd50] sm:$0xff]
        %v654 = vld [vmem:[%s186 + $0xd58] sm:$0xff]
        %v655 = vld [vmem:[%s186 + $0xd60] sm:$0xff]
        %v656 = vld [vmem:[%s186 + $0xd68] sm:$0xff]
        %v657 = vld [vmem:[%s186 + $0xd70] sm:$0xff]
        %v658 = vld [vmem:[%s186 + $0xd78] sm:$0xff]
        %v659 = vld [vmem:[%s186 + $0xd80] sm:$0xff]
        %v660 = vld [vmem:[%s186 + $0xd88] sm:$0xff]
        %v661 = vld [vmem:[%s186 + $0xd90] sm:$0xff]
        %v662 = vld [vmem:[%s186 + $0xd98] sm:$0xff]
        %v663 = vld [vmem:[%s186 + $0xda0] sm:$0xff]
        %v664 = vld [vmem:[%s186 + $0xda8] sm:$0xff]
        %v665 = vld [vmem:[%s186 + $0xdb0] sm:$0xff]
        %v666 = vld [vmem:[%s186 + $0xdb8] sm:$0xff]
        %v667 = vld [vmem:[%s186 + $0xdc0] sm:$0xff]
        %v668 = vld [vmem:[%s186 + $0xdc8] sm:$0xff]
        %v669 = vld [vmem:[%s186 + $0xdd0] sm:$0xff]
        %v670 = vld [vmem:[%s186 + $0xdd8] sm:$0xff]
        %v671 = vld [vmem:[%s186 + $0xde0] sm:$0xff]
        %v672 = vld [vmem:[%s186 + $0xde8] sm:$0xff]
        %v673 = vld [vmem:[%s186 + $0xdf0] sm:$0xff]
        %v674 = vld [vmem:[%s186 + $0xdf8] sm:$0xff]
        %v675 = vld [vmem:[%s186 + $0xe00] sm:$0xff]
        %v676 = vld [vmem:[%s186 + $0xe08] sm:$0xff]
        %v677 = vld [vmem:[%s186 + $0xe10] sm:$0xff]
        %v678 = vld [vmem:[%s186 + $0xe18] sm:$0xff]
        %v679 = vld [vmem:[%s186 + $0xe20] sm:$0xff]
        %v680 = vld [vmem:[%s186 + $0xe28] sm:$0xff]
        %v681 = vld [vmem:[%s186 + $0xe30] sm:$0xff]
        %v682 = vld [vmem:[%s186 + $0xe38] sm:$0xff]
        %v683 = vld [vmem:[%s186 + $0xe40] sm:$0xff]
        %v684 = vld [vmem:[%s186 + $0xe48] sm:$0xff]
        %v685 = vld [vmem:[%s186 + $0xe50] sm:$0xff]
        %v686 = vld [vmem:[%s186 + $0xe58] sm:$0xff]
        %v687 = vld [vmem:[%s186 + $0xe60] sm:$0xff]
        %v688 = vld [vmem:[%s186 + $0xe68] sm:$0xff]
        %v689 = vld [vmem:[%s186 + $0xe70] sm:$0xff]
        %v690 = vld [vmem:[%s186 + $0xe78] sm:$0xff]
        %v691 = vld [vmem:[%s186 + $0xe80] sm:$0xff]
        %v692 = vld [vmem:[%s186 + $0xe88] sm:$0xff]
        %v693 = vld [vmem:[%s186 + $0xe90] sm:$0xff]
        %v694 = vld [vmem:[%s186 + $0xe98] sm:$0xff]
        %v695 = vld [vmem:[%s186 + $0xea0] sm:$0xff]
        %v696 = vld [vmem:[%s186 + $0xea8] sm:$0xff]
        %v697 = vld [vmem:[%s186 + $0xeb0] sm:$0xff]
        %v698 = vld [vmem:[%s186 + $0xeb8] sm:$0xff]
        %v699 = vld [vmem:[%s186 + $0xec0] sm:$0xff]
        %v700 = vld [vmem:[%s186 + $0xec8] sm:$0xff]
        %v701 = vld [vmem:[%s186 + $0xed0] sm:$0xff]
        %v702 = vld [vmem:[%s186 + $0xed8] sm:$0xff]
        %v703 = vld [vmem:[%s186 + $0xee0] sm:$0xff]
        %v704 = vld [vmem:[%s186 + $0xee8] sm:$0xff]
        %v705 = vld [vmem:[%s186 + $0xef0] sm:$0xff]
        %v706 = vld [vmem:[%s186 + $0xef8] sm:$0xff]
        %v707 = vld [vmem:[%s186 + $0xf00] sm:$0xff]
        %v708 = vld [vmem:[%s186 + $0xf08] sm:$0xff]
        %v709 = vld [vmem:[%s186 + $0xf10] sm:$0xff]
        %v710 = vld [vmem:[%s186 + $0xf18] sm:$0xff]
        %v711 = vld [vmem:[%s186 + $0xf20] sm:$0xff]
        %v712 = vld [vmem:[%s186 + $0xf28] sm:$0xff]
        %v713 = vld [vmem:[%s186 + $0xf30] sm:$0xff]
        %v714 = vld [vmem:[%s186 + $0xf38] sm:$0xff]
        %v715 = vld [vmem:[%s186 + $0xf40] sm:$0xff]
        %v716 = vld [vmem:[%s186 + $0xf48] sm:$0xff]
        %v717 = vld [vmem:[%s186 + $0xf50] sm:$0xff]
        %v718 = vld [vmem:[%s186 + $0xf58] sm:$0xff]
        %v719 = vld [vmem:[%s186 + $0xf60] sm:$0xff]
        %v720 = vld [vmem:[%s186 + $0xf68] sm:$0xff]
        %v721 = vld [vmem:[%s186 + $0xf70] sm:$0xff]
        %v722 = vld [vmem:[%s186 + $0xf78] sm:$0xff]
        %v723 = vld [vmem:[%s186 + $0xf80] sm:$0xff]
        %v724 = vld [vmem:[%s186 + $0xf88] sm:$0xff]
        %v725 = vld [vmem:[%s186 + $0xf90] sm:$0xff]
        %v726 = vld [vmem:[%s186 + $0xf98] sm:$0xff]
        %v727 = vld [vmem:[%s186 + $0xfa0] sm:$0xff]
        %v728 = vld [vmem:[%s186 + $0xfa8] sm:$0xff]
        %v729 = vld [vmem:[%s186 + $0xfb0] sm:$0xff]
        %v730 = vld [vmem:[%s186 + $0xfb8] sm:$0xff]
        %v731 = vld [vmem:[%s186 + $0xfc0] sm:$0xff]
        %v732 = vld [vmem:[%s186 + $0xfc8] sm:$0xff]
        %v733 = vld [vmem:[%s186 + $0xfd0] sm:$0xff]
        %v734 = vld [vmem:[%s186 + $0xfd8] sm:$0xff]
        %v735 = vld [vmem:[%s186 + $0xfe0] sm:$0xff]
        %v736 = vld [vmem:[%s186 + $0xfe8] sm:$0xff]
        %v737 = vld [vmem:[%s186 + $0xff0] sm:$0xff]
        %v738 = vld [vmem:[%s186 + $0xff8] sm:$0xff]
        %v739 = vld [vmem:[%s186 + $0x1000] sm:$0xff]
        %v740 = vld [vmem:[%s186 + $0x1008] sm:$0xff]
        %v741 = vld [vmem:[%s186 + $0x1010] sm:$0xff]
        %v742 = vld [vmem:[%s186 + $0x1018] sm:$0xff]
        %v743 = vld [vmem:[%s186 + $0x1020] sm:$0xff]
        %v744 = vld [vmem:[%s186 + $0x1028] sm:$0xff]
        %v745 = vld [vmem:[%s186 + $0x1030] sm:$0xff]
        %v746 = vld [vmem:[%s186 + $0x1038] sm:$0xff]
        %v747 = vld [vmem:[%s186 + $0x1040] sm:$0xff]
        %v748 = vld [vmem:[%s186 + $0x1048] sm:$0xff]
        %v749 = vld [vmem:[%s186 + $0x1050] sm:$0xff]
        %v750 = vld [vmem:[%s186 + $0x1058] sm:$0xff]
        %v751 = vld [vmem:[%s186 + $0x1060] sm:$0xff]
        %v752 = vld [vmem:[%s186 + $0x1068] sm:$0xff]
        %v753 = vld [vmem:[%s186 + $0x1070] sm:$0xff]
        %v754 = vld [vmem:[%s186 + $0x1078] sm:$0xff]
        %v755 = vld [vmem:[%s186 + $0x1080] sm:$0xff]
        %v756 = vld [vmem:[%s186 + $0x1088] sm:$0xff]
        %v757 = vld [vmem:[%s186 + $0x1090] sm:$0xff]
        %v758 = vld [vmem:[%s186 + $0x1098] sm:$0xff]
        %v759 = vld [vmem:[%s186 + $0x10a0] sm:$0xff]
        %v760 = vld [vmem:[%s186 + $0x10a8] sm:$0xff]
        %v761 = vld [vmem:[%s186 + $0x10b0] sm:$0xff]
        %v762 = vld [vmem:[%s186 + $0x10b8] sm:$0xff]
        %v763 = vld [vmem:[%s186 + $0x10c0] sm:$0xff]
        %v764 = vld [vmem:[%s186 + $0x10c8] sm:$0xff]
        %v765 = vld [vmem:[%s186 + $0x10d0] sm:$0xff]
        %v766 = vld [vmem:[%s186 + $0x10d8] sm:$0xff]
        %v767 = vld [vmem:[%s186 + $0x10e0] sm:$0xff]
        %v768 = vld [vmem:[%s186 + $0x10e8] sm:$0xff]
        %v769 = vld [vmem:[%s186 + $0x10f0] sm:$0xff]
        %v770 = vld [vmem:[%s186 + $0x10f8] sm:$0xff]
        %v771 = vld [vmem:[%s186 + $0x1100] sm:$0xff]
        %v772 = vld [vmem:[%s186 + $0x1108] sm:$0xff]
        %v773 = vld [vmem:[%s186 + $0x1110] sm:$0xff]
        %v774 = vld [vmem:[%s186 + $0x1118] sm:$0xff]
        %v775 = vld [vmem:[%s186 + $0x1120] sm:$0xff]
        %v776 = vld [vmem:[%s186 + $0x1128] sm:$0xff]
        %v777 = vld [vmem:[%s186 + $0x1130] sm:$0xff]
        %v778 = vld [vmem:[%s186 + $0x1138] sm:$0xff]
        %v779 = vld [vmem:[%s186 + $0x1140] sm:$0xff]
        %v780 = vld [vmem:[%s186 + $0x1148] sm:$0xff]
        %v781 = vld [vmem:[%s186 + $0x1150] sm:$0xff]
        %v782 = vld [vmem:[%s186 + $0x1158] sm:$0xff]
        %v783 = vld [vmem:[%s186 + $0x1160] sm:$0xff]
        %v784 = vld [vmem:[%s186 + $0x1168] sm:$0xff]
        %v785 = vld [vmem:[%s186 + $0x1170] sm:$0xff]
        %v786 = vld [vmem:[%s186 + $0x1178] sm:$0xff]
        %v787 = vld [vmem:[%s186 + $0x1180] sm:$0xff]
        %v788 = vld [vmem:[%s186 + $0x1188] sm:$0xff]
        %v789 = vld [vmem:[%s186 + $0x1190] sm:$0xff]
        %v790 = vld [vmem:[%s186 + $0x1198] sm:$0xff]
        %v791 = vld [vmem:[%s186 + $0x11a0] sm:$0xff]
        %v792 = vld [vmem:[%s186 + $0x11a8] sm:$0xff]
        %v793 = vld [vmem:[%s186 + $0x11b0] sm:$0xff]
        %v794 = vld [vmem:[%s186 + $0x11b8] sm:$0xff]
        %v795 = vld [vmem:[%s186 + $0x11c0] sm:$0xff]
        %v796 = vld [vmem:[%s186 + $0x11c8] sm:$0xff]
        %v797 = vld [vmem:[%s186 + $0x11d0] sm:$0xff]
        %v798 = vld [vmem:[%s186 + $0x11d8] sm:$0xff]
        %v799 = vld [vmem:[%s186 + $0x11e0] sm:$0xff]
        %v800 = vld [vmem:[%s186 + $0x11e8] sm:$0xff]
        %v801 = vld [vmem:[%s186 + $0x11f0] sm:$0xff]
        %v802 = vld [vmem:[%s186 + $0x11f8] sm:$0xff]
        %v803 = vld [vmem:[%s186 + $0x1200] sm:$0xff]
        %v804 = vld [vmem:[%s186 + $0x1208] sm:$0xff]
        %v805 = vld [vmem:[%s186 + $0x1210] sm:$0xff]
        %v806 = vld [vmem:[%s186 + $0x1218] sm:$0xff]
        %v807 = vld [vmem:[%s186 + $0x1220] sm:$0xff]
        %v808 = vld [vmem:[%s186 + $0x1228] sm:$0xff]
        %v809 = vld [vmem:[%s186 + $0x1230] sm:$0xff]
        %v810 = vld [vmem:[%s186 + $0x1238] sm:$0xff]
        %v811 = vld [vmem:[%s186 + $0x1240] sm:$0xff]
        %v812 = vld [vmem:[%s186 + $0x1248] sm:$0xff]
        %v813 = vld [vmem:[%s186 + $0x1250] sm:$0xff]
        %v814 = vld [vmem:[%s186 + $0x1258] sm:$0xff]
        %v815 = vld [vmem:[%s186 + $0x1260] sm:$0xff]
        %v816 = vld [vmem:[%s186 + $0x1268] sm:$0xff]
        %v817 = vld [vmem:[%s186 + $0x1270] sm:$0xff]
        %v818 = vld [vmem:[%s186 + $0x1278] sm:$0xff]
        %v819 = vld [vmem:[%s186 + $0x1280] sm:$0xff]
        %v820 = vld [vmem:[%s186 + $0x1288] sm:$0xff]
        %v821 = vld [vmem:[%s186 + $0x1290] sm:$0xff]
        %v822 = vld [vmem:[%s186 + $0x1298] sm:$0xff]
        %v823 = vld [vmem:[%s186 + $0x12a0] sm:$0xff]
        %v824 = vld [vmem:[%s186 + $0x12a8] sm:$0xff]
        %v825 = vld [vmem:[%s186 + $0x12b0] sm:$0xff]
        %v826 = vld [vmem:[%s186 + $0x12b8] sm:$0xff]
        %v827 = vld [vmem:[%s186 + $0x12c0] sm:$0xff]
        %v828 = vld [vmem:[%s186 + $0x12c8] sm:$0xff]
        %v829 = vld [vmem:[%s186 + $0x12d0] sm:$0xff]
        %v830 = vld [vmem:[%s186 + $0x12d8] sm:$0xff]
        %v831 = vld [vmem:[%s186 + $0x12e0] sm:$0xff]
        %v832 = vld [vmem:[%s186 + $0x12e8] sm:$0xff]
        %v833 = vld [vmem:[%s186 + $0x12f0] sm:$0xff]
        %v834 = vld [vmem:[%s186 + $0x12f8] sm:$0xff]
        %v835 = vld [vmem:[%s186 + $0x1300] sm:$0xff]
        %v836 = vld [vmem:[%s186 + $0x1308] sm:$0xff]
        %v837 = vld [vmem:[%s186 + $0x1310] sm:$0xff]
        %v838 = vld [vmem:[%s186 + $0x1318] sm:$0xff]
        %v839 = vld [vmem:[%s186 + $0x1320] sm:$0xff]
        %v840 = vld [vmem:[%s186 + $0x1328] sm:$0xff]
        %v841 = vld [vmem:[%s186 + $0x1330] sm:$0xff]
        %v842 = vld [vmem:[%s186 + $0x1338] sm:$0xff]
        %v843 = vld [vmem:[%s186 + $0x1340] sm:$0xff]
        %v844 = vld [vmem:[%s186 + $0x1348] sm:$0xff]
        %v845 = vld [vmem:[%s186 + $0x1350] sm:$0xff]
        %v846 = vld [vmem:[%s186 + $0x1358] sm:$0xff]
        %v847 = vld [vmem:[%s186 + $0x1360] sm:$0xff]
        %v848 = vld [vmem:[%s186 + $0x1368] sm:$0xff]
        %v849 = vld [vmem:[%s186 + $0x1370] sm:$0xff]
        %v850 = vld [vmem:[%s186 + $0x1378] sm:$0xff]
        %v851 = vld [vmem:[%s186 + $0x1380] sm:$0xff]
        %v852 = vld [vmem:[%s186 + $0x1388] sm:$0xff]
        %v853 = vld [vmem:[%s186 + $0x1390] sm:$0xff]
        %v854 = vld [vmem:[%s186 + $0x1398] sm:$0xff]
        %v855 = vld [vmem:[%s186 + $0x13a0] sm:$0xff]
        %v856 = vld [vmem:[%s186 + $0x13a8] sm:$0xff]
        %v857 = vld [vmem:[%s186 + $0x13b0] sm:$0xff]
        %v858 = vld [vmem:[%s186 + $0x13b8] sm:$0xff]
        %v859 = vld [vmem:[%s186 + $0x13c0] sm:$0xff]
        %v860 = vld [vmem:[%s186 + $0x13c8] sm:$0xff]
        %v861 = vld [vmem:[%s186 + $0x13d0] sm:$0xff]
        %v862 = vld [vmem:[%s186 + $0x13d8] sm:$0xff]
        %v863 = vld [vmem:[%s186 + $0x13e0] sm:$0xff]
        %v864 = vld [vmem:[%s186 + $0x13e8] sm:$0xff]
        %v865 = vld [vmem:[%s186 + $0x13f0] sm:$0xff]
        %v866 = vld [vmem:[%s186 + $0x13f8] sm:$0xff]
        %v867 = vld [vmem:[%s186 + $0x1400] sm:$0xff]
        %v868 = vld [vmem:[%s186 + $0x1408] sm:$0xff]
        %v869 = vld [vmem:[%s186 + $0x1410] sm:$0xff]
        %v870 = vld [vmem:[%s186 + $0x1418] sm:$0xff]
        %v871 = vld [vmem:[%s186 + $0x1420] sm:$0xff]
        %v872 = vld [vmem:[%s186 + $0x1428] sm:$0xff]
        %v873 = vld [vmem:[%s186 + $0x1430] sm:$0xff]
        %v874 = vld [vmem:[%s186 + $0x1438] sm:$0xff]
        %v875 = vld [vmem:[%s186 + $0x1440] sm:$0xff]
        %v876 = vld [vmem:[%s186 + $0x1448] sm:$0xff]
        %v877 = vld [vmem:[%s186 + $0x1450] sm:$0xff]
        %v878 = vld [vmem:[%s186 + $0x1458] sm:$0xff]
        %v879 = vld [vmem:[%s186 + $0x1460] sm:$0xff]
        %v880 = vld [vmem:[%s186 + $0x1468] sm:$0xff]
        %v881 = vld [vmem:[%s186 + $0x1470] sm:$0xff]
        %v882 = vld [vmem:[%s186 + $0x1478] sm:$0xff]
        %v883 = vld [vmem:[%s186 + $0x1480] sm:$0xff]
        %v884 = vld [vmem:[%s186 + $0x1488] sm:$0xff]
        %v885 = vld [vmem:[%s186 + $0x1490] sm:$0xff]
        %v886 = vld [vmem:[%s186 + $0x1498] sm:$0xff]
        %v887 = vld [vmem:[%s186 + $0x14a0] sm:$0xff]
        %v888 = vld [vmem:[%s186 + $0x14a8] sm:$0xff]
        %v889 = vld [vmem:[%s186 + $0x14b0] sm:$0xff]
        %v890 = vld [vmem:[%s186 + $0x14b8] sm:$0xff]
        %v891 = vld [vmem:[%s186 + $0x14c0] sm:$0xff]
        %v892 = vld [vmem:[%s186 + $0x14c8] sm:$0xff]
        %v893 = vld [vmem:[%s186 + $0x14d0] sm:$0xff]
        %v894 = vld [vmem:[%s186 + $0x14d8] sm:$0xff]
        %v895 = vld [vmem:[%s186 + $0x14e0] sm:$0xff]
        %v896 = vld [vmem:[%s186 + $0x14e8] sm:$0xff]
        %v897 = vld [vmem:[%s186 + $0x14f0] sm:$0xff]
        %v898 = vld [vmem:[%s186 + $0x14f8] sm:$0xff]
        %v899 = vld [vmem:[%s186 + $0x1500] sm:$0xff]
        %v900 = vld [vmem:[%s186 + $0x1508] sm:$0xff]
        %v901 = vld [vmem:[%s186 + $0x1510] sm:$0xff]
        %v902 = vld [vmem:[%s186 + $0x1518] sm:$0xff]
        %v903 = vld [vmem:[%s186 + $0x1520] sm:$0xff]
        %v904 = vld [vmem:[%s186 + $0x1528] sm:$0xff]
        %v905 = vld [vmem:[%s186 + $0x1530] sm:$0xff]
        %v906 = vld [vmem:[%s186 + $0x1538] sm:$0xff]
        %v907 = vld [vmem:[%s186 + $0x1540] sm:$0xff]
        %v908 = vld [vmem:[%s186 + $0x1548] sm:$0xff]
        %v909 = vld [vmem:[%s186 + $0x1550] sm:$0xff]
        %v910 = vld [vmem:[%s186 + $0x1558] sm:$0xff]
        %v911 = vld [vmem:[%s186 + $0x1560] sm:$0xff]
        %v912 = vld [vmem:[%s186 + $0x1568] sm:$0xff]
        %v913 = vld [vmem:[%s186 + $0x1570] sm:$0xff]
        %v914 = vld [vmem:[%s186 + $0x1578] sm:$0xff]
        %v915 = vld [vmem:[%s186 + $0x1580] sm:$0xff]
        %v916 = vld [vmem:[%s186 + $0x1588] sm:$0xff]
        %v917 = vld [vmem:[%s186 + $0x1590] sm:$0xff]
        %v918 = vld [vmem:[%s186 + $0x1598] sm:$0xff]
        %v919 = vld [vmem:[%s186 + $0x15a0] sm:$0xff]
        %v920 = vld [vmem:[%s186 + $0x15a8] sm:$0xff]
        %v921 = vld [vmem:[%s186 + $0x15b0] sm:$0xff]
        %v922 = vld [vmem:[%s186 + $0x15b8] sm:$0xff]
        %v923 = vld [vmem:[%s186 + $0x15c0] sm:$0xff]
        %v924 = vld [vmem:[%s186 + $0x15c8] sm:$0xff]
        %v925 = vld [vmem:[%s186 + $0x15d0] sm:$0xff]
        %v926 = vld [vmem:[%s186 + $0x15d8] sm:$0xff]
        %v927 = vld [vmem:[%s186 + $0x15e0] sm:$0xff]
        %v928 = vld [vmem:[%s186 + $0x15e8] sm:$0xff]
        %v929 = vld [vmem:[%s186 + $0x15f0] sm:$0xff]
        %v930 = vld [vmem:[%s186 + $0x15f8] sm:$0xff]
        %v931 = vld [vmem:[%s186 + $0x1600] sm:$0xff]
        %v932 = vld [vmem:[%s186 + $0x1608] sm:$0xff]
        %v933 = vld [vmem:[%s186 + $0x1610] sm:$0xff]
        %v934 = vld [vmem:[%s186 + $0x1618] sm:$0xff]
        %v935 = vld [vmem:[%s186 + $0x1620] sm:$0xff]
        %v936 = vld [vmem:[%s186 + $0x1628] sm:$0xff]
        %v937 = vld [vmem:[%s186 + $0x1630] sm:$0xff]
        %v938 = vld [vmem:[%s186 + $0x1638] sm:$0xff]
        %v939 = vld [vmem:[%s186 + $0x1640] sm:$0xff]
        %v940 = vld [vmem:[%s186 + $0x1648] sm:$0xff]
        %v941 = vld [vmem:[%s186 + $0x1650] sm:$0xff]
        %v942 = vld [vmem:[%s186 + $0x1658] sm:$0xff]
        %v943 = vld [vmem:[%s186 + $0x1660] sm:$0xff]
        %v944 = vld [vmem:[%s186 + $0x1668] sm:$0xff]
        %v945 = vld [vmem:[%s186 + $0x1670] sm:$0xff]
        %v946 = vld [vmem:[%s186 + $0x1678] sm:$0xff]
        %v947 = vld [vmem:[%s186 + $0x1680] sm:$0xff]
        %v948 = vld [vmem:[%s186 + $0x1688] sm:$0xff]
        %v949 = vld [vmem:[%s186 + $0x1690] sm:$0xff]
        %v950 = vld [vmem:[%s186 + $0x1698] sm:$0xff]
        %v951 = vld [vmem:[%s186 + $0x16a0] sm:$0xff]
        %v952 = vld [vmem:[%s186 + $0x16a8] sm:$0xff]
        %v953 = vld [vmem:[%s186 + $0x16b0] sm:$0xff]
        %v954 = vld [vmem:[%s186 + $0x16b8] sm:$0xff]
        %v955 = vld [vmem:[%s186 + $0x16c0] sm:$0xff]
        %v956 = vld [vmem:[%s186 + $0x16c8] sm:$0xff]
        %v957 = vld [vmem:[%s186 + $0x16d0] sm:$0xff]
        %v958 = vld [vmem:[%s186 + $0x16d8] sm:$0xff]
        %v959 = vld [vmem:[%s186 + $0x16e0] sm:$0xff]
        %v960 = vld [vmem:[%s186 + $0x16e8] sm:$0xff]
        %v961 = vld [vmem:[%s186 + $0x16f0] sm:$0xff]
        %v962 = vld [vmem:[%s186 + $0x16f8] sm:$0xff]
        %v963 = vld [vmem:[%s186 + $0x1700] sm:$0xff]
        %v964 = vld [vmem:[%s186 + $0x1708] sm:$0xff]
        %v965 = vld [vmem:[%s186 + $0x1710] sm:$0xff]
        %v966 = vld [vmem:[%s186 + $0x1718] sm:$0xff]
        %v967 = vld [vmem:[%s186 + $0x1720] sm:$0xff]
        %v968 = vld [vmem:[%s186 + $0x1728] sm:$0xff]
        %v969 = vld [vmem:[%s186 + $0x1730] sm:$0xff]
        %v970 = vld [vmem:[%s186 + $0x1738] sm:$0xff]
        %v971 = vld [vmem:[%s186 + $0x1740] sm:$0xff]
        %v972 = vld [vmem:[%s186 + $0x1748] sm:$0xff]
        %v973 = vld [vmem:[%s186 + $0x1750] sm:$0xff]
        %v974 = vld [vmem:[%s186 + $0x1758] sm:$0xff]
        %v975 = vld [vmem:[%s186 + $0x1760] sm:$0xff]
        %v976 = vld [vmem:[%s186 + $0x1768] sm:$0xff]
        %v977 = vld [vmem:[%s186 + $0x1770] sm:$0xff]
        %v978 = vld [vmem:[%s186 + $0x1778] sm:$0xff]
        %v979 = vld [vmem:[%s186 + $0x1780] sm:$0xff]
        %v980 = vld [vmem:[%s186 + $0x1788] sm:$0xff]
        %v981 = vld [vmem:[%s186 + $0x1790] sm:$0xff]
        %v982 = vld [vmem:[%s186 + $0x1798] sm:$0xff]
        %v983 = vld [vmem:[%s186 + $0x17a0] sm:$0xff]
        %v984 = vld [vmem:[%s186 + $0x17a8] sm:$0xff]
        %v985 = vld [vmem:[%s186 + $0x17b0] sm:$0xff]
        %v986 = vld [vmem:[%s186 + $0x17b8] sm:$0xff]
        %v987 = vld [vmem:[%s186 + $0x17c0] sm:$0xff]
        %v988 = vld [vmem:[%s186 + $0x17c8] sm:$0xff]
        %v989 = vld [vmem:[%s186 + $0x17d0] sm:$0xff]
        %v990 = vld [vmem:[%s186 + $0x17d8] sm:$0xff]
        %v991 = vld [vmem:[%s186 + $0x17e0] sm:$0xff]
        %v992 = vld [vmem:[%s186 + $0x17e8] sm:$0xff]
        %v993 = vld [vmem:[%s186 + $0x17f0] sm:$0xff]
        %v994 = vld [vmem:[%s186 + $0x17f8] sm:$0xff]
        %v995 = vld [vmem:[%s186 + $0x1800] sm:$0xff]
        %v996 = vld [vmem:[%s186 + $0x1808] sm:$0xff]
        %v997 = vld [vmem:[%s186 + $0x1810] sm:$0xff]
        %v998 = vld [vmem:[%s186 + $0x1818] sm:$0xff]
        %v999 = vld [vmem:[%s186 + $0x1820] sm:$0xff]
        %v1000 = vld [vmem:[%s186 + $0x1828] sm:$0xff]
        %v1001 = vld [vmem:[%s186 + $0x1830] sm:$0xff]
        %v1002 = vld [vmem:[%s186 + $0x1838] sm:$0xff]
        %v1003 = vld [vmem:[%s186 + $0x1840] sm:$0xff]
        %v1004 = vld [vmem:[%s186 + $0x1848] sm:$0xff]
        %v1005 = vld [vmem:[%s186 + $0x1850] sm:$0xff]
        %v1006 = vld [vmem:[%s186 + $0x1858] sm:$0xff]
        %v1007 = vld [vmem:[%s186 + $0x1860] sm:$0xff]
        %v1008 = vld [vmem:[%s186 + $0x1868] sm:$0xff]
        %v1009 = vld [vmem:[%s186 + $0x1870] sm:$0xff]
        %v1010 = vld [vmem:[%s186 + $0x1878] sm:$0xff]
        %v1015 = vunpack.c.l.b16 %v223
        %v1016 = vunpack.c.h.b16 %v223
        %v1017 = vunpack.c.l.b16 %v224
        %v1018 = vunpack.c.h.b16 %v224
        %v1019 = vunpack.c.l.b16 %v225
        %v1020 = vunpack.c.h.b16 %v225
        %v1021 = vunpack.c.l.b16 %v226
        %v1022 = vpack.c.b16 %v1015, %v1015
        %v1023 = vpack.c.b16 %v1016, %v1016
        %v1024 = vpack.c.b16 %v1017, %v1017
        %v1025 = vpack.c.b16 %v1018, %v1018
        %v1026 = vpack.c.b16 %v1019, %v1019
        %v1027 = vpack.c.b16 %v1020, %v1020
        %v1028 = vpack.c.b16 %v1021, %v1021
        %v1819 = vunpack.c.l.b16 %v227
        %v1820 = vunpack.c.h.b16 %v227
        %v1821 = vunpack.c.l.b16 %v228
        %v1822 = vunpack.c.h.b16 %v228
        %v1823 = vunpack.c.l.b16 %v229
        %v1824 = vunpack.c.h.b16 %v229
        %v1825 = vunpack.c.l.b16 %v230
        %v1826 = vunpack.c.h.b16 %v230
        %v1827 = vunpack.c.l.b16 %v231
        %v1828 = vunpack.c.h.b16 %v231
        %v1829 = vunpack.c.l.b16 %v232
        %v1830 = vunpack.c.h.b16 %v232
        %v1831 = vunpack.c.l.b16 %v233
        %v1832 = vunpack.c.h.b16 %v233
        %v1833 = vunpack.c.l.b16 %v234
        %v1834 = vunpack.c.h.b16 %v234
        %v1835 = vunpack.c.l.b16 %v235
        %v1836 = vunpack.c.h.b16 %v235
        %v1837 = vunpack.c.l.b16 %v236
        %v1838 = vunpack.c.h.b16 %v236
        %v1839 = vunpack.c.l.b16 %v237
        %v1840 = vunpack.c.h.b16 %v237
        %v1841 = vunpack.c.l.b16 %v238
        %v1842 = vunpack.c.h.b16 %v238
        %v1843 = vunpack.c.l.b16 %v239
        %v1844 = vunpack.c.h.b16 %v239
        %v1845 = vunpack.c.l.b16 %v240
        %v1846 = vunpack.c.h.b16 %v240
        %v1847 = vunpack.c.l.b16 %v241
        %v1848 = vunpack.c.h.b16 %v241
        %v1849 = vunpack.c.l.b16 %v242
        %v1850 = vunpack.c.h.b16 %v242
        %v1851 = vunpack.c.l.b16 %v243
        %v1852 = vunpack.c.h.b16 %v243
        %v1853 = vunpack.c.l.b16 %v244
        %v1854 = vunpack.c.h.b16 %v244
        %v1855 = vunpack.c.l.b16 %v245
        %v1856 = vunpack.c.h.b16 %v245
        %v1857 = vunpack.c.l.b16 %v246
        %v1858 = vunpack.c.h.b16 %v246
        %v1859 = vunpack.c.l.b16 %v247
        %v1860 = vunpack.c.h.b16 %v247
        %v1861 = vunpack.c.l.b16 %v248
        %v1862 = vunpack.c.h.b16 %v248
        %v1863 = vunpack.c.l.b16 %v249
        %v1864 = vunpack.c.h.b16 %v249
        %v1865 = vunpack.c.l.b16 %v250
        %v1866 = vunpack.c.h.b16 %v250
        %v1867 = vunpack.c.l.b16 %v251
        %v1868 = vunpack.c.h.b16 %v251
        %v1869 = vunpack.c.l.b16 %v252
        %v1870 = vunpack.c.h.b16 %v252
        %v1871 = vunpack.c.l.b16 %v253
        %v1872 = vunpack.c.h.b16 %v253
        %v1873 = vunpack.c.l.b16 %v254
        %v1874 = vunpack.c.h.b16 %v254
        %v1875 = vunpack.c.l.b16 %v255
        %v1876 = vunpack.c.h.b16 %v255
        %v1877 = vunpack.c.l.b16 %v256
        %v1878 = vunpack.c.h.b16 %v256
        %v1879 = vunpack.c.l.b16 %v257
        %v1880 = vunpack.c.h.b16 %v257
        %v1881 = vunpack.c.l.b16 %v258
        %v1882 = vunpack.c.h.b16 %v258
        %v1883 = vunpack.c.l.b16 %v259
        %v1884 = vunpack.c.h.b16 %v259
        %v1885 = vunpack.c.l.b16 %v260
        %v1886 = vunpack.c.h.b16 %v260
        %v1887 = vunpack.c.l.b16 %v261
        %v1888 = vunpack.c.h.b16 %v261
        %v1889 = vunpack.c.l.b16 %v262
        %v1890 = vunpack.c.h.b16 %v262
        %v1891 = vunpack.c.l.b16 %v263
        %v1892 = vunpack.c.h.b16 %v263
        %v1893 = vunpack.c.l.b16 %v264
        %v1894 = vunpack.c.h.b16 %v264
        %v1895 = vunpack.c.l.b16 %v265
        %v1896 = vunpack.c.h.b16 %v265
        %v1897 = vunpack.c.l.b16 %v266
        %v1898 = vunpack.c.h.b16 %v266
        %v1899 = vunpack.c.l.b16 %v267
        %v1900 = vunpack.c.h.b16 %v267
        %v1901 = vunpack.c.l.b16 %v268
        %v1902 = vunpack.c.h.b16 %v268
        %v1903 = vunpack.c.l.b16 %v269
        %v1904 = vunpack.c.h.b16 %v269
        %v1905 = vunpack.c.l.b16 %v270
        %v1906 = vunpack.c.h.b16 %v270
        %v1907 = vunpack.c.l.b16 %v271
        %v1908 = vunpack.c.h.b16 %v271
        %v1909 = vunpack.c.l.b16 %v272
        %v1910 = vunpack.c.h.b16 %v272
        %v1911 = vunpack.c.l.b16 %v273
        %v1912 = vunpack.c.h.b16 %v273
        %v1913 = vunpack.c.l.b16 %v274
        %v1914 = vunpack.c.h.b16 %v274
        %v1915 = vunpack.c.l.b16 %v275
        %v1916 = vunpack.c.h.b16 %v275
        %v1917 = vunpack.c.l.b16 %v276
        %v1918 = vunpack.c.h.b16 %v276
        %v1919 = vunpack.c.l.b16 %v277
        %v1920 = vunpack.c.h.b16 %v277
        %v1921 = vunpack.c.l.b16 %v278
        %v1922 = vunpack.c.h.b16 %v278
        %v1923 = vunpack.c.l.b16 %v279
        %v1924 = vunpack.c.h.b16 %v279
        %v1925 = vunpack.c.l.b16 %v280
        %v1926 = vunpack.c.h.b16 %v280
        %v1927 = vunpack.c.l.b16 %v281
        %v1928 = vunpack.c.h.b16 %v281
        %v1929 = vunpack.c.l.b16 %v282
        %v1930 = vunpack.c.h.b16 %v282
        %v1931 = vunpack.c.l.b16 %v283
        %v1932 = vunpack.c.h.b16 %v283
        %v1933 = vunpack.c.l.b16 %v284
        %v1934 = vunpack.c.h.b16 %v284
        %v1935 = vunpack.c.l.b16 %v285
        %v1936 = vunpack.c.h.b16 %v285
        %v1937 = vunpack.c.l.b16 %v286
        %v1938 = vunpack.c.h.b16 %v286
        %v1939 = vunpack.c.l.b16 %v287
        %v1940 = vunpack.c.h.b16 %v287
        %v1941 = vunpack.c.l.b16 %v288
        %v1942 = vunpack.c.h.b16 %v288
        %v1943 = vunpack.c.l.b16 %v289
        %v1944 = vunpack.c.h.b16 %v289
        %v1945 = vunpack.c.l.b16 %v290
        %v1946 = vunpack.c.h.b16 %v290
        %v1947 = vunpack.c.l.b16 %v291
        %v1948 = vunpack.c.h.b16 %v291
        %v1949 = vunpack.c.l.b16 %v292
        %v1950 = vunpack.c.h.b16 %v292
        %v1951 = vunpack.c.l.b16 %v293
        %v1952 = vunpack.c.h.b16 %v293
        %v1953 = vunpack.c.l.b16 %v294
        %v1954 = vunpack.c.h.b16 %v294
        %v1955 = vunpack.c.l.b16 %v295
        %v1956 = vunpack.c.h.b16 %v295
        %v1957 = vunpack.c.l.b16 %v296
        %v1958 = vunpack.c.h.b16 %v296
        %v1959 = vunpack.c.l.b16 %v297
        %v1960 = vunpack.c.h.b16 %v297
        %v1961 = vunpack.c.l.b16 %v298
        %v1962 = vunpack.c.h.b16 %v298
        %v1963 = vunpack.c.l.b16 %v299
        %v1964 = vunpack.c.h.b16 %v299
        %v1965 = vunpack.c.l.b16 %v300
        %v1966 = vunpack.c.h.b16 %v300
        %v1967 = vunpack.c.l.b16 %v301
        %v1968 = vunpack.c.h.b16 %v301
        %v1969 = vunpack.c.l.b16 %v302
        %v1970 = vunpack.c.h.b16 %v302
        %v1971 = vunpack.c.l.b16 %v303
        %v1972 = vunpack.c.h.b16 %v303
        %v1973 = vunpack.c.l.b16 %v304
        %v1974 = vunpack.c.h.b16 %v304
        %v1975 = vunpack.c.l.b16 %v305
        %v1976 = vunpack.c.h.b16 %v305
        %v1977 = vunpack.c.l.b16 %v306
        %v1978 = vunpack.c.h.b16 %v306
        %v1979 = vunpack.c.l.b16 %v307
        %v1980 = vunpack.c.h.b16 %v307
        %v1981 = vunpack.c.l.b16 %v308
        %v1982 = vunpack.c.h.b16 %v308
        %v1983 = vunpack.c.l.b16 %v309
        %v1984 = vunpack.c.h.b16 %v309
        %v1985 = vunpack.c.l.b16 %v310
        %v1986 = vunpack.c.h.b16 %v310
        %v1987 = vunpack.c.l.b16 %v311
        %v1988 = vunpack.c.h.b16 %v311
        %v1989 = vunpack.c.l.b16 %v312
        %v1990 = vunpack.c.h.b16 %v312
        %v1991 = vunpack.c.l.b16 %v313
        %v1992 = vunpack.c.h.b16 %v313
        %v1993 = vunpack.c.l.b16 %v314
        %v1994 = vunpack.c.h.b16 %v314
        %v1995 = vunpack.c.l.b16 %v315
        %v1996 = vunpack.c.h.b16 %v315
        %v1997 = vunpack.c.l.b16 %v316
        %v1998 = vunpack.c.h.b16 %v316
        %v1999 = vunpack.c.l.b16 %v317
        %v2000 = vunpack.c.h.b16 %v317
        %v2001 = vunpack.c.l.b16 %v318
        %v2002 = vunpack.c.h.b16 %v318
        %v2003 = vunpack.c.l.b16 %v319
        %v2004 = vunpack.c.h.b16 %v319
        %v2005 = vunpack.c.l.b16 %v320
        %v2006 = vunpack.c.h.b16 %v320
        %v2007 = vunpack.c.l.b16 %v321
        %v2008 = vunpack.c.h.b16 %v321
        %v2009 = vunpack.c.l.b16 %v322
        %v2010 = vunpack.c.h.b16 %v322
        %v2011 = vunpack.c.l.b16 %v323
        %v2012 = vunpack.c.h.b16 %v323
        %v2013 = vunpack.c.l.b16 %v324
        %v2014 = vunpack.c.h.b16 %v324
        %v2015 = vunpack.c.l.b16 %v325
        %v2016 = vunpack.c.h.b16 %v325
        %v2017 = vunpack.c.l.b16 %v326
        %v2018 = vunpack.c.h.b16 %v326
        %v2019 = vunpack.c.l.b16 %v327
        %v2020 = vunpack.c.h.b16 %v327
        %v2021 = vunpack.c.l.b16 %v328
        %v2022 = vunpack.c.h.b16 %v328
        %v2023 = vunpack.c.l.b16 %v329
        %v2024 = vunpack.c.h.b16 %v329
        %v2025 = vunpack.c.l.b16 %v330
        %v2026 = vunpack.c.h.b16 %v330
        %v2027 = vunpack.c.l.b16 %v331
        %v2028 = vunpack.c.h.b16 %v331
        %v2029 = vunpack.c.l.b16 %v332
        %v2030 = vunpack.c.h.b16 %v332
        %v2031 = vunpack.c.l.b16 %v333
        %v2032 = vunpack.c.h.b16 %v333
        %v2033 = vunpack.c.l.b16 %v334
        %v2034 = vunpack.c.h.b16 %v334
        %v2035 = vunpack.c.l.b16 %v335
        %v2036 = vunpack.c.h.b16 %v335
        %v2037 = vunpack.c.l.b16 %v336
        %v2038 = vunpack.c.h.b16 %v336
        %v2039 = vunpack.c.l.b16 %v337
        %v2040 = vunpack.c.h.b16 %v337
        %v2041 = vunpack.c.l.b16 %v338
        %v2042 = vunpack.c.h.b16 %v338
        %v2043 = vunpack.c.l.b16 %v339
        %v2044 = vunpack.c.h.b16 %v339
        %v2045 = vunpack.c.l.b16 %v340
        %v2046 = vunpack.c.h.b16 %v340
        %v2047 = vunpack.c.l.b16 %v341
        %v2048 = vunpack.c.h.b16 %v341
        %v2049 = vunpack.c.l.b16 %v342
        %v2050 = vunpack.c.h.b16 %v342
        %v2051 = vunpack.c.l.b16 %v343
        %v2052 = vunpack.c.h.b16 %v343
        %v2053 = vunpack.c.l.b16 %v344
        %v2054 = vunpack.c.h.b16 %v344
        %v2055 = vunpack.c.l.b16 %v345
        %v2056 = vunpack.c.h.b16 %v345
        %v2057 = vunpack.c.l.b16 %v346
        %v2058 = vunpack.c.h.b16 %v346
        %v2059 = vunpack.c.l.b16 %v347
        %v2060 = vunpack.c.h.b16 %v347
        %v2061 = vunpack.c.l.b16 %v348
        %v2062 = vunpack.c.h.b16 %v348
        %v2063 = vunpack.c.l.b16 %v349
        %v2064 = vunpack.c.h.b16 %v349
        %v2065 = vunpack.c.l.b16 %v350
        %v2066 = vunpack.c.h.b16 %v350
        %v2067 = vunpack.c.l.b16 %v351
        %v2068 = vunpack.c.h.b16 %v351
        %v2069 = vunpack.c.l.b16 %v352
        %v2070 = vunpack.c.h.b16 %v352
        %v2071 = vunpack.c.l.b16 %v353
        %v2072 = vunpack.c.h.b16 %v353
        %v2073 = vunpack.c.l.b16 %v354
        %v2074 = vunpack.c.h.b16 %v354
        %v2075 = vunpack.c.l.b16 %v355
        %v2076 = vunpack.c.h.b16 %v355
        %v2077 = vunpack.c.l.b16 %v356
        %v2078 = vunpack.c.h.b16 %v356
        %v2079 = vunpack.c.l.b16 %v357
        %v2080 = vunpack.c.h.b16 %v357
        %v2081 = vunpack.c.l.b16 %v358
        %v2082 = vunpack.c.h.b16 %v358
        %v2083 = vunpack.c.l.b16 %v359
        %v2084 = vunpack.c.h.b16 %v359
        %v2085 = vunpack.c.l.b16 %v360
        %v2086 = vunpack.c.h.b16 %v360
        %v2087 = vunpack.c.l.b16 %v361
        %v2088 = vunpack.c.h.b16 %v361
        %v2089 = vunpack.c.l.b16 %v362
        %v2090 = vunpack.c.h.b16 %v362
        %v2091 = vunpack.c.l.b16 %v363
        %v2092 = vunpack.c.h.b16 %v363
        %v2093 = vunpack.c.l.b16 %v364
        %v2094 = vunpack.c.h.b16 %v364
        %v2095 = vunpack.c.l.b16 %v365
        %v2096 = vunpack.c.h.b16 %v365
        %v2097 = vunpack.c.l.b16 %v366
        %v2098 = vunpack.c.h.b16 %v366
        %v2099 = vunpack.c.l.b16 %v367
        %v2100 = vunpack.c.h.b16 %v367
        %v2101 = vunpack.c.l.b16 %v368
        %v2102 = vunpack.c.h.b16 %v368
        %v2103 = vunpack.c.l.b16 %v369
        %v2104 = vunpack.c.h.b16 %v369
        %v2105 = vunpack.c.l.b16 %v370
        %v2106 = vunpack.c.h.b16 %v370
        %v2107 = vunpack.c.l.b16 %v371
        %v2108 = vunpack.c.h.b16 %v371
        %v2109 = vunpack.c.l.b16 %v372
        %v2110 = vunpack.c.h.b16 %v372
        %v2111 = vunpack.c.l.b16 %v373
        %v2112 = vunpack.c.h.b16 %v373
        %v2113 = vunpack.c.l.b16 %v374
        %v2114 = vunpack.c.h.b16 %v374
        %v2115 = vunpack.c.l.b16 %v375
        %v2116 = vunpack.c.h.b16 %v375
        %v2117 = vunpack.c.l.b16 %v376
        %v2118 = vunpack.c.h.b16 %v376
        %v2119 = vunpack.c.l.b16 %v377
        %v2120 = vunpack.c.h.b16 %v377
        %v2121 = vunpack.c.l.b16 %v378
        %v2122 = vunpack.c.h.b16 %v378
        %v2123 = vunpack.c.l.b16 %v379
        %v2124 = vunpack.c.h.b16 %v379
        %v2125 = vunpack.c.l.b16 %v380
        %v2126 = vunpack.c.h.b16 %v380
        %v2127 = vunpack.c.l.b16 %v381
        %v2128 = vunpack.c.h.b16 %v381
        %v2129 = vunpack.c.l.b16 %v382
        %v2130 = vunpack.c.h.b16 %v382
        %v2131 = vunpack.c.l.b16 %v383
        %v2132 = vunpack.c.h.b16 %v383
        %v2133 = vunpack.c.l.b16 %v384
        %v2134 = vunpack.c.h.b16 %v384
        %v2135 = vunpack.c.l.b16 %v385
        %v2136 = vunpack.c.h.b16 %v385
        %v2137 = vunpack.c.l.b16 %v386
        %v2138 = vunpack.c.h.b16 %v386
        %v2139 = vunpack.c.l.b16 %v387
        %v2140 = vunpack.c.h.b16 %v387
        %v2141 = vunpack.c.l.b16 %v388
        %v2142 = vunpack.c.h.b16 %v388
        %v2143 = vunpack.c.l.b16 %v389
        %v2144 = vunpack.c.h.b16 %v389
        %v2145 = vunpack.c.l.b16 %v390
        %v2146 = vunpack.c.h.b16 %v390
        %v2147 = vunpack.c.l.b16 %v391
        %v2148 = vunpack.c.h.b16 %v391
        %v2149 = vunpack.c.l.b16 %v392
        %v2150 = vunpack.c.h.b16 %v392
        %v2151 = vunpack.c.l.b16 %v393
        %v2152 = vunpack.c.h.b16 %v393
        %v2153 = vunpack.c.l.b16 %v394
        %v2154 = vunpack.c.h.b16 %v394
        %v2155 = vunpack.c.l.b16 %v395
        %v2156 = vunpack.c.h.b16 %v395
        %v2157 = vunpack.c.l.b16 %v396
        %v2158 = vunpack.c.h.b16 %v396
        %v2159 = vunpack.c.l.b16 %v397
        %v2160 = vunpack.c.h.b16 %v397
        %v2161 = vunpack.c.l.b16 %v398
        %v2162 = vunpack.c.h.b16 %v398
        %v2163 = vunpack.c.l.b16 %v399
        %v2164 = vunpack.c.h.b16 %v399
        %v2165 = vunpack.c.l.b16 %v400
        %v2166 = vunpack.c.h.b16 %v400
        %v2167 = vunpack.c.l.b16 %v401
        %v2168 = vunpack.c.h.b16 %v401
        %v2169 = vunpack.c.l.b16 %v402
        %v2170 = vunpack.c.h.b16 %v402
        %v2171 = vunpack.c.l.b16 %v403
        %v2172 = vunpack.c.h.b16 %v403
        %v2173 = vunpack.c.l.b16 %v404
        %v2174 = vunpack.c.h.b16 %v404
        %v2175 = vunpack.c.l.b16 %v405
        %v2176 = vunpack.c.h.b16 %v405
        %v2177 = vunpack.c.l.b16 %v406
        %v2178 = vunpack.c.h.b16 %v406
        %v2179 = vunpack.c.l.b16 %v407
        %v2180 = vunpack.c.h.b16 %v407
        %v2181 = vunpack.c.l.b16 %v408
        %v2182 = vunpack.c.h.b16 %v408
        %v2183 = vunpack.c.l.b16 %v409
        %v2184 = vunpack.c.h.b16 %v409
        %v2185 = vunpack.c.l.b16 %v410
        %v2186 = vunpack.c.h.b16 %v410
        %v2187 = vunpack.c.l.b16 %v411
        %v2188 = vunpack.c.h.b16 %v411
        %v2189 = vunpack.c.l.b16 %v412
        %v2190 = vunpack.c.h.b16 %v412
        %v2191 = vunpack.c.l.b16 %v413
        %v2192 = vunpack.c.h.b16 %v413
        %v2193 = vunpack.c.l.b16 %v414
        %v2194 = vunpack.c.h.b16 %v414
        %v2195 = vunpack.c.l.b16 %v415
        %v2196 = vunpack.c.h.b16 %v415
        %v2197 = vunpack.c.l.b16 %v416
        %v2198 = vunpack.c.h.b16 %v416
        %v2199 = vunpack.c.l.b16 %v417
        %v2200 = vunpack.c.h.b16 %v417
        %v2201 = vunpack.c.l.b16 %v418
        %v2202 = vunpack.c.h.b16 %v418
        %v2203 = vunpack.c.l.b16 %v419
        %v2204 = vunpack.c.h.b16 %v419
        %v2205 = vunpack.c.l.b16 %v420
        %v2206 = vunpack.c.h.b16 %v420
        %v2207 = vunpack.c.l.b16 %v421
        %v2208 = vunpack.c.h.b16 %v421
        %v2209 = vunpack.c.l.b16 %v422
        %v2210 = vunpack.c.h.b16 %v422
        %v2211 = vunpack.c.l.b16 %v423
        %v2212 = vunpack.c.h.b16 %v423
        %v2213 = vunpack.c.l.b16 %v424
        %v2214 = vunpack.c.h.b16 %v424
        %v2215 = vunpack.c.l.b16 %v425
        %v2216 = vunpack.c.h.b16 %v425
        %v2217 = vunpack.c.l.b16 %v426
        %v2218 = vunpack.c.h.b16 %v426
        %v2219 = vunpack.c.l.b16 %v427
        %v2220 = vunpack.c.h.b16 %v427
        %v2221 = vunpack.c.l.b16 %v428
        %v2222 = vunpack.c.h.b16 %v428
        %v2223 = vunpack.c.l.b16 %v429
        %v2224 = vunpack.c.h.b16 %v429
        %v2225 = vunpack.c.l.b16 %v430
        %v2226 = vunpack.c.h.b16 %v430
        %v2227 = vunpack.c.l.b16 %v431
        %v2228 = vunpack.c.h.b16 %v431
        %v2229 = vunpack.c.l.b16 %v432
        %v2230 = vunpack.c.h.b16 %v432
        %v2231 = vunpack.c.l.b16 %v433
        %v2232 = vunpack.c.h.b16 %v433
        %v2233 = vunpack.c.l.b16 %v434
        %v2234 = vunpack.c.h.b16 %v434
        %v2235 = vunpack.c.l.b16 %v435
        %v2236 = vunpack.c.h.b16 %v435
        %v2237 = vunpack.c.l.b16 %v436
        %v2238 = vunpack.c.h.b16 %v436
        %v2239 = vunpack.c.l.b16 %v437
        %v2240 = vunpack.c.h.b16 %v437
        %v2241 = vunpack.c.l.b16 %v438
        %v2242 = vunpack.c.h.b16 %v438
        %v2243 = vunpack.c.l.b16 %v439
        %v2244 = vunpack.c.h.b16 %v439
        %v2245 = vunpack.c.l.b16 %v440
        %v2246 = vunpack.c.h.b16 %v440
        %v2247 = vunpack.c.l.b16 %v441
        %v2248 = vunpack.c.h.b16 %v441
        %v2249 = vunpack.c.l.b16 %v442
        %v2250 = vunpack.c.h.b16 %v442
        %v2251 = vunpack.c.l.b16 %v443
        %v2252 = vunpack.c.h.b16 %v443
        %v2253 = vunpack.c.l.b16 %v444
        %v2254 = vunpack.c.h.b16 %v444
        %v2255 = vunpack.c.l.b16 %v445
        %v2256 = vunpack.c.h.b16 %v445
        %v2257 = vunpack.c.l.b16 %v446
        %v2258 = vunpack.c.h.b16 %v446
        %v2259 = vunpack.c.l.b16 %v447
        %v2260 = vunpack.c.h.b16 %v447
        %v2261 = vunpack.c.l.b16 %v448
        %v2262 = vunpack.c.h.b16 %v448
        %v2263 = vunpack.c.l.b16 %v449
        %v2264 = vunpack.c.h.b16 %v449
        %v2265 = vunpack.c.l.b16 %v450
        %v2266 = vunpack.c.h.b16 %v450
        %v2267 = vunpack.c.l.b16 %v451
        %v2268 = vunpack.c.h.b16 %v451
        %v2269 = vunpack.c.l.b16 %v452
        %v2270 = vunpack.c.h.b16 %v452
        %v2271 = vunpack.c.l.b16 %v453
        %v2272 = vunpack.c.h.b16 %v453
        %v2273 = vunpack.c.l.b16 %v454
        %v2274 = vunpack.c.h.b16 %v454
        %v2275 = vunpack.c.l.b16 %v455
        %v2276 = vunpack.c.h.b16 %v455
        %v2277 = vunpack.c.l.b16 %v456
        %v2278 = vunpack.c.h.b16 %v456
        %v2279 = vunpack.c.l.b16 %v457
        %v2280 = vunpack.c.h.b16 %v457
        %v2281 = vunpack.c.l.b16 %v458
        %v2282 = vunpack.c.h.b16 %v458
        %v2283 = vunpack.c.l.b16 %v459
        %v2284 = vunpack.c.h.b16 %v459
        %v2285 = vunpack.c.l.b16 %v460
        %v2286 = vunpack.c.h.b16 %v460
        %v2287 = vunpack.c.l.b16 %v461
        %v2288 = vunpack.c.h.b16 %v461
        %v2289 = vunpack.c.l.b16 %v462
        %v2290 = vunpack.c.h.b16 %v462
        %v2291 = vunpack.c.l.b16 %v463
        %v2292 = vunpack.c.h.b16 %v463
        %v2293 = vunpack.c.l.b16 %v464
        %v2294 = vunpack.c.h.b16 %v464
        %v2295 = vunpack.c.l.b16 %v465
        %v2296 = vunpack.c.h.b16 %v465
        %v2297 = vunpack.c.l.b16 %v466
        %v2298 = vunpack.c.h.b16 %v466
        %v2299 = vunpack.c.l.b16 %v467
        %v2300 = vunpack.c.h.b16 %v467
        %v2301 = vunpack.c.l.b16 %v468
        %v2302 = vunpack.c.h.b16 %v468
        %v2303 = vunpack.c.l.b16 %v469
        %v2304 = vunpack.c.h.b16 %v469
        %v2305 = vunpack.c.l.b16 %v470
        %v2306 = vunpack.c.h.b16 %v470
        %v2307 = vunpack.c.l.b16 %v471
        %v2308 = vunpack.c.h.b16 %v471
        %v2309 = vunpack.c.l.b16 %v472
        %v2310 = vunpack.c.h.b16 %v472
        %v2311 = vunpack.c.l.b16 %v473
        %v2312 = vunpack.c.h.b16 %v473
        %v2313 = vunpack.c.l.b16 %v474
        %v2314 = vunpack.c.h.b16 %v474
        %v2315 = vunpack.c.l.b16 %v475
        %v2316 = vunpack.c.h.b16 %v475
        %v2317 = vunpack.c.l.b16 %v476
        %v2318 = vunpack.c.h.b16 %v476
        %v2319 = vunpack.c.l.b16 %v477
        %v2320 = vunpack.c.h.b16 %v477
        %v2321 = vunpack.c.l.b16 %v478
        %v2322 = vunpack.c.h.b16 %v478
        %v2323 = vunpack.c.l.b16 %v479
        %v2324 = vunpack.c.h.b16 %v479
        %v2325 = vunpack.c.l.b16 %v480
        %v2326 = vunpack.c.h.b16 %v480
        %v2327 = vunpack.c.l.b16 %v481
        %v2328 = vunpack.c.h.b16 %v481
        %v2329 = vunpack.c.l.b16 %v482
        %v2330 = vunpack.c.h.b16 %v482
        %v2331 = vunpack.c.l.b16 %v483
        %v2332 = vunpack.c.h.b16 %v483
        %v2333 = vunpack.c.l.b16 %v484
        %v2334 = vunpack.c.h.b16 %v484
        %v2335 = vunpack.c.l.b16 %v485
        %v2336 = vunpack.c.h.b16 %v485
        %v2337 = vunpack.c.l.b16 %v486
        %v2338 = vunpack.c.h.b16 %v486
        %v2339 = vunpack.c.l.b16 %v487
        %v2340 = vunpack.c.h.b16 %v487
        %v2341 = vunpack.c.l.b16 %v488
        %v2342 = vunpack.c.h.b16 %v488
        %v2343 = vunpack.c.l.b16 %v489
        %v2344 = vunpack.c.h.b16 %v489
        %v2345 = vunpack.c.l.b16 %v490
        %v2346 = vunpack.c.h.b16 %v490
        %v2347 = vunpack.c.l.b16 %v491
        %v2348 = vunpack.c.h.b16 %v491
        %v2349 = vunpack.c.l.b16 %v492
        %v2350 = vunpack.c.h.b16 %v492
        %v2351 = vunpack.c.l.b16 %v493
        %v2352 = vunpack.c.h.b16 %v493
        %v2353 = vunpack.c.l.b16 %v494
        %v2354 = vunpack.c.h.b16 %v494
        %v2355 = vunpack.c.l.b16 %v495
        %v2356 = vunpack.c.h.b16 %v495
        %v2357 = vunpack.c.l.b16 %v496
        %v2358 = vunpack.c.h.b16 %v496
        %v2359 = vunpack.c.l.b16 %v497
        %v2360 = vunpack.c.h.b16 %v497
        %v2361 = vunpack.c.l.b16 %v498
        %v2362 = vunpack.c.h.b16 %v498
        %v2363 = vunpack.c.l.b16 %v499
        %v2364 = vunpack.c.h.b16 %v499
        %v2365 = vunpack.c.l.b16 %v500
        %v2366 = vunpack.c.h.b16 %v500
        %v2367 = vunpack.c.l.b16 %v501
        %v2368 = vunpack.c.h.b16 %v501
        %v2369 = vunpack.c.l.b16 %v502
        %v2370 = vunpack.c.h.b16 %v502
        %v2371 = vunpack.c.l.b16 %v503
        %v2372 = vunpack.c.h.b16 %v503
        %v2373 = vunpack.c.l.b16 %v504
        %v2374 = vunpack.c.h.b16 %v504
        %v2375 = vunpack.c.l.b16 %v505
        %v2376 = vunpack.c.h.b16 %v505
        %v2377 = vunpack.c.l.b16 %v506
        %v2378 = vunpack.c.h.b16 %v506
        %v2379 = vunpack.c.l.b16 %v507
        %v2380 = vunpack.c.h.b16 %v507
        %v2381 = vunpack.c.l.b16 %v508
        %v2382 = vunpack.c.h.b16 %v508
        %v2383 = vunpack.c.l.b16 %v509
        %v2384 = vunpack.c.h.b16 %v509
        %v2385 = vunpack.c.l.b16 %v510
        %v2386 = vunpack.c.h.b16 %v510
        %v2387 = vunpack.c.l.b16 %v511
        %v2388 = vunpack.c.h.b16 %v511
        %v2389 = vunpack.c.l.b16 %v512
        %v2390 = vunpack.c.h.b16 %v512
        %v2391 = vunpack.c.l.b16 %v513
        %v2392 = vunpack.c.h.b16 %v513
        %v2393 = vunpack.c.l.b16 %v514
        %v2394 = vunpack.c.h.b16 %v514
        %v2395 = vunpack.c.l.b16 %v515
        %v2396 = vunpack.c.h.b16 %v515
        %v2397 = vunpack.c.l.b16 %v516
        %v2398 = vunpack.c.h.b16 %v516
        %v2399 = vunpack.c.l.b16 %v517
        %v2400 = vunpack.c.h.b16 %v517
        %v2401 = vunpack.c.l.b16 %v518
        %v2402 = vunpack.c.h.b16 %v518
        %v2403 = vunpack.c.l.b16 %v519
        %v2404 = vunpack.c.h.b16 %v519
        %v2405 = vunpack.c.l.b16 %v520
        %v2406 = vunpack.c.h.b16 %v520
        %v2407 = vunpack.c.l.b16 %v521
        %v2408 = vunpack.c.h.b16 %v521
        %v2409 = vunpack.c.l.b16 %v522
        %v2410 = vunpack.c.h.b16 %v522
        %v2411 = vunpack.c.l.b16 %v523
        %v2412 = vunpack.c.h.b16 %v523
        %v2413 = vunpack.c.l.b16 %v524
        %v2414 = vunpack.c.h.b16 %v524
        %v2415 = vunpack.c.l.b16 %v525
        %v2416 = vunpack.c.h.b16 %v525
        %v2417 = vunpack.c.l.b16 %v526
        %v2418 = vunpack.c.h.b16 %v526
        %v2419 = vunpack.c.l.b16 %v527
        %v2420 = vunpack.c.h.b16 %v527
        %v2421 = vunpack.c.l.b16 %v528
        %v2422 = vunpack.c.h.b16 %v528
        %v2423 = vunpack.c.l.b16 %v529
        %v2424 = vunpack.c.h.b16 %v529
        %v2425 = vunpack.c.l.b16 %v530
        %v2426 = vunpack.c.h.b16 %v530
        %v2427 = vunpack.c.l.b16 %v531
        %v2428 = vunpack.c.h.b16 %v531
        %v2429 = vunpack.c.l.b16 %v532
        %v2430 = vunpack.c.h.b16 %v532
        %v2431 = vunpack.c.l.b16 %v533
        %v2432 = vunpack.c.h.b16 %v533
        %v2433 = vunpack.c.l.b16 %v534
        %v2434 = vunpack.c.h.b16 %v534
        %v2435 = vunpack.c.l.b16 %v535
        %v2436 = vunpack.c.h.b16 %v535
        %v2437 = vunpack.c.l.b16 %v536
        %v2438 = vunpack.c.h.b16 %v536
        %v2439 = vunpack.c.l.b16 %v537
        %v2440 = vunpack.c.h.b16 %v537
        %v2441 = vunpack.c.l.b16 %v538
        %v2442 = vunpack.c.h.b16 %v538
        %v2443 = vunpack.c.l.b16 %v539
        %v2444 = vunpack.c.h.b16 %v539
        %v2445 = vunpack.c.l.b16 %v540
        %v2446 = vunpack.c.h.b16 %v540
        %v2447 = vunpack.c.l.b16 %v541
        %v2448 = vunpack.c.h.b16 %v541
        %v2449 = vunpack.c.l.b16 %v542
        %v2450 = vunpack.c.h.b16 %v542
        %v2451 = vunpack.c.l.b16 %v543
        %v2452 = vunpack.c.h.b16 %v543
        %v2453 = vunpack.c.l.b16 %v544
        %v2454 = vunpack.c.h.b16 %v544
        %v2455 = vunpack.c.l.b16 %v545
        %v2456 = vunpack.c.h.b16 %v545
        %v2457 = vunpack.c.l.b16 %v546
        %v2458 = vunpack.c.h.b16 %v546
        %v2459 = vunpack.c.l.b16 %v547
        %v2460 = vunpack.c.h.b16 %v547
        %v2461 = vunpack.c.l.b16 %v548
        %v2462 = vunpack.c.h.b16 %v548
        %v2463 = vunpack.c.l.b16 %v549
        %v2464 = vunpack.c.h.b16 %v549
        %v2465 = vunpack.c.l.b16 %v550
        %v2466 = vunpack.c.h.b16 %v550
        %v2467 = vunpack.c.l.b16 %v551
        %v2468 = vunpack.c.h.b16 %v551
        %v2469 = vunpack.c.l.b16 %v552
        %v2470 = vunpack.c.h.b16 %v552
        %v2471 = vunpack.c.l.b16 %v553
        %v2472 = vunpack.c.h.b16 %v553
        %v2473 = vunpack.c.l.b16 %v554
        %v2474 = vunpack.c.h.b16 %v554
        %v2475 = vunpack.c.l.b16 %v555
        %v2476 = vunpack.c.h.b16 %v555
        %v2477 = vunpack.c.l.b16 %v556
        %v2478 = vunpack.c.h.b16 %v556
        %v2479 = vunpack.c.l.b16 %v557
        %v2480 = vunpack.c.h.b16 %v557
        %v2481 = vunpack.c.l.b16 %v558
        %v2482 = vunpack.c.h.b16 %v558
        %v2483 = vunpack.c.l.b16 %v559
        %v2484 = vunpack.c.h.b16 %v559
        %v2485 = vunpack.c.l.b16 %v560
        %v2486 = vunpack.c.h.b16 %v560
        %v2487 = vunpack.c.l.b16 %v561
        %v2488 = vunpack.c.h.b16 %v561
        %v2489 = vunpack.c.l.b16 %v562
        %v2490 = vunpack.c.h.b16 %v562
        %v2491 = vunpack.c.l.b16 %v563
        %v2492 = vunpack.c.h.b16 %v563
        %v2493 = vunpack.c.l.b16 %v564
        %v2494 = vunpack.c.h.b16 %v564
        %v2495 = vunpack.c.l.b16 %v565
        %v2496 = vunpack.c.h.b16 %v565
        %v2497 = vunpack.c.l.b16 %v566
        %v2498 = vunpack.c.h.b16 %v566
        %v2499 = vunpack.c.l.b16 %v567
        %v2500 = vunpack.c.h.b16 %v567
        %v2501 = vunpack.c.l.b16 %v568
        %v2502 = vunpack.c.h.b16 %v568
        %v2503 = vunpack.c.l.b16 %v569
        %v2504 = vunpack.c.h.b16 %v569
        %v2505 = vunpack.c.l.b16 %v570
        %v2506 = vunpack.c.h.b16 %v570
        %v2507 = vunpack.c.l.b16 %v571
        %v2508 = vunpack.c.h.b16 %v571
        %v2509 = vunpack.c.l.b16 %v572
        %v2510 = vunpack.c.h.b16 %v572
        %v2511 = vunpack.c.l.b16 %v573
        %v2512 = vunpack.c.h.b16 %v573
        %v2513 = vunpack.c.l.b16 %v574
        %v2514 = vunpack.c.h.b16 %v574
        %v2515 = vunpack.c.l.b16 %v575
        %v2516 = vunpack.c.h.b16 %v575
        %v2517 = vunpack.c.l.b16 %v576
        %v2518 = vunpack.c.h.b16 %v576
        %v2519 = vunpack.c.l.b16 %v577
        %v2520 = vunpack.c.h.b16 %v577
        %v2521 = vunpack.c.l.b16 %v578
        %v2522 = vunpack.c.h.b16 %v578
        %v2523 = vunpack.c.l.b16 %v579
        %v2524 = vunpack.c.h.b16 %v579
        %v2525 = vunpack.c.l.b16 %v580
        %v2526 = vunpack.c.h.b16 %v580
        %v2527 = vunpack.c.l.b16 %v581
        %v2528 = vunpack.c.h.b16 %v581
        %v2529 = vunpack.c.l.b16 %v582
        %v2530 = vunpack.c.h.b16 %v582
        %v2531 = vunpack.c.l.b16 %v583
        %v2532 = vunpack.c.h.b16 %v583
        %v2533 = vunpack.c.l.b16 %v584
        %v2534 = vunpack.c.h.b16 %v584
        %v2535 = vunpack.c.l.b16 %v585
        %v2536 = vunpack.c.h.b16 %v585
        %v2537 = vunpack.c.l.b16 %v586
        %v2538 = vunpack.c.h.b16 %v586
        %v2539 = vunpack.c.l.b16 %v587
        %v2540 = vunpack.c.h.b16 %v587
        %v2541 = vunpack.c.l.b16 %v588
        %v2542 = vunpack.c.h.b16 %v588
        %v2543 = vunpack.c.l.b16 %v589
        %v2544 = vunpack.c.h.b16 %v589
        %v2545 = vunpack.c.l.b16 %v590
        %v2546 = vunpack.c.h.b16 %v590
        %v2547 = vunpack.c.l.b16 %v591
        %v2548 = vunpack.c.h.b16 %v591
        %v2549 = vunpack.c.l.b16 %v592
        %v2550 = vunpack.c.h.b16 %v592
        %v2551 = vunpack.c.l.b16 %v593
        %v2552 = vunpack.c.h.b16 %v593
        %v2553 = vunpack.c.l.b16 %v594
        %v2554 = vunpack.c.h.b16 %v594
        %v2555 = vunpack.c.l.b16 %v595
        %v2556 = vunpack.c.h.b16 %v595
        %v2557 = vunpack.c.l.b16 %v596
        %v2558 = vunpack.c.h.b16 %v596
        %v2559 = vunpack.c.l.b16 %v597
        %v2560 = vunpack.c.h.b16 %v597
        %v2561 = vunpack.c.l.b16 %v598
        %v2562 = vunpack.c.h.b16 %v598
        %v2563 = vunpack.c.l.b16 %v599
        %v2564 = vunpack.c.h.b16 %v599
        %v2565 = vunpack.c.l.b16 %v600
        %v2566 = vunpack.c.h.b16 %v600
        %v2567 = vunpack.c.l.b16 %v601
        %v2568 = vunpack.c.h.b16 %v601
        %v2569 = vunpack.c.l.b16 %v602
        %v2570 = vunpack.c.h.b16 %v602
        %v2571 = vunpack.c.l.b16 %v603
        %v2572 = vunpack.c.h.b16 %v603
        %v2573 = vunpack.c.l.b16 %v604
        %v2574 = vunpack.c.h.b16 %v604
        %v2575 = vunpack.c.l.b16 %v605
        %v2576 = vunpack.c.h.b16 %v605
        %v2577 = vunpack.c.l.b16 %v606
        %v2578 = vunpack.c.h.b16 %v606
        %v2579 = vunpack.c.l.b16 %v607
        %v2580 = vunpack.c.h.b16 %v607
        %v2581 = vunpack.c.l.b16 %v608
        %v2582 = vunpack.c.h.b16 %v608
        %v2583 = vunpack.c.l.b16 %v609
        %v2584 = vunpack.c.h.b16 %v609
        %v2585 = vunpack.c.l.b16 %v610
        %v2586 = vunpack.c.h.b16 %v610
        %v2587 = vunpack.c.l.b16 %v611
        %v2588 = vunpack.c.h.b16 %v611
        %v2589 = vunpack.c.l.b16 %v612
        %v2590 = vunpack.c.h.b16 %v612
        %v2591 = vunpack.c.l.b16 %v613
        %v2592 = vunpack.c.h.b16 %v613
        %v2593 = vunpack.c.l.b16 %v614
        %v2594 = vunpack.c.h.b16 %v614
        %v2595 = vunpack.c.l.b16 %v615
        %v2596 = vunpack.c.h.b16 %v615
        %v2597 = vunpack.c.l.b16 %v616
        %v2598 = vunpack.c.h.b16 %v616
        %v2599 = vunpack.c.l.b16 %v617
        %v2600 = vunpack.c.h.b16 %v617
        %v2601 = vunpack.c.l.b16 %v618
        %v2602 = vunpack.c.h.b16 %v618
        %v2603 = vunpack.c.l.b16 %v619
        %v2604 = vunpack.c.h.b16 %v619
        %v2605 = vunpack.c.l.b16 %v620
        %v2606 = vunpack.c.h.b16 %v620
        %v2607 = vunpack.c.l.b16 %v621
        %v2608 = vunpack.c.h.b16 %v621
        %v2609 = vunpack.c.l.b16 %v622
        %v2610 = vunpack.c.h.b16 %v622
        %v2611 = vunpack.c.l.b16 %v623
        %v2612 = vunpack.c.h.b16 %v623
        %v2613 = vunpack.c.l.b16 %v624
        %v2614 = vunpack.c.h.b16 %v624
        %v2615 = vunpack.c.l.b16 %v625
        %v2616 = vunpack.c.h.b16 %v625
        %v2617 = vunpack.c.l.b16 %v626
        %v2618 = vunpack.c.h.b16 %v626
        %v2619 = vunpack.c.l.b16 %v627
        %v2620 = vunpack.c.h.b16 %v627
        %v2621 = vunpack.c.l.b16 %v628
        %v2622 = vunpack.c.h.b16 %v628
        %v2623 = vunpack.c.l.b16 %v629
        %v2624 = vunpack.c.h.b16 %v629
        %v2625 = vunpack.c.l.b16 %v630
        %v2626 = vunpack.c.h.b16 %v630
        %v2627 = vunpack.c.l.b16 %v631
        %v2628 = vunpack.c.h.b16 %v631
        %v2629 = vunpack.c.l.b16 %v632
        %v2630 = vunpack.c.h.b16 %v632
        %v2631 = vunpack.c.l.b16 %v633
        %v2632 = vunpack.c.h.b16 %v633
        %v2633 = vunpack.c.l.b16 %v634
        %v2634 = vunpack.c.h.b16 %v634
        %v2635 = vunpack.c.l.b16 %v635
        %v2636 = vunpack.c.h.b16 %v635
        %v2637 = vunpack.c.l.b16 %v636
        %v2638 = vunpack.c.h.b16 %v636
        %v2639 = vunpack.c.l.b16 %v637
        %v2640 = vunpack.c.h.b16 %v637
        %v2641 = vunpack.c.l.b16 %v638
        %v2642 = vunpack.c.h.b16 %v638
        %v2643 = vunpack.c.l.b16 %v639
        %v2644 = vunpack.c.h.b16 %v639
        %v2645 = vunpack.c.l.b16 %v640
        %v2646 = vunpack.c.h.b16 %v640
        %v2647 = vunpack.c.l.b16 %v641
        %v2648 = vunpack.c.h.b16 %v641
        %v2649 = vunpack.c.l.b16 %v642
        %v2650 = vunpack.c.h.b16 %v642
        %v2651 = vunpack.c.l.b16 %v643
        %v2652 = vunpack.c.h.b16 %v643
        %v2653 = vunpack.c.l.b16 %v644
        %v2654 = vunpack.c.h.b16 %v644
        %v2655 = vunpack.c.l.b16 %v645
        %v2656 = vunpack.c.h.b16 %v645
        %v2657 = vunpack.c.l.b16 %v646
        %v2658 = vunpack.c.h.b16 %v646
        %v2659 = vunpack.c.l.b16 %v647
        %v2660 = vunpack.c.h.b16 %v647
        %v2661 = vunpack.c.l.b16 %v648
        %v2662 = vunpack.c.h.b16 %v648
        %v2663 = vunpack.c.l.b16 %v649
        %v2664 = vunpack.c.h.b16 %v649
        %v2665 = vunpack.c.l.b16 %v650
        %v2666 = vunpack.c.h.b16 %v650
        %v2667 = vunpack.c.l.b16 %v651
        %v2668 = vunpack.c.h.b16 %v651
        %v2669 = vunpack.c.l.b16 %v652
        %v2670 = vunpack.c.h.b16 %v652
        %v2671 = vunpack.c.l.b16 %v653
        %v2672 = vunpack.c.h.b16 %v653
        %v2673 = vunpack.c.l.b16 %v654
        %v2674 = vunpack.c.h.b16 %v654
        %v2675 = vunpack.c.l.b16 %v655
        %v2676 = vunpack.c.h.b16 %v655
        %v2677 = vunpack.c.l.b16 %v656
        %v2678 = vunpack.c.h.b16 %v656
        %v2679 = vunpack.c.l.b16 %v657
        %v2680 = vunpack.c.h.b16 %v657
        %v2681 = vunpack.c.l.b16 %v658
        %v2682 = vunpack.c.h.b16 %v658
        %v2683 = vunpack.c.l.b16 %v659
        %v2684 = vunpack.c.h.b16 %v659
        %v2685 = vunpack.c.l.b16 %v660
        %v2686 = vunpack.c.h.b16 %v660
        %v2687 = vunpack.c.l.b16 %v661
        %v2688 = vunpack.c.h.b16 %v661
        %v2689 = vunpack.c.l.b16 %v662
        %v2690 = vunpack.c.h.b16 %v662
        %v2691 = vunpack.c.l.b16 %v663
        %v2692 = vunpack.c.h.b16 %v663
        %v2693 = vunpack.c.l.b16 %v664
        %v2694 = vunpack.c.h.b16 %v664
        %v2695 = vunpack.c.l.b16 %v665
        %v2696 = vunpack.c.h.b16 %v665
        %v2697 = vunpack.c.l.b16 %v666
        %v2698 = vunpack.c.h.b16 %v666
        %v2699 = vunpack.c.l.b16 %v667
        %v2700 = vunpack.c.h.b16 %v667
        %v2701 = vunpack.c.l.b16 %v668
        %v2702 = vunpack.c.h.b16 %v668
        %v2703 = vunpack.c.l.b16 %v669
        %v2704 = vunpack.c.h.b16 %v669
        %v2705 = vunpack.c.l.b16 %v670
        %v2706 = vunpack.c.h.b16 %v670
        %v2707 = vunpack.c.l.b16 %v671
        %v2708 = vunpack.c.h.b16 %v671
        %v2709 = vunpack.c.l.b16 %v672
        %v2710 = vunpack.c.h.b16 %v672
        %v2711 = vunpack.c.l.b16 %v673
        %v2712 = vunpack.c.h.b16 %v673
        %v2713 = vunpack.c.l.b16 %v674
        %v2714 = vunpack.c.h.b16 %v674
        %v2715 = vunpack.c.l.b16 %v675
        %v2716 = vunpack.c.h.b16 %v675
        %v2717 = vunpack.c.l.b16 %v676
        %v2718 = vunpack.c.h.b16 %v676
        %v2719 = vunpack.c.l.b16 %v677
        %v2720 = vunpack.c.h.b16 %v677
        %v2721 = vunpack.c.l.b16 %v678
        %v2722 = vunpack.c.h.b16 %v678
        %v2723 = vunpack.c.l.b16 %v679
        %v2724 = vunpack.c.h.b16 %v679
        %v2725 = vunpack.c.l.b16 %v680
        %v2726 = vunpack.c.h.b16 %v680
        %v2727 = vunpack.c.l.b16 %v681
        %v2728 = vunpack.c.h.b16 %v681
        %v2729 = vunpack.c.l.b16 %v682
        %v2730 = vunpack.c.h.b16 %v682
        %v2731 = vunpack.c.l.b16 %v683
        %v2732 = vunpack.c.h.b16 %v683
        %v2733 = vunpack.c.l.b16 %v684
        %v2734 = vunpack.c.h.b16 %v684
        %v2735 = vunpack.c.l.b16 %v685
        %v2736 = vunpack.c.h.b16 %v685
        %v2737 = vunpack.c.l.b16 %v686
        %v2738 = vunpack.c.h.b16 %v686
        %v2739 = vunpack.c.l.b16 %v687
        %v2740 = vunpack.c.h.b16 %v687
        %v2741 = vunpack.c.l.b16 %v688
        %v2742 = vunpack.c.h.b16 %v688
        %v2743 = vunpack.c.l.b16 %v689
        %v2744 = vunpack.c.h.b16 %v689
        %v2745 = vunpack.c.l.b16 %v690
        %v2746 = vunpack.c.h.b16 %v690
        %v2747 = vunpack.c.l.b16 %v691
        %v2748 = vunpack.c.h.b16 %v691
        %v2749 = vunpack.c.l.b16 %v692
        %v2750 = vunpack.c.h.b16 %v692
        %v2751 = vunpack.c.l.b16 %v693
        %v2752 = vunpack.c.h.b16 %v693
        %v2753 = vunpack.c.l.b16 %v694
        %v2754 = vunpack.c.h.b16 %v694
        %v2755 = vunpack.c.l.b16 %v695
        %v2756 = vunpack.c.h.b16 %v695
        %v2757 = vunpack.c.l.b16 %v696
        %v2758 = vunpack.c.h.b16 %v696
        %v2759 = vunpack.c.l.b16 %v697
        %v2760 = vunpack.c.h.b16 %v697
        %v2761 = vunpack.c.l.b16 %v698
        %v2762 = vunpack.c.h.b16 %v698
        %v2763 = vunpack.c.l.b16 %v699
        %v2764 = vunpack.c.h.b16 %v699
        %v2765 = vunpack.c.l.b16 %v700
        %v2766 = vunpack.c.h.b16 %v700
        %v2767 = vunpack.c.l.b16 %v701
        %v2768 = vunpack.c.h.b16 %v701
        %v2769 = vunpack.c.l.b16 %v702
        %v2770 = vunpack.c.h.b16 %v702
        %v2771 = vunpack.c.l.b16 %v703
        %v2772 = vunpack.c.h.b16 %v703
        %v2773 = vunpack.c.l.b16 %v704
        %v2774 = vunpack.c.h.b16 %v704
        %v2775 = vunpack.c.l.b16 %v705
        %v2776 = vunpack.c.h.b16 %v705
        %v2777 = vunpack.c.l.b16 %v706
        %v2778 = vunpack.c.h.b16 %v706
        %v2779 = vunpack.c.l.b16 %v707
        %v2780 = vunpack.c.h.b16 %v707
        %v2781 = vunpack.c.l.b16 %v708
        %v2782 = vunpack.c.h.b16 %v708
        %v2783 = vunpack.c.l.b16 %v709
        %v2784 = vunpack.c.h.b16 %v709
        %v2785 = vunpack.c.l.b16 %v710
        %v2786 = vunpack.c.h.b16 %v710
        %v2787 = vunpack.c.l.b16 %v711
        %v2788 = vunpack.c.h.b16 %v711
        %v2789 = vunpack.c.l.b16 %v712
        %v2790 = vunpack.c.h.b16 %v712
        %v2791 = vunpack.c.l.b16 %v713
        %v2792 = vunpack.c.h.b16 %v713
        %v2793 = vunpack.c.l.b16 %v714
        %v2794 = vunpack.c.h.b16 %v714
        %v2795 = vunpack.c.l.b16 %v715
        %v2796 = vunpack.c.h.b16 %v715
        %v2797 = vunpack.c.l.b16 %v716
        %v2798 = vunpack.c.h.b16 %v716
        %v2799 = vunpack.c.l.b16 %v717
        %v2800 = vunpack.c.h.b16 %v717
        %v2801 = vunpack.c.l.b16 %v718
        %v2802 = vunpack.c.h.b16 %v718
        %v2803 = vunpack.c.l.b16 %v719
        %v2804 = vunpack.c.h.b16 %v719
        %v2805 = vunpack.c.l.b16 %v720
        %v2806 = vunpack.c.h.b16 %v720
        %v2807 = vunpack.c.l.b16 %v721
        %v2808 = vunpack.c.h.b16 %v721
        %v2809 = vunpack.c.l.b16 %v722
        %v2810 = vunpack.c.h.b16 %v722
        %v2811 = vunpack.c.l.b16 %v723
        %v2812 = vunpack.c.h.b16 %v723
        %v2813 = vunpack.c.l.b16 %v724
        %v2814 = vunpack.c.h.b16 %v724
        %v2815 = vunpack.c.l.b16 %v725
        %v2816 = vunpack.c.h.b16 %v725
        %v2817 = vunpack.c.l.b16 %v726
        %v2818 = vunpack.c.h.b16 %v726
        %v2819 = vunpack.c.l.b16 %v727
        %v2820 = vunpack.c.h.b16 %v727
        %v2821 = vunpack.c.l.b16 %v728
        %v2822 = vunpack.c.h.b16 %v728
        %v2823 = vunpack.c.l.b16 %v729
        %v2824 = vunpack.c.h.b16 %v729
        %v2825 = vunpack.c.l.b16 %v730
        %v2826 = vunpack.c.h.b16 %v730
        %v2827 = vunpack.c.l.b16 %v731
        %v2828 = vunpack.c.h.b16 %v731
        %v2829 = vunpack.c.l.b16 %v732
        %v2830 = vunpack.c.h.b16 %v732
        %v2831 = vunpack.c.l.b16 %v733
        %v2832 = vunpack.c.h.b16 %v733
        %v2833 = vunpack.c.l.b16 %v734
        %v2834 = vunpack.c.h.b16 %v734
        %v2835 = vunpack.c.l.b16 %v735
        %v2836 = vunpack.c.h.b16 %v735
        %v2837 = vunpack.c.l.b16 %v736
        %v2838 = vunpack.c.h.b16 %v736
        %v2839 = vunpack.c.l.b16 %v737
        %v2840 = vunpack.c.h.b16 %v737
        %v2841 = vunpack.c.l.b16 %v738
        %v2842 = vunpack.c.h.b16 %v738
        %v2843 = vunpack.c.l.b16 %v739
        %v2844 = vunpack.c.h.b16 %v739
        %v2845 = vunpack.c.l.b16 %v740
        %v2846 = vunpack.c.h.b16 %v740
        %v2847 = vunpack.c.l.b16 %v741
        %v2848 = vunpack.c.h.b16 %v741
        %v2849 = vunpack.c.l.b16 %v742
        %v2850 = vunpack.c.h.b16 %v742
        %v2851 = vunpack.c.l.b16 %v743
        %v2852 = vunpack.c.h.b16 %v743
        %v2853 = vunpack.c.l.b16 %v744
        %v2854 = vunpack.c.h.b16 %v744
        %v2855 = vunpack.c.l.b16 %v745
        %v2856 = vunpack.c.h.b16 %v745
        %v2857 = vunpack.c.l.b16 %v746
        %v2858 = vunpack.c.h.b16 %v746
        %v2859 = vunpack.c.l.b16 %v747
        %v2860 = vunpack.c.h.b16 %v747
        %v2861 = vunpack.c.l.b16 %v748
        %v2862 = vunpack.c.h.b16 %v748
        %v2863 = vunpack.c.l.b16 %v749
        %v2864 = vunpack.c.h.b16 %v749
        %v2865 = vunpack.c.l.b16 %v750
        %v2866 = vunpack.c.h.b16 %v750
        %v2867 = vunpack.c.l.b16 %v751
        %v2868 = vunpack.c.h.b16 %v751
        %v2869 = vunpack.c.l.b16 %v752
        %v2870 = vunpack.c.h.b16 %v752
        %v2871 = vunpack.c.l.b16 %v753
        %v2872 = vunpack.c.h.b16 %v753
        %v2873 = vunpack.c.l.b16 %v754
        %v2874 = vunpack.c.h.b16 %v754
        %v2875 = vunpack.c.l.b16 %v755
        %v2876 = vunpack.c.h.b16 %v755
        %v2877 = vunpack.c.l.b16 %v756
        %v2878 = vunpack.c.h.b16 %v756
        %v2879 = vunpack.c.l.b16 %v757
        %v2880 = vunpack.c.h.b16 %v757
        %v2881 = vunpack.c.l.b16 %v758
        %v2882 = vunpack.c.h.b16 %v758
        %v2883 = vunpack.c.l.b16 %v759
        %v2884 = vunpack.c.h.b16 %v759
        %v2885 = vunpack.c.l.b16 %v760
        %v2886 = vunpack.c.h.b16 %v760
        %v2887 = vunpack.c.l.b16 %v761
        %v2888 = vunpack.c.h.b16 %v761
        %v2889 = vunpack.c.l.b16 %v762
        %v2890 = vunpack.c.h.b16 %v762
        %v2891 = vunpack.c.l.b16 %v763
        %v2892 = vunpack.c.h.b16 %v763
        %v2893 = vunpack.c.l.b16 %v764
        %v2894 = vunpack.c.h.b16 %v764
        %v2895 = vunpack.c.l.b16 %v765
        %v2896 = vunpack.c.h.b16 %v765
        %v2897 = vunpack.c.l.b16 %v766
        %v2898 = vunpack.c.h.b16 %v766
        %v2899 = vunpack.c.l.b16 %v767
        %v2900 = vunpack.c.h.b16 %v767
        %v2901 = vunpack.c.l.b16 %v768
        %v2902 = vunpack.c.h.b16 %v768
        %v2903 = vunpack.c.l.b16 %v769
        %v2904 = vunpack.c.h.b16 %v769
        %v2905 = vunpack.c.l.b16 %v770
        %v2906 = vunpack.c.h.b16 %v770
        %v2907 = vunpack.c.l.b16 %v771
        %v2908 = vunpack.c.h.b16 %v771
        %v2909 = vunpack.c.l.b16 %v772
        %v2910 = vunpack.c.h.b16 %v772
        %v2911 = vunpack.c.l.b16 %v773
        %v2912 = vunpack.c.h.b16 %v773
        %v2913 = vunpack.c.l.b16 %v774
        %v2914 = vunpack.c.h.b16 %v774
        %v2915 = vunpack.c.l.b16 %v775
        %v2916 = vunpack.c.h.b16 %v775
        %v2917 = vunpack.c.l.b16 %v776
        %v2918 = vunpack.c.h.b16 %v776
        %v2919 = vunpack.c.l.b16 %v777
        %v2920 = vunpack.c.h.b16 %v777
        %v2921 = vunpack.c.l.b16 %v778
        %v2922 = vunpack.c.h.b16 %v778
        %v2923 = vunpack.c.l.b16 %v779
        %v2924 = vunpack.c.h.b16 %v779
        %v2925 = vunpack.c.l.b16 %v780
        %v2926 = vunpack.c.h.b16 %v780
        %v2927 = vunpack.c.l.b16 %v781
        %v2928 = vunpack.c.h.b16 %v781
        %v2929 = vunpack.c.l.b16 %v782
        %v2930 = vunpack.c.h.b16 %v782
        %v2931 = vunpack.c.l.b16 %v783
        %v2932 = vunpack.c.h.b16 %v783
        %v2933 = vunpack.c.l.b16 %v784
        %v2934 = vunpack.c.h.b16 %v784
        %v2935 = vunpack.c.l.b16 %v785
        %v2936 = vunpack.c.h.b16 %v785
        %v2937 = vunpack.c.l.b16 %v786
        %v2938 = vunpack.c.h.b16 %v786
        %v2939 = vunpack.c.l.b16 %v787
        %v2940 = vunpack.c.h.b16 %v787
        %v2941 = vunpack.c.l.b16 %v788
        %v2942 = vunpack.c.h.b16 %v788
        %v2943 = vunpack.c.l.b16 %v789
        %v2944 = vunpack.c.h.b16 %v789
        %v2945 = vunpack.c.l.b16 %v790
        %v2946 = vunpack.c.h.b16 %v790
        %v2947 = vunpack.c.l.b16 %v791
        %v2948 = vunpack.c.h.b16 %v791
        %v2949 = vunpack.c.l.b16 %v792
        %v2950 = vunpack.c.h.b16 %v792
        %v2951 = vunpack.c.l.b16 %v793
        %v2952 = vunpack.c.h.b16 %v793
        %v2953 = vunpack.c.l.b16 %v794
        %v2954 = vunpack.c.h.b16 %v794
        %v2955 = vunpack.c.l.b16 %v795
        %v2956 = vunpack.c.h.b16 %v795
        %v2957 = vunpack.c.l.b16 %v796
        %v2958 = vunpack.c.h.b16 %v796
        %v2959 = vunpack.c.l.b16 %v797
        %v2960 = vunpack.c.h.b16 %v797
        %v2961 = vunpack.c.l.b16 %v798
        %v2962 = vunpack.c.h.b16 %v798
        %v2963 = vunpack.c.l.b16 %v799
        %v2964 = vunpack.c.h.b16 %v799
        %v2965 = vunpack.c.l.b16 %v800
        %v2966 = vunpack.c.h.b16 %v800
        %v2967 = vunpack.c.l.b16 %v801
        %v2968 = vunpack.c.h.b16 %v801
        %v2969 = vunpack.c.l.b16 %v802
        %v2970 = vunpack.c.h.b16 %v802
        %v2971 = vunpack.c.l.b16 %v803
        %v2972 = vunpack.c.h.b16 %v803
        %v2973 = vunpack.c.l.b16 %v804
        %v2974 = vunpack.c.h.b16 %v804
        %v2975 = vunpack.c.l.b16 %v805
        %v2976 = vunpack.c.h.b16 %v805
        %v2977 = vunpack.c.l.b16 %v806
        %v2978 = vunpack.c.h.b16 %v806
        %v2979 = vunpack.c.l.b16 %v807
        %v2980 = vunpack.c.h.b16 %v807
        %v2981 = vunpack.c.l.b16 %v808
        %v2982 = vunpack.c.h.b16 %v808
        %v2983 = vunpack.c.l.b16 %v809
        %v2984 = vunpack.c.h.b16 %v809
        %v2985 = vunpack.c.l.b16 %v810
        %v2986 = vunpack.c.h.b16 %v810
        %v2987 = vunpack.c.l.b16 %v811
        %v2988 = vunpack.c.h.b16 %v811
        %v2989 = vunpack.c.l.b16 %v812
        %v2990 = vunpack.c.h.b16 %v812
        %v2991 = vunpack.c.l.b16 %v813
        %v2992 = vunpack.c.h.b16 %v813
        %v2993 = vunpack.c.l.b16 %v814
        %v2994 = vunpack.c.h.b16 %v814
        %v2995 = vunpack.c.l.b16 %v815
        %v2996 = vunpack.c.h.b16 %v815
        %v2997 = vunpack.c.l.b16 %v816
        %v2998 = vunpack.c.h.b16 %v816
        %v2999 = vunpack.c.l.b16 %v817
        %v3000 = vunpack.c.h.b16 %v817
        %v3001 = vunpack.c.l.b16 %v818
        %v3002 = vunpack.c.h.b16 %v818
        %v3003 = vunpack.c.l.b16 %v819
        %v3004 = vunpack.c.h.b16 %v819
        %v3005 = vunpack.c.l.b16 %v820
        %v3006 = vunpack.c.h.b16 %v820
        %v3007 = vunpack.c.l.b16 %v821
        %v3008 = vunpack.c.h.b16 %v821
        %v3009 = vunpack.c.l.b16 %v822
        %v3010 = vunpack.c.h.b16 %v822
        %v3011 = vunpack.c.l.b16 %v823
        %v3012 = vunpack.c.h.b16 %v823
        %v3013 = vunpack.c.l.b16 %v824
        %v3014 = vunpack.c.h.b16 %v824
        %v3015 = vunpack.c.l.b16 %v825
        %v3016 = vunpack.c.h.b16 %v825
        %v3017 = vunpack.c.l.b16 %v826
        %v3018 = vunpack.c.h.b16 %v826
        %v3019 = vunpack.c.l.b16 %v827
        %v3020 = vunpack.c.h.b16 %v827
        %v3021 = vunpack.c.l.b16 %v828
        %v3022 = vunpack.c.h.b16 %v828
        %v3023 = vunpack.c.l.b16 %v829
        %v3024 = vunpack.c.h.b16 %v829
        %v3025 = vunpack.c.l.b16 %v830
        %v3026 = vunpack.c.h.b16 %v830
        %v3027 = vunpack.c.l.b16 %v831
        %v3028 = vunpack.c.h.b16 %v831
        %v3029 = vunpack.c.l.b16 %v832
        %v3030 = vunpack.c.h.b16 %v832
        %v3031 = vunpack.c.l.b16 %v833
        %v3032 = vunpack.c.h.b16 %v833
        %v3033 = vunpack.c.l.b16 %v834
        %v3034 = vunpack.c.h.b16 %v834
        %v3035 = vunpack.c.l.b16 %v835
        %v3036 = vunpack.c.h.b16 %v835
        %v3037 = vunpack.c.l.b16 %v836
        %v3038 = vunpack.c.h.b16 %v836
        %v3039 = vunpack.c.l.b16 %v837
        %v3040 = vunpack.c.h.b16 %v837
        %v3041 = vunpack.c.l.b16 %v838
        %v3042 = vunpack.c.h.b16 %v838
        %v3043 = vunpack.c.l.b16 %v839
        %v3044 = vunpack.c.h.b16 %v839
        %v3045 = vunpack.c.l.b16 %v840
        %v3046 = vunpack.c.h.b16 %v840
        %v3047 = vunpack.c.l.b16 %v841
        %v3048 = vunpack.c.h.b16 %v841
        %v3049 = vunpack.c.l.b16 %v842
        %v3050 = vunpack.c.h.b16 %v842
        %v3051 = vunpack.c.l.b16 %v843
        %v3052 = vunpack.c.h.b16 %v843
        %v3053 = vunpack.c.l.b16 %v844
        %v3054 = vunpack.c.h.b16 %v844
        %v3055 = vunpack.c.l.b16 %v845
        %v3056 = vunpack.c.h.b16 %v845
        %v3057 = vunpack.c.l.b16 %v846
        %v3058 = vunpack.c.h.b16 %v846
        %v3059 = vunpack.c.l.b16 %v847
        %v3060 = vunpack.c.h.b16 %v847
        %v3061 = vunpack.c.l.b16 %v848
        %v3062 = vunpack.c.h.b16 %v848
        %v3063 = vunpack.c.l.b16 %v849
        %v3064 = vunpack.c.h.b16 %v849
        %v3065 = vunpack.c.l.b16 %v850
        %v3066 = vunpack.c.h.b16 %v850
        %v3067 = vunpack.c.l.b16 %v851
        %v3068 = vunpack.c.h.b16 %v851
        %v3069 = vunpack.c.l.b16 %v852
        %v3070 = vunpack.c.h.b16 %v852
        %v3071 = vunpack.c.l.b16 %v853
        %v3072 = vunpack.c.h.b16 %v853
        %v3073 = vunpack.c.l.b16 %v854
        %v3074 = vunpack.c.h.b16 %v854
        %v3075 = vunpack.c.l.b16 %v855
        %v3076 = vunpack.c.h.b16 %v855
        %v3077 = vunpack.c.l.b16 %v856
        %v3078 = vunpack.c.h.b16 %v856
        %v3079 = vunpack.c.l.b16 %v857
        %v3080 = vunpack.c.h.b16 %v857
        %v3081 = vunpack.c.l.b16 %v858
        %v3082 = vunpack.c.h.b16 %v858
        %v3083 = vunpack.c.l.b16 %v859
        %v3084 = vunpack.c.h.b16 %v859
        %v3085 = vunpack.c.l.b16 %v860
        %v3086 = vunpack.c.h.b16 %v860
        %v3087 = vunpack.c.l.b16 %v861
        %v3088 = vunpack.c.h.b16 %v861
        %v3089 = vunpack.c.l.b16 %v862
        %v3090 = vunpack.c.h.b16 %v862
        %v3091 = vunpack.c.l.b16 %v863
        %v3092 = vunpack.c.h.b16 %v863
        %v3093 = vunpack.c.l.b16 %v864
        %v3094 = vunpack.c.h.b16 %v864
        %v3095 = vunpack.c.l.b16 %v865
        %v3096 = vunpack.c.h.b16 %v865
        %v3097 = vunpack.c.l.b16 %v866
        %v3098 = vunpack.c.h.b16 %v866
        %v3099 = vunpack.c.l.b16 %v867
        %v3100 = vunpack.c.h.b16 %v867
        %v3101 = vunpack.c.l.b16 %v868
        %v3102 = vunpack.c.h.b16 %v868
        %v3103 = vunpack.c.l.b16 %v869
        %v3104 = vunpack.c.h.b16 %v869
        %v3105 = vunpack.c.l.b16 %v870
        %v3106 = vunpack.c.h.b16 %v870
        %v3107 = vunpack.c.l.b16 %v871
        %v3108 = vunpack.c.h.b16 %v871
        %v3109 = vunpack.c.l.b16 %v872
        %v3110 = vunpack.c.h.b16 %v872
        %v3111 = vunpack.c.l.b16 %v873
        %v3112 = vunpack.c.h.b16 %v873
        %v3113 = vunpack.c.l.b16 %v874
        %v3114 = vunpack.c.h.b16 %v874
        %v3115 = vunpack.c.l.b16 %v875
        %v3116 = vunpack.c.h.b16 %v875
        %v3117 = vunpack.c.l.b16 %v876
        %v3118 = vunpack.c.h.b16 %v876
        %v3119 = vunpack.c.l.b16 %v877
        %v3120 = vunpack.c.h.b16 %v877
        %v3121 = vunpack.c.l.b16 %v878
        %v3122 = vunpack.c.h.b16 %v878
        %v3123 = vunpack.c.l.b16 %v879
        %v3124 = vunpack.c.h.b16 %v879
        %v3125 = vunpack.c.l.b16 %v880
        %v3126 = vunpack.c.h.b16 %v880
        %v3127 = vunpack.c.l.b16 %v881
        %v3128 = vunpack.c.h.b16 %v881
        %v3129 = vunpack.c.l.b16 %v882
        %v3130 = vunpack.c.h.b16 %v882
        %v3131 = vunpack.c.l.b16 %v883
        %v3132 = vunpack.c.h.b16 %v883
        %v3133 = vunpack.c.l.b16 %v884
        %v3134 = vunpack.c.h.b16 %v884
        %v3135 = vunpack.c.l.b16 %v885
        %v3136 = vunpack.c.h.b16 %v885
        %v3137 = vunpack.c.l.b16 %v886
        %v3138 = vunpack.c.h.b16 %v886
        %v3139 = vunpack.c.l.b16 %v887
        %v3140 = vunpack.c.h.b16 %v887
        %v3141 = vunpack.c.l.b16 %v888
        %v3142 = vunpack.c.h.b16 %v888
        %v3143 = vunpack.c.l.b16 %v889
        %v3144 = vunpack.c.h.b16 %v889
        %v3145 = vunpack.c.l.b16 %v890
        %v3146 = vunpack.c.h.b16 %v890
        %v3147 = vunpack.c.l.b16 %v891
        %v3148 = vunpack.c.h.b16 %v891
        %v3149 = vunpack.c.l.b16 %v892
        %v3150 = vunpack.c.h.b16 %v892
        %v3151 = vunpack.c.l.b16 %v893
        %v3152 = vunpack.c.h.b16 %v893
        %v3153 = vunpack.c.l.b16 %v894
        %v3154 = vunpack.c.h.b16 %v894
        %v3155 = vunpack.c.l.b16 %v895
        %v3156 = vunpack.c.h.b16 %v895
        %v3157 = vunpack.c.l.b16 %v896
        %v3158 = vunpack.c.h.b16 %v896
        %v3159 = vunpack.c.l.b16 %v897
        %v3160 = vunpack.c.h.b16 %v897
        %v3161 = vunpack.c.l.b16 %v898
        %v3162 = vunpack.c.h.b16 %v898
        %v3163 = vunpack.c.l.b16 %v899
        %v3164 = vunpack.c.h.b16 %v899
        %v3165 = vunpack.c.l.b16 %v900
        %v3166 = vunpack.c.h.b16 %v900
        %v3167 = vunpack.c.l.b16 %v901
        %v3168 = vunpack.c.h.b16 %v901
        %v3169 = vunpack.c.l.b16 %v902
        %v3170 = vunpack.c.h.b16 %v902
        %v3171 = vunpack.c.l.b16 %v903
        %v3172 = vunpack.c.h.b16 %v903
        %v3173 = vunpack.c.l.b16 %v904
        %v3174 = vunpack.c.h.b16 %v904
        %v3175 = vunpack.c.l.b16 %v905
        %v3176 = vunpack.c.h.b16 %v905
        %v3177 = vunpack.c.l.b16 %v906
        %v3178 = vunpack.c.h.b16 %v906
        %v3179 = vunpack.c.l.b16 %v907
        %v3180 = vunpack.c.h.b16 %v907
        %v3181 = vunpack.c.l.b16 %v908
        %v3182 = vunpack.c.h.b16 %v908
        %v3183 = vunpack.c.l.b16 %v909
        %v3184 = vunpack.c.h.b16 %v909
        %v3185 = vunpack.c.l.b16 %v910
        %v3186 = vunpack.c.h.b16 %v910
        %v3187 = vunpack.c.l.b16 %v911
        %v3188 = vunpack.c.h.b16 %v911
        %v3189 = vunpack.c.l.b16 %v912
        %v3190 = vunpack.c.h.b16 %v912
        %v3191 = vunpack.c.l.b16 %v913
        %v3192 = vunpack.c.h.b16 %v913
        %v3193 = vunpack.c.l.b16 %v914
        %v3194 = vunpack.c.h.b16 %v914
        %v3195 = vunpack.c.l.b16 %v915
        %v3196 = vunpack.c.h.b16 %v915
        %v3197 = vunpack.c.l.b16 %v916
        %v3198 = vunpack.c.h.b16 %v916
        %v3199 = vunpack.c.l.b16 %v917
        %v3200 = vunpack.c.h.b16 %v917
        %v3201 = vunpack.c.l.b16 %v918
        %v3202 = vunpack.c.h.b16 %v918
        %v3203 = vunpack.c.l.b16 %v919
        %v3204 = vunpack.c.h.b16 %v919
        %v3205 = vunpack.c.l.b16 %v920
        %v3206 = vunpack.c.h.b16 %v920
        %v3207 = vunpack.c.l.b16 %v921
        %v3208 = vunpack.c.h.b16 %v921
        %v3209 = vunpack.c.l.b16 %v922
        %v3210 = vunpack.c.h.b16 %v922
        %v3211 = vunpack.c.l.b16 %v923
        %v3212 = vunpack.c.h.b16 %v923
        %v3213 = vunpack.c.l.b16 %v924
        %v3214 = vunpack.c.h.b16 %v924
        %v3215 = vunpack.c.l.b16 %v925
        %v3216 = vunpack.c.h.b16 %v925
        %v3217 = vunpack.c.l.b16 %v926
        %v3218 = vunpack.c.h.b16 %v926
        %v3219 = vunpack.c.l.b16 %v927
        %v3220 = vunpack.c.h.b16 %v927
        %v3221 = vunpack.c.l.b16 %v928
        %v3222 = vunpack.c.h.b16 %v928
        %v3223 = vunpack.c.l.b16 %v929
        %v3224 = vunpack.c.h.b16 %v929
        %v3225 = vunpack.c.l.b16 %v930
        %v3226 = vunpack.c.h.b16 %v930
        %v3227 = vunpack.c.l.b16 %v931
        %v3228 = vunpack.c.h.b16 %v931
        %v3229 = vunpack.c.l.b16 %v932
        %v3230 = vunpack.c.h.b16 %v932
        %v3231 = vunpack.c.l.b16 %v933
        %v3232 = vunpack.c.h.b16 %v933
        %v3233 = vunpack.c.l.b16 %v934
        %v3234 = vunpack.c.h.b16 %v934
        %v3235 = vunpack.c.l.b16 %v935
        %v3236 = vunpack.c.h.b16 %v935
        %v3237 = vunpack.c.l.b16 %v936
        %v3238 = vunpack.c.h.b16 %v936
        %v3239 = vunpack.c.l.b16 %v937
        %v3240 = vunpack.c.h.b16 %v937
        %v3241 = vunpack.c.l.b16 %v938
        %v3242 = vunpack.c.h.b16 %v938
        %v3243 = vunpack.c.l.b16 %v939
        %v3244 = vunpack.c.h.b16 %v939
        %v3245 = vunpack.c.l.b16 %v940
        %v3246 = vunpack.c.h.b16 %v940
        %v3247 = vunpack.c.l.b16 %v941
        %v3248 = vunpack.c.h.b16 %v941
        %v3249 = vunpack.c.l.b16 %v942
        %v3250 = vunpack.c.h.b16 %v942
        %v3251 = vunpack.c.l.b16 %v943
        %v3252 = vunpack.c.h.b16 %v943
        %v3253 = vunpack.c.l.b16 %v944
        %v3254 = vunpack.c.h.b16 %v944
        %v3255 = vunpack.c.l.b16 %v945
        %v3256 = vunpack.c.h.b16 %v945
        %v3257 = vunpack.c.l.b16 %v946
        %v3258 = vunpack.c.h.b16 %v946
        %v3259 = vunpack.c.l.b16 %v947
        %v3260 = vunpack.c.h.b16 %v947
        %v3261 = vunpack.c.l.b16 %v948
        %v3262 = vunpack.c.h.b16 %v948
        %v3263 = vunpack.c.l.b16 %v949
        %v3264 = vunpack.c.h.b16 %v949
        %v3265 = vunpack.c.l.b16 %v950
        %v3266 = vunpack.c.h.b16 %v950
        %v3267 = vunpack.c.l.b16 %v951
        %v3268 = vunpack.c.h.b16 %v951
        %v3269 = vunpack.c.l.b16 %v952
        %v3270 = vunpack.c.h.b16 %v952
        %v3271 = vunpack.c.l.b16 %v953
        %v3272 = vunpack.c.h.b16 %v953
        %v3273 = vunpack.c.l.b16 %v954
        %v3274 = vunpack.c.h.b16 %v954
        %v3275 = vunpack.c.l.b16 %v955
        %v3276 = vunpack.c.h.b16 %v955
        %v3277 = vunpack.c.l.b16 %v956
        %v3278 = vunpack.c.h.b16 %v956
        %v3279 = vunpack.c.l.b16 %v957
        %v3280 = vunpack.c.h.b16 %v957
        %v3281 = vunpack.c.l.b16 %v958
        %v3282 = vunpack.c.h.b16 %v958
        %v3283 = vunpack.c.l.b16 %v959
        %v3284 = vunpack.c.h.b16 %v959
        %v3285 = vunpack.c.l.b16 %v960
        %v3286 = vunpack.c.h.b16 %v960
        %v3287 = vunpack.c.l.b16 %v961
        %v3288 = vunpack.c.h.b16 %v961
        %v3289 = vunpack.c.l.b16 %v962
        %v3290 = vunpack.c.h.b16 %v962
        %v3291 = vunpack.c.l.b16 %v963
        %v3292 = vunpack.c.h.b16 %v963
        %v3293 = vunpack.c.l.b16 %v964
        %v3294 = vunpack.c.h.b16 %v964
        %v3295 = vunpack.c.l.b16 %v965
        %v3296 = vunpack.c.h.b16 %v965
        %v3297 = vunpack.c.l.b16 %v966
        %v3298 = vunpack.c.h.b16 %v966
        %v3299 = vunpack.c.l.b16 %v967
        %v3300 = vunpack.c.h.b16 %v967
        %v3301 = vunpack.c.l.b16 %v968
        %v3302 = vunpack.c.h.b16 %v968
        %v3303 = vunpack.c.l.b16 %v969
        %v3304 = vunpack.c.h.b16 %v969
        %v3305 = vunpack.c.l.b16 %v970
        %v3306 = vunpack.c.h.b16 %v970
        %v3307 = vunpack.c.l.b16 %v971
        %v3308 = vunpack.c.h.b16 %v971
        %v3309 = vunpack.c.l.b16 %v972
        %v3310 = vunpack.c.h.b16 %v972
        %v3311 = vunpack.c.l.b16 %v973
        %v3312 = vunpack.c.h.b16 %v973
        %v3313 = vunpack.c.l.b16 %v974
        %v3314 = vunpack.c.h.b16 %v974
        %v3315 = vunpack.c.l.b16 %v975
        %v3316 = vunpack.c.h.b16 %v975
        %v3317 = vunpack.c.l.b16 %v976
        %v3318 = vunpack.c.h.b16 %v976
        %v3319 = vunpack.c.l.b16 %v977
        %v3320 = vunpack.c.h.b16 %v977
        %v3321 = vunpack.c.l.b16 %v978
        %v3322 = vunpack.c.h.b16 %v978
        %v3323 = vunpack.c.l.b16 %v979
        %v3324 = vunpack.c.h.b16 %v979
        %v3325 = vunpack.c.l.b16 %v980
        %v3326 = vunpack.c.h.b16 %v980
        %v3327 = vunpack.c.l.b16 %v981
        %v3328 = vunpack.c.h.b16 %v981
        %v3329 = vunpack.c.l.b16 %v982
        %v3330 = vunpack.c.h.b16 %v982
        %v3331 = vunpack.c.l.b16 %v983
        %v3332 = vunpack.c.h.b16 %v983
        %v3333 = vunpack.c.l.b16 %v984
        %v3334 = vunpack.c.h.b16 %v984
        %v3335 = vunpack.c.l.b16 %v985
        %v3336 = vunpack.c.h.b16 %v985
        %v3337 = vunpack.c.l.b16 %v986
        %v3338 = vunpack.c.h.b16 %v986
        %v3339 = vunpack.c.l.b16 %v987
        %v3340 = vunpack.c.h.b16 %v987
        %v3341 = vunpack.c.l.b16 %v988
        %v3342 = vunpack.c.h.b16 %v988
        %v3343 = vunpack.c.l.b16 %v989
        %v3344 = vunpack.c.h.b16 %v989
        %v3345 = vunpack.c.l.b16 %v990
        %v3346 = vunpack.c.h.b16 %v990
        %v3347 = vunpack.c.l.b16 %v991
        %v3348 = vunpack.c.h.b16 %v991
        %v3349 = vunpack.c.l.b16 %v992
        %v3350 = vunpack.c.h.b16 %v992
        %v3351 = vunpack.c.l.b16 %v993
        %v3352 = vunpack.c.h.b16 %v993
        %v3353 = vunpack.c.l.b16 %v994
        %v3354 = vunpack.c.h.b16 %v994
        %v3355 = vunpack.c.l.b16 %v995
        %v3356 = vunpack.c.h.b16 %v995
        %v3357 = vunpack.c.l.b16 %v996
        %v3358 = vunpack.c.h.b16 %v996
        %v3359 = vunpack.c.l.b16 %v997
        %v3360 = vunpack.c.h.b16 %v997
        %v3361 = vunpack.c.l.b16 %v998
        %v3362 = vunpack.c.h.b16 %v998
        %v3363 = vunpack.c.l.b16 %v999
        %v3364 = vunpack.c.h.b16 %v999
        %v3365 = vunpack.c.l.b16 %v1000
        %v3366 = vunpack.c.h.b16 %v1000
        %v3367 = vunpack.c.l.b16 %v1001
        %v3368 = vunpack.c.h.b16 %v1001
        %v3369 = vunpack.c.l.b16 %v1002
        %v3370 = vunpack.c.h.b16 %v1002
        %v3371 = vunpack.c.l.b16 %v1003
        %v3372 = vunpack.c.h.b16 %v1003
        %v3373 = vunpack.c.l.b16 %v1004
        %v3374 = vunpack.c.h.b16 %v1004
        %v3375 = vunpack.c.l.b16 %v1005
        %v3376 = vunpack.c.h.b16 %v1005
        %v3377 = vunpack.c.l.b16 %v1006
        %v3378 = vunpack.c.h.b16 %v1006
        %v3379 = vunpack.c.l.b16 %v1007
        %v3380 = vunpack.c.h.b16 %v1007
        %v3381 = vunpack.c.l.b16 %v1008
        %v3382 = vunpack.c.h.b16 %v1008
        %v3383 = vunpack.c.l.b16 %v1009
        %v3384 = vunpack.c.h.b16 %v1009
        %v3385 = vunpack.c.l.b16 %v1010
        %v3386 = vunpack.c.h.b16 %v1010
        %v3387 = vpack.c.b16 %v1835, %v1819
        %v3388 = vpack.c.b16 %v1836, %v1820
        %v3389 = vpack.c.b16 %v1837, %v1821
        %v3390 = vpack.c.b16 %v1838, %v1822
        %v3391 = vpack.c.b16 %v1839, %v1823
        %v3392 = vpack.c.b16 %v1840, %v1824
        %v3393 = vpack.c.b16 %v1841, %v1825
        %v3394 = vpack.c.b16 %v1842, %v1826
        %v3395 = vpack.c.b16 %v1843, %v1827
        %v3396 = vpack.c.b16 %v1844, %v1828
        %v3397 = vpack.c.b16 %v1845, %v1829
        %v3398 = vpack.c.b16 %v1846, %v1830
        %v3399 = vpack.c.b16 %v1847, %v1831
        %v3400 = vpack.c.b16 %v1848, %v1832
        %v3401 = vpack.c.b16 %v1849, %v1833
        %v3402 = vpack.c.b16 %v1850, %v1834
        %v3403 = vpack.c.b16 %v1867, %v1851
        %v3404 = vpack.c.b16 %v1868, %v1852
        %v3405 = vpack.c.b16 %v1869, %v1853
        %v3406 = vpack.c.b16 %v1870, %v1854
        %v3407 = vpack.c.b16 %v1871, %v1855
        %v3408 = vpack.c.b16 %v1872, %v1856
        %v3409 = vpack.c.b16 %v1873, %v1857
        %v3410 = vpack.c.b16 %v1874, %v1858
        %v3411 = vpack.c.b16 %v1875, %v1859
        %v3412 = vpack.c.b16 %v1876, %v1860
        %v3413 = vpack.c.b16 %v1877, %v1861
        %v3414 = vpack.c.b16 %v1878, %v1862
        %v3415 = vpack.c.b16 %v1879, %v1863
        %v3416 = vpack.c.b16 %v1880, %v1864
        %v3417 = vpack.c.b16 %v1881, %v1865
        %v3418 = vpack.c.b16 %v1882, %v1866
        %v3419 = vpack.c.b16 %v1899, %v1883
        %v3420 = vpack.c.b16 %v1900, %v1884
        %v3421 = vpack.c.b16 %v1901, %v1885
        %v3422 = vpack.c.b16 %v1902, %v1886
        %v3423 = vpack.c.b16 %v1903, %v1887
        %v3424 = vpack.c.b16 %v1904, %v1888
        %v3425 = vpack.c.b16 %v1905, %v1889
        %v3426 = vpack.c.b16 %v1906, %v1890
        %v3427 = vpack.c.b16 %v1907, %v1891
        %v3428 = vpack.c.b16 %v1908, %v1892
        %v3429 = vpack.c.b16 %v1909, %v1893
        %v3430 = vpack.c.b16 %v1910, %v1894
        %v3431 = vpack.c.b16 %v1911, %v1895
        %v3432 = vpack.c.b16 %v1912, %v1896
        %v3433 = vpack.c.b16 %v1913, %v1897
        %v3434 = vpack.c.b16 %v1914, %v1898
        %v3435 = vpack.c.b16 %v1931, %v1915
        %v3436 = vpack.c.b16 %v1932, %v1916
        %v3437 = vpack.c.b16 %v1933, %v1917
        %v3438 = vpack.c.b16 %v1934, %v1918
        %v3439 = vpack.c.b16 %v1935, %v1919
        %v3440 = vpack.c.b16 %v1936, %v1920
        %v3441 = vpack.c.b16 %v1937, %v1921
        %v3442 = vpack.c.b16 %v1938, %v1922
        %v3443 = vpack.c.b16 %v1939, %v1923
        %v3444 = vpack.c.b16 %v1940, %v1924
        %v3445 = vpack.c.b16 %v1941, %v1925
        %v3446 = vpack.c.b16 %v1942, %v1926
        %v3447 = vpack.c.b16 %v1943, %v1927
        %v3448 = vpack.c.b16 %v1944, %v1928
        %v3449 = vpack.c.b16 %v1945, %v1929
        %v3450 = vpack.c.b16 %v1946, %v1930
        %v3451 = vpack.c.b16 %v1963, %v1947
        %v3452 = vpack.c.b16 %v1964, %v1948
        %v3453 = vpack.c.b16 %v1965, %v1949
        %v3454 = vpack.c.b16 %v1966, %v1950
        %v3455 = vpack.c.b16 %v1967, %v1951
        %v3456 = vpack.c.b16 %v1968, %v1952
        %v3457 = vpack.c.b16 %v1969, %v1953
        %v3458 = vpack.c.b16 %v1970, %v1954
        %v3459 = vpack.c.b16 %v1971, %v1955
        %v3460 = vpack.c.b16 %v1972, %v1956
        %v3461 = vpack.c.b16 %v1973, %v1957
        %v3462 = vpack.c.b16 %v1974, %v1958
        %v3463 = vpack.c.b16 %v1975, %v1959
        %v3464 = vpack.c.b16 %v1976, %v1960
        %v3465 = vpack.c.b16 %v1977, %v1961
        %v3466 = vpack.c.b16 %v1978, %v1962
        %v3467 = vpack.c.b16 %v1995, %v1979
        %v3468 = vpack.c.b16 %v1996, %v1980
        %v3469 = vpack.c.b16 %v1997, %v1981
        %v3470 = vpack.c.b16 %v1998, %v1982
        %v3471 = vpack.c.b16 %v1999, %v1983
        %v3472 = vpack.c.b16 %v2000, %v1984
        %v3473 = vpack.c.b16 %v2001, %v1985
        %v3474 = vpack.c.b16 %v2002, %v1986
        %v3475 = vpack.c.b16 %v2003, %v1987
        %v3476 = vpack.c.b16 %v2004, %v1988
        %v3477 = vpack.c.b16 %v2005, %v1989
        %v3478 = vpack.c.b16 %v2006, %v1990
        %v3479 = vpack.c.b16 %v2007, %v1991
        %v3480 = vpack.c.b16 %v2008, %v1992
        %v3481 = vpack.c.b16 %v2009, %v1993
        %v3482 = vpack.c.b16 %v2010, %v1994
        %v3483 = vpack.c.b16 %v2027, %v2011
        %v3484 = vpack.c.b16 %v2028, %v2012
        %v3485 = vpack.c.b16 %v2029, %v2013
        %v3486 = vpack.c.b16 %v2030, %v2014
        %v3487 = vpack.c.b16 %v2031, %v2015
        %v3488 = vpack.c.b16 %v2032, %v2016
        %v3489 = vpack.c.b16 %v2033, %v2017
        %v3490 = vpack.c.b16 %v2034, %v2018
        %v3491 = vpack.c.b16 %v2035, %v2019
        %v3492 = vpack.c.b16 %v2036, %v2020
        %v3493 = vpack.c.b16 %v2037, %v2021
        %v3494 = vpack.c.b16 %v2038, %v2022
        %v3495 = vpack.c.b16 %v2039, %v2023
        %v3496 = vpack.c.b16 %v2040, %v2024
        %v3497 = vpack.c.b16 %v2041, %v2025
        %v3498 = vpack.c.b16 %v2042, %v2026
        %v3499 = vpack.c.b16 %v2059, %v2043
        %v3500 = vpack.c.b16 %v2060, %v2044
        %v3501 = vpack.c.b16 %v2061, %v2045
        %v3502 = vpack.c.b16 %v2062, %v2046
        %v3503 = vpack.c.b16 %v2063, %v2047
        %v3504 = vpack.c.b16 %v2064, %v2048
        %v3505 = vpack.c.b16 %v2065, %v2049
        %v3506 = vpack.c.b16 %v2066, %v2050
        %v3507 = vpack.c.b16 %v2067, %v2051
        %v3508 = vpack.c.b16 %v2068, %v2052
        %v3509 = vpack.c.b16 %v2069, %v2053
        %v3510 = vpack.c.b16 %v2070, %v2054
        %v3511 = vpack.c.b16 %v2071, %v2055
        %v3512 = vpack.c.b16 %v2072, %v2056
        %v3513 = vpack.c.b16 %v2073, %v2057
        %v3514 = vpack.c.b16 %v2074, %v2058
        %v3515 = vpack.c.b16 %v2091, %v2075
        %v3516 = vpack.c.b16 %v2092, %v2076
        %v3517 = vpack.c.b16 %v2093, %v2077
        %v3518 = vpack.c.b16 %v2094, %v2078
        %v3519 = vpack.c.b16 %v2095, %v2079
        %v3520 = vpack.c.b16 %v2096, %v2080
        %v3521 = vpack.c.b16 %v2097, %v2081
        %v3522 = vpack.c.b16 %v2098, %v2082
        %v3523 = vpack.c.b16 %v2099, %v2083
        %v3524 = vpack.c.b16 %v2100, %v2084
        %v3525 = vpack.c.b16 %v2101, %v2085
        %v3526 = vpack.c.b16 %v2102, %v2086
        %v3527 = vpack.c.b16 %v2103, %v2087
        %v3528 = vpack.c.b16 %v2104, %v2088
        %v3529 = vpack.c.b16 %v2105, %v2089
        %v3530 = vpack.c.b16 %v2106, %v2090
        %v3531 = vpack.c.b16 %v2123, %v2107
        %v3532 = vpack.c.b16 %v2124, %v2108
        %v3533 = vpack.c.b16 %v2125, %v2109
        %v3534 = vpack.c.b16 %v2126, %v2110
        %v3535 = vpack.c.b16 %v2127, %v2111
        %v3536 = vpack.c.b16 %v2128, %v2112
        %v3537 = vpack.c.b16 %v2129, %v2113
        %v3538 = vpack.c.b16 %v2130, %v2114
        %v3539 = vpack.c.b16 %v2131, %v2115
        %v3540 = vpack.c.b16 %v2132, %v2116
        %v3541 = vpack.c.b16 %v2133, %v2117
        %v3542 = vpack.c.b16 %v2134, %v2118
        %v3543 = vpack.c.b16 %v2135, %v2119
        %v3544 = vpack.c.b16 %v2136, %v2120
        %v3545 = vpack.c.b16 %v2137, %v2121
        %v3546 = vpack.c.b16 %v2138, %v2122
        %v3547 = vpack.c.b16 %v2155, %v2139
        %v3548 = vpack.c.b16 %v2156, %v2140
        %v3549 = vpack.c.b16 %v2157, %v2141
        %v3550 = vpack.c.b16 %v2158, %v2142
        %v3551 = vpack.c.b16 %v2159, %v2143
        %v3552 = vpack.c.b16 %v2160, %v2144
        %v3553 = vpack.c.b16 %v2161, %v2145
        %v3554 = vpack.c.b16 %v2162, %v2146
        %v3555 = vpack.c.b16 %v2163, %v2147
        %v3556 = vpack.c.b16 %v2164, %v2148
        %v3557 = vpack.c.b16 %v2165, %v2149
        %v3558 = vpack.c.b16 %v2166, %v2150
        %v3559 = vpack.c.b16 %v2167, %v2151
        %v3560 = vpack.c.b16 %v2168, %v2152
        %v3561 = vpack.c.b16 %v2169, %v2153
        %v3562 = vpack.c.b16 %v2170, %v2154
        %v3563 = vpack.c.b16 %v2187, %v2171
        %v3564 = vpack.c.b16 %v2188, %v2172
        %v3565 = vpack.c.b16 %v2189, %v2173
        %v3566 = vpack.c.b16 %v2190, %v2174
        %v3567 = vpack.c.b16 %v2191, %v2175
        %v3568 = vpack.c.b16 %v2192, %v2176
        %v3569 = vpack.c.b16 %v2193, %v2177
        %v3570 = vpack.c.b16 %v2194, %v2178
        %v3571 = vpack.c.b16 %v2195, %v2179
        %v3572 = vpack.c.b16 %v2196, %v2180
        %v3573 = vpack.c.b16 %v2197, %v2181
        %v3574 = vpack.c.b16 %v2198, %v2182
        %v3575 = vpack.c.b16 %v2199, %v2183
        %v3576 = vpack.c.b16 %v2200, %v2184
        %v3577 = vpack.c.b16 %v2201, %v2185
        %v3578 = vpack.c.b16 %v2202, %v2186
        %v3579 = vpack.c.b16 %v2219, %v2203
        %v3580 = vpack.c.b16 %v2220, %v2204
        %v3581 = vpack.c.b16 %v2221, %v2205
        %v3582 = vpack.c.b16 %v2222, %v2206
        %v3583 = vpack.c.b16 %v2223, %v2207
        %v3584 = vpack.c.b16 %v2224, %v2208
        %v3585 = vpack.c.b16 %v2225, %v2209
        %v3586 = vpack.c.b16 %v2226, %v2210
        %v3587 = vpack.c.b16 %v2227, %v2211
        %v3588 = vpack.c.b16 %v2228, %v2212
        %v3589 = vpack.c.b16 %v2229, %v2213
        %v3590 = vpack.c.b16 %v2230, %v2214
        %v3591 = vpack.c.b16 %v2231, %v2215
        %v3592 = vpack.c.b16 %v2232, %v2216
        %v3593 = vpack.c.b16 %v2233, %v2217
        %v3594 = vpack.c.b16 %v2234, %v2218
        %v3595 = vpack.c.b16 %v2251, %v2235
        %v3596 = vpack.c.b16 %v2252, %v2236
        %v3597 = vpack.c.b16 %v2253, %v2237
        %v3598 = vpack.c.b16 %v2254, %v2238
        %v3599 = vpack.c.b16 %v2255, %v2239
        %v3600 = vpack.c.b16 %v2256, %v2240
        %v3601 = vpack.c.b16 %v2257, %v2241
        %v3602 = vpack.c.b16 %v2258, %v2242
        %v3603 = vpack.c.b16 %v2259, %v2243
        %v3604 = vpack.c.b16 %v2260, %v2244
        %v3605 = vpack.c.b16 %v2261, %v2245
        %v3606 = vpack.c.b16 %v2262, %v2246
        %v3607 = vpack.c.b16 %v2263, %v2247
        %v3608 = vpack.c.b16 %v2264, %v2248
        %v3609 = vpack.c.b16 %v2265, %v2249
        %v3610 = vpack.c.b16 %v2266, %v2250
        %v3611 = vpack.c.b16 %v2283, %v2267
        %v3612 = vpack.c.b16 %v2284, %v2268
        %v3613 = vpack.c.b16 %v2285, %v2269
        %v3614 = vpack.c.b16 %v2286, %v2270
        %v3615 = vpack.c.b16 %v2287, %v2271
        %v3616 = vpack.c.b16 %v2288, %v2272
        %v3617 = vpack.c.b16 %v2289, %v2273
        %v3618 = vpack.c.b16 %v2290, %v2274
        %v3619 = vpack.c.b16 %v2291, %v2275
        %v3620 = vpack.c.b16 %v2292, %v2276
        %v3621 = vpack.c.b16 %v2293, %v2277
        %v3622 = vpack.c.b16 %v2294, %v2278
        %v3623 = vpack.c.b16 %v2295, %v2279
        %v3624 = vpack.c.b16 %v2296, %v2280
        %v3625 = vpack.c.b16 %v2297, %v2281
        %v3626 = vpack.c.b16 %v2298, %v2282
        %v3627 = vpack.c.b16 %v2315, %v2299
        %v3628 = vpack.c.b16 %v2316, %v2300
        %v3629 = vpack.c.b16 %v2317, %v2301
        %v3630 = vpack.c.b16 %v2318, %v2302
        %v3631 = vpack.c.b16 %v2319, %v2303
        %v3632 = vpack.c.b16 %v2320, %v2304
        %v3633 = vpack.c.b16 %v2321, %v2305
        %v3634 = vpack.c.b16 %v2322, %v2306
        %v3635 = vpack.c.b16 %v2323, %v2307
        %v3636 = vpack.c.b16 %v2324, %v2308
        %v3637 = vpack.c.b16 %v2325, %v2309
        %v3638 = vpack.c.b16 %v2326, %v2310
        %v3639 = vpack.c.b16 %v2327, %v2311
        %v3640 = vpack.c.b16 %v2328, %v2312
        %v3641 = vpack.c.b16 %v2329, %v2313
        %v3642 = vpack.c.b16 %v2330, %v2314
        %v3643 = vpack.c.b16 %v2347, %v2331
        %v3644 = vpack.c.b16 %v2348, %v2332
        %v3645 = vpack.c.b16 %v2349, %v2333
        %v3646 = vpack.c.b16 %v2350, %v2334
        %v3647 = vpack.c.b16 %v2351, %v2335
        %v3648 = vpack.c.b16 %v2352, %v2336
        %v3649 = vpack.c.b16 %v2353, %v2337
        %v3650 = vpack.c.b16 %v2354, %v2338
        %v3651 = vpack.c.b16 %v2355, %v2339
        %v3652 = vpack.c.b16 %v2356, %v2340
        %v3653 = vpack.c.b16 %v2357, %v2341
        %v3654 = vpack.c.b16 %v2358, %v2342
        %v3655 = vpack.c.b16 %v2359, %v2343
        %v3656 = vpack.c.b16 %v2360, %v2344
        %v3657 = vpack.c.b16 %v2361, %v2345
        %v3658 = vpack.c.b16 %v2362, %v2346
        %v3659 = vpack.c.b16 %v2379, %v2363
        %v3660 = vpack.c.b16 %v2380, %v2364
        %v3661 = vpack.c.b16 %v2381, %v2365
        %v3662 = vpack.c.b16 %v2382, %v2366
        %v3663 = vpack.c.b16 %v2383, %v2367
        %v3664 = vpack.c.b16 %v2384, %v2368
        %v3665 = vpack.c.b16 %v2385, %v2369
        %v3666 = vpack.c.b16 %v2386, %v2370
        %v3667 = vpack.c.b16 %v2387, %v2371
        %v3668 = vpack.c.b16 %v2388, %v2372
        %v3669 = vpack.c.b16 %v2389, %v2373
        %v3670 = vpack.c.b16 %v2390, %v2374
        %v3671 = vpack.c.b16 %v2391, %v2375
        %v3672 = vpack.c.b16 %v2392, %v2376
        %v3673 = vpack.c.b16 %v2393, %v2377
        %v3674 = vpack.c.b16 %v2394, %v2378
        %v3675 = vpack.c.b16 %v2411, %v2395
        %v3676 = vpack.c.b16 %v2412, %v2396
        %v3677 = vpack.c.b16 %v2413, %v2397
        %v3678 = vpack.c.b16 %v2414, %v2398
        %v3679 = vpack.c.b16 %v2415, %v2399
        %v3680 = vpack.c.b16 %v2416, %v2400
        %v3681 = vpack.c.b16 %v2417, %v2401
        %v3682 = vpack.c.b16 %v2418, %v2402
        %v3683 = vpack.c.b16 %v2419, %v2403
        %v3684 = vpack.c.b16 %v2420, %v2404
        %v3685 = vpack.c.b16 %v2421, %v2405
        %v3686 = vpack.c.b16 %v2422, %v2406
        %v3687 = vpack.c.b16 %v2423, %v2407
        %v3688 = vpack.c.b16 %v2424, %v2408
        %v3689 = vpack.c.b16 %v2425, %v2409
        %v3690 = vpack.c.b16 %v2426, %v2410
        %v3691 = vpack.c.b16 %v2443, %v2427
        %v3692 = vpack.c.b16 %v2444, %v2428
        %v3693 = vpack.c.b16 %v2445, %v2429
        %v3694 = vpack.c.b16 %v2446, %v2430
        %v3695 = vpack.c.b16 %v2447, %v2431
        %v3696 = vpack.c.b16 %v2448, %v2432
        %v3697 = vpack.c.b16 %v2449, %v2433
        %v3698 = vpack.c.b16 %v2450, %v2434
        %v3699 = vpack.c.b16 %v2451, %v2435
        %v3700 = vpack.c.b16 %v2452, %v2436
        %v3701 = vpack.c.b16 %v2453, %v2437
        %v3702 = vpack.c.b16 %v2454, %v2438
        %v3703 = vpack.c.b16 %v2455, %v2439
        %v3704 = vpack.c.b16 %v2456, %v2440
        %v3705 = vpack.c.b16 %v2457, %v2441
        %v3706 = vpack.c.b16 %v2458, %v2442
        %v3707 = vpack.c.b16 %v2475, %v2459
        %v3708 = vpack.c.b16 %v2476, %v2460
        %v3709 = vpack.c.b16 %v2477, %v2461
        %v3710 = vpack.c.b16 %v2478, %v2462
        %v3711 = vpack.c.b16 %v2479, %v2463
        %v3712 = vpack.c.b16 %v2480, %v2464
        %v3713 = vpack.c.b16 %v2481, %v2465
        %v3714 = vpack.c.b16 %v2482, %v2466
        %v3715 = vpack.c.b16 %v2483, %v2467
        %v3716 = vpack.c.b16 %v2484, %v2468
        %v3717 = vpack.c.b16 %v2485, %v2469
        %v3718 = vpack.c.b16 %v2486, %v2470
        %v3719 = vpack.c.b16 %v2487, %v2471
        %v3720 = vpack.c.b16 %v2488, %v2472
        %v3721 = vpack.c.b16 %v2489, %v2473
        %v3722 = vpack.c.b16 %v2490, %v2474
        %v3723 = vpack.c.b16 %v2507, %v2491
        %v3724 = vpack.c.b16 %v2508, %v2492
        %v3725 = vpack.c.b16 %v2509, %v2493
        %v3726 = vpack.c.b16 %v2510, %v2494
        %v3727 = vpack.c.b16 %v2511, %v2495
        %v3728 = vpack.c.b16 %v2512, %v2496
        %v3729 = vpack.c.b16 %v2513, %v2497
        %v3730 = vpack.c.b16 %v2514, %v2498
        %v3731 = vpack.c.b16 %v2515, %v2499
        %v3732 = vpack.c.b16 %v2516, %v2500
        %v3733 = vpack.c.b16 %v2517, %v2501
        %v3734 = vpack.c.b16 %v2518, %v2502
        %v3735 = vpack.c.b16 %v2519, %v2503
        %v3736 = vpack.c.b16 %v2520, %v2504
        %v3737 = vpack.c.b16 %v2521, %v2505
        %v3738 = vpack.c.b16 %v2522, %v2506
        %v3739 = vpack.c.b16 %v2539, %v2523
        %v3740 = vpack.c.b16 %v2540, %v2524
        %v3741 = vpack.c.b16 %v2541, %v2525
        %v3742 = vpack.c.b16 %v2542, %v2526
        %v3743 = vpack.c.b16 %v2543, %v2527
        %v3744 = vpack.c.b16 %v2544, %v2528
        %v3745 = vpack.c.b16 %v2545, %v2529
        %v3746 = vpack.c.b16 %v2546, %v2530
        %v3747 = vpack.c.b16 %v2547, %v2531
        %v3748 = vpack.c.b16 %v2548, %v2532
        %v3749 = vpack.c.b16 %v2549, %v2533
        %v3750 = vpack.c.b16 %v2550, %v2534
        %v3751 = vpack.c.b16 %v2551, %v2535
        %v3752 = vpack.c.b16 %v2552, %v2536
        %v3753 = vpack.c.b16 %v2553, %v2537
        %v3754 = vpack.c.b16 %v2554, %v2538
        %v3755 = vpack.c.b16 %v2571, %v2555
        %v3756 = vpack.c.b16 %v2572, %v2556
        %v3757 = vpack.c.b16 %v2573, %v2557
        %v3758 = vpack.c.b16 %v2574, %v2558
        %v3759 = vpack.c.b16 %v2575, %v2559
        %v3760 = vpack.c.b16 %v2576, %v2560
        %v3761 = vpack.c.b16 %v2577, %v2561
        %v3762 = vpack.c.b16 %v2578, %v2562
        %v3763 = vpack.c.b16 %v2579, %v2563
        %v3764 = vpack.c.b16 %v2580, %v2564
        %v3765 = vpack.c.b16 %v2581, %v2565
        %v3766 = vpack.c.b16 %v2582, %v2566
        %v3767 = vpack.c.b16 %v2583, %v2567
        %v3768 = vpack.c.b16 %v2584, %v2568
        %v3769 = vpack.c.b16 %v2585, %v2569
        %v3770 = vpack.c.b16 %v2586, %v2570
        %v3771 = vpack.c.b16 %v2603, %v2587
        %v3772 = vpack.c.b16 %v2604, %v2588
        %v3773 = vpack.c.b16 %v2605, %v2589
        %v3774 = vpack.c.b16 %v2606, %v2590
        %v3775 = vpack.c.b16 %v2607, %v2591
        %v3776 = vpack.c.b16 %v2608, %v2592
        %v3777 = vpack.c.b16 %v2609, %v2593
        %v3778 = vpack.c.b16 %v2610, %v2594
        %v3779 = vpack.c.b16 %v2611, %v2595
        %v3780 = vpack.c.b16 %v2612, %v2596
        %v3781 = vpack.c.b16 %v2613, %v2597
        %v3782 = vpack.c.b16 %v2614, %v2598
        %v3783 = vpack.c.b16 %v2615, %v2599
        %v3784 = vpack.c.b16 %v2616, %v2600
        %v3785 = vpack.c.b16 %v2617, %v2601
        %v3786 = vpack.c.b16 %v2618, %v2602
        %v3787 = vpack.c.b16 %v2635, %v2619
        %v3788 = vpack.c.b16 %v2636, %v2620
        %v3789 = vpack.c.b16 %v2637, %v2621
        %v3790 = vpack.c.b16 %v2638, %v2622
        %v3791 = vpack.c.b16 %v2639, %v2623
        %v3792 = vpack.c.b16 %v2640, %v2624
        %v3793 = vpack.c.b16 %v2641, %v2625
        %v3794 = vpack.c.b16 %v2642, %v2626
        %v3795 = vpack.c.b16 %v2643, %v2627
        %v3796 = vpack.c.b16 %v2644, %v2628
        %v3797 = vpack.c.b16 %v2645, %v2629
        %v3798 = vpack.c.b16 %v2646, %v2630
        %v3799 = vpack.c.b16 %v2647, %v2631
        %v3800 = vpack.c.b16 %v2648, %v2632
        %v3801 = vpack.c.b16 %v2649, %v2633
        %v3802 = vpack.c.b16 %v2650, %v2634
        %v3803 = vpack.c.b16 %v2667, %v2651
        %v3804 = vpack.c.b16 %v2668, %v2652
        %v3805 = vpack.c.b16 %v2669, %v2653
        %v3806 = vpack.c.b16 %v2670, %v2654
        %v3807 = vpack.c.b16 %v2671, %v2655
        %v3808 = vpack.c.b16 %v2672, %v2656
        %v3809 = vpack.c.b16 %v2673, %v2657
        %v3810 = vpack.c.b16 %v2674, %v2658
        %v3811 = vpack.c.b16 %v2675, %v2659
        %v3812 = vpack.c.b16 %v2676, %v2660
        %v3813 = vpack.c.b16 %v2677, %v2661
        %v3814 = vpack.c.b16 %v2678, %v2662
        %v3815 = vpack.c.b16 %v2679, %v2663
        %v3816 = vpack.c.b16 %v2680, %v2664
        %v3817 = vpack.c.b16 %v2681, %v2665
        %v3818 = vpack.c.b16 %v2682, %v2666
        %v3819 = vpack.c.b16 %v2699, %v2683
        %v3820 = vpack.c.b16 %v2700, %v2684
        %v3821 = vpack.c.b16 %v2701, %v2685
        %v3822 = vpack.c.b16 %v2702, %v2686
        %v3823 = vpack.c.b16 %v2703, %v2687
        %v3824 = vpack.c.b16 %v2704, %v2688
        %v3825 = vpack.c.b16 %v2705, %v2689
        %v3826 = vpack.c.b16 %v2706, %v2690
        %v3827 = vpack.c.b16 %v2707, %v2691
        %v3828 = vpack.c.b16 %v2708, %v2692
        %v3829 = vpack.c.b16 %v2709, %v2693
        %v3830 = vpack.c.b16 %v2710, %v2694
        %v3831 = vpack.c.b16 %v2711, %v2695
        %v3832 = vpack.c.b16 %v2712, %v2696
        %v3833 = vpack.c.b16 %v2713, %v2697
        %v3834 = vpack.c.b16 %v2714, %v2698
        %v3835 = vpack.c.b16 %v2731, %v2715
        %v3836 = vpack.c.b16 %v2732, %v2716
        %v3837 = vpack.c.b16 %v2733, %v2717
        %v3838 = vpack.c.b16 %v2734, %v2718
        %v3839 = vpack.c.b16 %v2735, %v2719
        %v3840 = vpack.c.b16 %v2736, %v2720
        %v3841 = vpack.c.b16 %v2737, %v2721
        %v3842 = vpack.c.b16 %v2738, %v2722
        %v3843 = vpack.c.b16 %v2739, %v2723
        %v3844 = vpack.c.b16 %v2740, %v2724
        %v3845 = vpack.c.b16 %v2741, %v2725
        %v3846 = vpack.c.b16 %v2742, %v2726
        %v3847 = vpack.c.b16 %v2743, %v2727
        %v3848 = vpack.c.b16 %v2744, %v2728
        %v3849 = vpack.c.b16 %v2745, %v2729
        %v3850 = vpack.c.b16 %v2746, %v2730
        %v3851 = vpack.c.b16 %v2763, %v2747
        %v3852 = vpack.c.b16 %v2764, %v2748
        %v3853 = vpack.c.b16 %v2765, %v2749
        %v3854 = vpack.c.b16 %v2766, %v2750
        %v3855 = vpack.c.b16 %v2767, %v2751
        %v3856 = vpack.c.b16 %v2768, %v2752
        %v3857 = vpack.c.b16 %v2769, %v2753
        %v3858 = vpack.c.b16 %v2770, %v2754
        %v3859 = vpack.c.b16 %v2771, %v2755
        %v3860 = vpack.c.b16 %v2772, %v2756
        %v3861 = vpack.c.b16 %v2773, %v2757
        %v3862 = vpack.c.b16 %v2774, %v2758
        %v3863 = vpack.c.b16 %v2775, %v2759
        %v3864 = vpack.c.b16 %v2776, %v2760
        %v3865 = vpack.c.b16 %v2777, %v2761
        %v3866 = vpack.c.b16 %v2778, %v2762
        %v3867 = vpack.c.b16 %v2795, %v2779
        %v3868 = vpack.c.b16 %v2796, %v2780
        %v3869 = vpack.c.b16 %v2797, %v2781
        %v3870 = vpack.c.b16 %v2798, %v2782
        %v3871 = vpack.c.b16 %v2799, %v2783
        %v3872 = vpack.c.b16 %v2800, %v2784
        %v3873 = vpack.c.b16 %v2801, %v2785
        %v3874 = vpack.c.b16 %v2802, %v2786
        %v3875 = vpack.c.b16 %v2803, %v2787
        %v3876 = vpack.c.b16 %v2804, %v2788
        %v3877 = vpack.c.b16 %v2805, %v2789
        %v3878 = vpack.c.b16 %v2806, %v2790
        %v3879 = vpack.c.b16 %v2807, %v2791
        %v3880 = vpack.c.b16 %v2808, %v2792
        %v3881 = vpack.c.b16 %v2809, %v2793
        %v3882 = vpack.c.b16 %v2810, %v2794
        %v3883 = vpack.c.b16 %v2827, %v2811
        %v3884 = vpack.c.b16 %v2828, %v2812
        %v3885 = vpack.c.b16 %v2829, %v2813
        %v3886 = vpack.c.b16 %v2830, %v2814
        %v3887 = vpack.c.b16 %v2831, %v2815
        %v3888 = vpack.c.b16 %v2832, %v2816
        %v3889 = vpack.c.b16 %v2833, %v2817
        %v3890 = vpack.c.b16 %v2834, %v2818
        %v3891 = vpack.c.b16 %v2835, %v2819
        %v3892 = vpack.c.b16 %v2836, %v2820
        %v3893 = vpack.c.b16 %v2837, %v2821
        %v3894 = vpack.c.b16 %v2838, %v2822
        %v3895 = vpack.c.b16 %v2839, %v2823
        %v3896 = vpack.c.b16 %v2840, %v2824
        %v3897 = vpack.c.b16 %v2841, %v2825
        %v3898 = vpack.c.b16 %v2842, %v2826
        %v3899 = vpack.c.b16 %v2859, %v2843
        %v3900 = vpack.c.b16 %v2860, %v2844
        %v3901 = vpack.c.b16 %v2861, %v2845
        %v3902 = vpack.c.b16 %v2862, %v2846
        %v3903 = vpack.c.b16 %v2863, %v2847
        %v3904 = vpack.c.b16 %v2864, %v2848
        %v3905 = vpack.c.b16 %v2865, %v2849
        %v3906 = vpack.c.b16 %v2866, %v2850
        %v3907 = vpack.c.b16 %v2867, %v2851
        %v3908 = vpack.c.b16 %v2868, %v2852
        %v3909 = vpack.c.b16 %v2869, %v2853
        %v3910 = vpack.c.b16 %v2870, %v2854
        %v3911 = vpack.c.b16 %v2871, %v2855
        %v3912 = vpack.c.b16 %v2872, %v2856
        %v3913 = vpack.c.b16 %v2873, %v2857
        %v3914 = vpack.c.b16 %v2874, %v2858
        %v3915 = vpack.c.b16 %v2891, %v2875
        %v3916 = vpack.c.b16 %v2892, %v2876
        %v3917 = vpack.c.b16 %v2893, %v2877
        %v3918 = vpack.c.b16 %v2894, %v2878
        %v3919 = vpack.c.b16 %v2895, %v2879
        %v3920 = vpack.c.b16 %v2896, %v2880
        %v3921 = vpack.c.b16 %v2897, %v2881
        %v3922 = vpack.c.b16 %v2898, %v2882
        %v3923 = vpack.c.b16 %v2899, %v2883
        %v3924 = vpack.c.b16 %v2900, %v2884
        %v3925 = vpack.c.b16 %v2901, %v2885
        %v3926 = vpack.c.b16 %v2902, %v2886
        %v3927 = vpack.c.b16 %v2903, %v2887
        %v3928 = vpack.c.b16 %v2904, %v2888
        %v3929 = vpack.c.b16 %v2905, %v2889
        %v3930 = vpack.c.b16 %v2906, %v2890
        %v3931 = vpack.c.b16 %v2923, %v2907
        %v3932 = vpack.c.b16 %v2924, %v2908
        %v3933 = vpack.c.b16 %v2925, %v2909
        %v3934 = vpack.c.b16 %v2926, %v2910
        %v3935 = vpack.c.b16 %v2927, %v2911
        %v3936 = vpack.c.b16 %v2928, %v2912
        %v3937 = vpack.c.b16 %v2929, %v2913
        %v3938 = vpack.c.b16 %v2930, %v2914
        %v3939 = vpack.c.b16 %v2931, %v2915
        %v3940 = vpack.c.b16 %v2932, %v2916
        %v3941 = vpack.c.b16 %v2933, %v2917
        %v3942 = vpack.c.b16 %v2934, %v2918
        %v3943 = vpack.c.b16 %v2935, %v2919
        %v3944 = vpack.c.b16 %v2936, %v2920
        %v3945 = vpack.c.b16 %v2937, %v2921
        %v3946 = vpack.c.b16 %v2938, %v2922
        %v3947 = vpack.c.b16 %v2955, %v2939
        %v3948 = vpack.c.b16 %v2956, %v2940
        %v3949 = vpack.c.b16 %v2957, %v2941
        %v3950 = vpack.c.b16 %v2958, %v2942
        %v3951 = vpack.c.b16 %v2959, %v2943
        %v3952 = vpack.c.b16 %v2960, %v2944
        %v3953 = vpack.c.b16 %v2961, %v2945
        %v3954 = vpack.c.b16 %v2962, %v2946
        %v3955 = vpack.c.b16 %v2963, %v2947
        %v3956 = vpack.c.b16 %v2964, %v2948
        %v3957 = vpack.c.b16 %v2965, %v2949
        %v3958 = vpack.c.b16 %v2966, %v2950
        %v3959 = vpack.c.b16 %v2967, %v2951
        %v3960 = vpack.c.b16 %v2968, %v2952
        %v3961 = vpack.c.b16 %v2969, %v2953
        %v3962 = vpack.c.b16 %v2970, %v2954
        %v3963 = vpack.c.b16 %v2987, %v2971
        %v3964 = vpack.c.b16 %v2988, %v2972
        %v3965 = vpack.c.b16 %v2989, %v2973
        %v3966 = vpack.c.b16 %v2990, %v2974
        %v3967 = vpack.c.b16 %v2991, %v2975
        %v3968 = vpack.c.b16 %v2992, %v2976
        %v3969 = vpack.c.b16 %v2993, %v2977
        %v3970 = vpack.c.b16 %v2994, %v2978
        %v3971 = vpack.c.b16 %v2995, %v2979
        %v3972 = vpack.c.b16 %v2996, %v2980
        %v3973 = vpack.c.b16 %v2997, %v2981
        %v3974 = vpack.c.b16 %v2998, %v2982
        %v3975 = vpack.c.b16 %v2999, %v2983
        %v3976 = vpack.c.b16 %v3000, %v2984
        %v3977 = vpack.c.b16 %v3001, %v2985
        %v3978 = vpack.c.b16 %v3002, %v2986
        %v3979 = vpack.c.b16 %v3019, %v3003
        %v3980 = vpack.c.b16 %v3020, %v3004
        %v3981 = vpack.c.b16 %v3021, %v3005
        %v3982 = vpack.c.b16 %v3022, %v3006
        %v3983 = vpack.c.b16 %v3023, %v3007
        %v3984 = vpack.c.b16 %v3024, %v3008
        %v3985 = vpack.c.b16 %v3025, %v3009
        %v3986 = vpack.c.b16 %v3026, %v3010
        %v3987 = vpack.c.b16 %v3027, %v3011
        %v3988 = vpack.c.b16 %v3028, %v3012
        %v3989 = vpack.c.b16 %v3029, %v3013
        %v3990 = vpack.c.b16 %v3030, %v3014
        %v3991 = vpack.c.b16 %v3031, %v3015
        %v3992 = vpack.c.b16 %v3032, %v3016
        %v3993 = vpack.c.b16 %v3033, %v3017
        %v3994 = vpack.c.b16 %v3034, %v3018
        %v3995 = vpack.c.b16 %v3051, %v3035
        %v3996 = vpack.c.b16 %v3052, %v3036
        %v3997 = vpack.c.b16 %v3053, %v3037
        %v3998 = vpack.c.b16 %v3054, %v3038
        %v3999 = vpack.c.b16 %v3055, %v3039
        %v4000 = vpack.c.b16 %v3056, %v3040
        %v4001 = vpack.c.b16 %v3057, %v3041
        %v4002 = vpack.c.b16 %v3058, %v3042
        %v4003 = vpack.c.b16 %v3059, %v3043
        %v4004 = vpack.c.b16 %v3060, %v3044
        %v4005 = vpack.c.b16 %v3061, %v3045
        %v4006 = vpack.c.b16 %v3062, %v3046
        %v4007 = vpack.c.b16 %v3063, %v3047
        %v4008 = vpack.c.b16 %v3064, %v3048
        %v4009 = vpack.c.b16 %v3065, %v3049
        %v4010 = vpack.c.b16 %v3066, %v3050
        %v4011 = vpack.c.b16 %v3083, %v3067
        %v4012 = vpack.c.b16 %v3084, %v3068
        %v4013 = vpack.c.b16 %v3085, %v3069
        %v4014 = vpack.c.b16 %v3086, %v3070
        %v4015 = vpack.c.b16 %v3087, %v3071
        %v4016 = vpack.c.b16 %v3088, %v3072
        %v4017 = vpack.c.b16 %v3089, %v3073
        %v4018 = vpack.c.b16 %v3090, %v3074
        %v4019 = vpack.c.b16 %v3091, %v3075
        %v4020 = vpack.c.b16 %v3092, %v3076
        %v4021 = vpack.c.b16 %v3093, %v3077
        %v4022 = vpack.c.b16 %v3094, %v3078
        %v4023 = vpack.c.b16 %v3095, %v3079
        %v4024 = vpack.c.b16 %v3096, %v3080
        %v4025 = vpack.c.b16 %v3097, %v3081
        %v4026 = vpack.c.b16 %v3098, %v3082
        %v4027 = vpack.c.b16 %v3115, %v3099
        %v4028 = vpack.c.b16 %v3116, %v3100
        %v4029 = vpack.c.b16 %v3117, %v3101
        %v4030 = vpack.c.b16 %v3118, %v3102
        %v4031 = vpack.c.b16 %v3119, %v3103
        %v4032 = vpack.c.b16 %v3120, %v3104
        %v4033 = vpack.c.b16 %v3121, %v3105
        %v4034 = vpack.c.b16 %v3122, %v3106
        %v4035 = vpack.c.b16 %v3123, %v3107
        %v4036 = vpack.c.b16 %v3124, %v3108
        %v4037 = vpack.c.b16 %v3125, %v3109
        %v4038 = vpack.c.b16 %v3126, %v3110
        %v4039 = vpack.c.b16 %v3127, %v3111
        %v4040 = vpack.c.b16 %v3128, %v3112
        %v4041 = vpack.c.b16 %v3129, %v3113
        %v4042 = vpack.c.b16 %v3130, %v3114
        %v4043 = vpack.c.b16 %v3147, %v3131
        %v4044 = vpack.c.b16 %v3148, %v3132
        %v4045 = vpack.c.b16 %v3149, %v3133
        %v4046 = vpack.c.b16 %v3150, %v3134
        %v4047 = vpack.c.b16 %v3151, %v3135
        %v4048 = vpack.c.b16 %v3152, %v3136
        %v4049 = vpack.c.b16 %v3153, %v3137
        %v4050 = vpack.c.b16 %v3154, %v3138
        %v4051 = vpack.c.b16 %v3155, %v3139
        %v4052 = vpack.c.b16 %v3156, %v3140
        %v4053 = vpack.c.b16 %v3157, %v3141
        %v4054 = vpack.c.b16 %v3158, %v3142
        %v4055 = vpack.c.b16 %v3159, %v3143
        %v4056 = vpack.c.b16 %v3160, %v3144
        %v4057 = vpack.c.b16 %v3161, %v3145
        %v4058 = vpack.c.b16 %v3162, %v3146
        %v4059 = vpack.c.b16 %v3179, %v3163
        %v4060 = vpack.c.b16 %v3180, %v3164
        %v4061 = vpack.c.b16 %v3181, %v3165
        %v4062 = vpack.c.b16 %v3182, %v3166
        %v4063 = vpack.c.b16 %v3183, %v3167
        %v4064 = vpack.c.b16 %v3184, %v3168
        %v4065 = vpack.c.b16 %v3185, %v3169
        %v4066 = vpack.c.b16 %v3186, %v3170
        %v4067 = vpack.c.b16 %v3187, %v3171
        %v4068 = vpack.c.b16 %v3188, %v3172
        %v4069 = vpack.c.b16 %v3189, %v3173
        %v4070 = vpack.c.b16 %v3190, %v3174
        %v4071 = vpack.c.b16 %v3191, %v3175
        %v4072 = vpack.c.b16 %v3192, %v3176
        %v4073 = vpack.c.b16 %v3193, %v3177
        %v4074 = vpack.c.b16 %v3194, %v3178
        %v4075 = vpack.c.b16 %v3211, %v3195
        %v4076 = vpack.c.b16 %v3212, %v3196
        %v4077 = vpack.c.b16 %v3213, %v3197
        %v4078 = vpack.c.b16 %v3214, %v3198
        %v4079 = vpack.c.b16 %v3215, %v3199
        %v4080 = vpack.c.b16 %v3216, %v3200
        %v4081 = vpack.c.b16 %v3217, %v3201
        %v4082 = vpack.c.b16 %v3218, %v3202
        %v4083 = vpack.c.b16 %v3219, %v3203
        %v4084 = vpack.c.b16 %v3220, %v3204
        %v4085 = vpack.c.b16 %v3221, %v3205
        %v4086 = vpack.c.b16 %v3222, %v3206
        %v4087 = vpack.c.b16 %v3223, %v3207
        %v4088 = vpack.c.b16 %v3224, %v3208
        %v4089 = vpack.c.b16 %v3225, %v3209
        %v4090 = vpack.c.b16 %v3226, %v3210
        %v4091 = vpack.c.b16 %v3243, %v3227
        %v4092 = vpack.c.b16 %v3244, %v3228
        %v4093 = vpack.c.b16 %v3245, %v3229
        %v4094 = vpack.c.b16 %v3246, %v3230
        %v4095 = vpack.c.b16 %v3247, %v3231
        %v4096 = vpack.c.b16 %v3248, %v3232
        %v4097 = vpack.c.b16 %v3249, %v3233
        %v4098 = vpack.c.b16 %v3250, %v3234
        %v4099 = vpack.c.b16 %v3251, %v3235
        %v4100 = vpack.c.b16 %v3252, %v3236
        %v4101 = vpack.c.b16 %v3253, %v3237
        %v4102 = vpack.c.b16 %v3254, %v3238
        %v4103 = vpack.c.b16 %v3255, %v3239
        %v4104 = vpack.c.b16 %v3256, %v3240
        %v4105 = vpack.c.b16 %v3257, %v3241
        %v4106 = vpack.c.b16 %v3258, %v3242
        %v4107 = vpack.c.b16 %v3275, %v3259
        %v4108 = vpack.c.b16 %v3276, %v3260
        %v4109 = vpack.c.b16 %v3277, %v3261
        %v4110 = vpack.c.b16 %v3278, %v3262
        %v4111 = vpack.c.b16 %v3279, %v3263
        %v4112 = vpack.c.b16 %v3280, %v3264
        %v4113 = vpack.c.b16 %v3281, %v3265
        %v4114 = vpack.c.b16 %v3282, %v3266
        %v4115 = vpack.c.b16 %v3283, %v3267
        %v4116 = vpack.c.b16 %v3284, %v3268
        %v4117 = vpack.c.b16 %v3285, %v3269
        %v4118 = vpack.c.b16 %v3286, %v3270
        %v4119 = vpack.c.b16 %v3287, %v3271
        %v4120 = vpack.c.b16 %v3288, %v3272
        %v4121 = vpack.c.b16 %v3289, %v3273
        %v4122 = vpack.c.b16 %v3290, %v3274
        %v4123 = vpack.c.b16 %v3307, %v3291
        %v4124 = vpack.c.b16 %v3308, %v3292
        %v4125 = vpack.c.b16 %v3309, %v3293
        %v4126 = vpack.c.b16 %v3310, %v3294
        %v4127 = vpack.c.b16 %v3311, %v3295
        %v4128 = vpack.c.b16 %v3312, %v3296
        %v4129 = vpack.c.b16 %v3313, %v3297
        %v4130 = vpack.c.b16 %v3314, %v3298
        %v4131 = vpack.c.b16 %v3315, %v3299
        %v4132 = vpack.c.b16 %v3316, %v3300
        %v4133 = vpack.c.b16 %v3317, %v3301
        %v4134 = vpack.c.b16 %v3318, %v3302
        %v4135 = vpack.c.b16 %v3319, %v3303
        %v4136 = vpack.c.b16 %v3320, %v3304
        %v4137 = vpack.c.b16 %v3321, %v3305
        %v4138 = vpack.c.b16 %v3322, %v3306
        %v4139 = vpack.c.b16 %v3339, %v3323
        %v4140 = vpack.c.b16 %v3340, %v3324
        %v4141 = vpack.c.b16 %v3341, %v3325
        %v4142 = vpack.c.b16 %v3342, %v3326
        %v4143 = vpack.c.b16 %v3343, %v3327
        %v4144 = vpack.c.b16 %v3344, %v3328
        %v4145 = vpack.c.b16 %v3345, %v3329
        %v4146 = vpack.c.b16 %v3346, %v3330
        %v4147 = vpack.c.b16 %v3347, %v3331
        %v4148 = vpack.c.b16 %v3348, %v3332
        %v4149 = vpack.c.b16 %v3349, %v3333
        %v4150 = vpack.c.b16 %v3350, %v3334
        %v4151 = vpack.c.b16 %v3351, %v3335
        %v4152 = vpack.c.b16 %v3352, %v3336
        %v4153 = vpack.c.b16 %v3353, %v3337
        %v4154 = vpack.c.b16 %v3354, %v3338
        %v4155 = vpack.c.b16 %v3371, %v3355
        %v4156 = vpack.c.b16 %v3372, %v3356
        %v4157 = vpack.c.b16 %v3373, %v3357
        %v4158 = vpack.c.b16 %v3374, %v3358
        %v4159 = vpack.c.b16 %v3375, %v3359
        %v4160 = vpack.c.b16 %v3376, %v3360
        %v4161 = vpack.c.b16 %v3377, %v3361
        %v4162 = vpack.c.b16 %v3378, %v3362
        %v4163 = vpack.c.b16 %v3379, %v3363
        %v4164 = vpack.c.b16 %v3380, %v3364
        %v4165 = vpack.c.b16 %v3381, %v3365
        %v4166 = vpack.c.b16 %v3382, %v3366
        %v4167 = vpack.c.b16 %v3383, %v3367
        %v4168 = vpack.c.b16 %v3384, %v3368
        %v4169 = vpack.c.b16 %v3385, %v3369
        %v4170 = vpack.c.b16 %v3386, %v3370
        %vm4955 = vcmask 130048
        %v4957 = vsel %vm4955, %v1028, 0
        %4959 = vmatpush.bf16.msra.mxu0 %v3499
        %4960 = vmatpush.bf16.msra.mxu0 %v3483
        %4961 = vmatpush.bf16.msra.mxu0 %v3467
        %4962 = vmatpush.bf16.msra.mxu0 %v3451
        %4963 = vmatpush.bf16.msra.mxu0 %v3435
        %4964 = vmatpush.bf16.msra.mxu0 %v3419
        %4965 = vmatpush.bf16.msra.mxu0 %v3403
        %4966 = vmatpush.bf16.msra.mxu0 %v3387
        %4967 = vmatmul.bf16.gmra.mxu0 %v1022
        %v4968 = vpop.f32.mrf.mxu0
        %v4969 = vadd.f32 0.0, %v4968
        %v4970 = vpop.f32.mrf.mxu0
        %4971 = vdwg.mxu0
        %4972 = vmatpush.bf16.msra.mxu0 %v3627
        %4973 = vmatpush.bf16.msra.mxu0 %v3611
        %4974 = vmatpush.bf16.msra.mxu0 %v3595
        %4975 = vmatpush.bf16.msra.mxu0 %v3579
        %4976 = vmatpush.bf16.msra.mxu0 %v3563
        %4977 = vmatpush.bf16.msra.mxu0 %v3547
        %4978 = vmatpush.bf16.msra.mxu0 %v3531
        %4979 = vmatpush.bf16.msra.mxu0 %v3515
        %4980 = vmatmul.bf16.gmra.mxu0 %v1023
        %v4981 = vpop.f32.mrf.mxu0
        %v4982 = vadd.f32 %v4969, %v4981
        %v4983 = vpop.f32.mrf.mxu0
        %4984 = vdwg.mxu0
        %4985 = vmatpush.bf16.msra.mxu0 %v3755
        %4986 = vmatpush.bf16.msra.mxu0 %v3739
        %4987 = vmatpush.bf16.msra.mxu0 %v3723
        %4988 = vmatpush.bf16.msra.mxu0 %v3707
        %4989 = vmatpush.bf16.msra.mxu0 %v3691
        %4990 = vmatpush.bf16.msra.mxu0 %v3675
        %4991 = vmatpush.bf16.msra.mxu0 %v3659
        %4992 = vmatpush.bf16.msra.mxu0 %v3643
        %4993 = vmatmul.bf16.gmra.mxu0 %v1024
        %v4994 = vpop.f32.mrf.mxu0
        %v4995 = vadd.f32 %v4982, %v4994
        %v4996 = vpop.f32.mrf.mxu0
        %4997 = vdwg.mxu0
        %4998 = vmatpush.bf16.msra.mxu0 %v3883
        %4999 = vmatpush.bf16.msra.mxu0 %v3867
        %5000 = vmatpush.bf16.msra.mxu0 %v3851
        %5001 = vmatpush.bf16.msra.mxu0 %v3835
        %5002 = vmatpush.bf16.msra.mxu0 %v3819
        %5003 = vmatpush.bf16.msra.mxu0 %v3803
        %5004 = vmatpush.bf16.msra.mxu0 %v3787
        %5005 = vmatpush.bf16.msra.mxu0 %v3771
        %5006 = vmatmul.bf16.gmra.mxu0 %v1025
        %v5007 = vpop.f32.mrf.mxu0
        %v5008 = vadd.f32 %v4995, %v5007
        %v5009 = vpop.f32.mrf.mxu0
        %5010 = vdwg.mxu0
        %5011 = vmatpush.bf16.msra.mxu0 %v4011
        %5012 = vmatpush.bf16.msra.mxu0 %v3995
        %5013 = vmatpush.bf16.msra.mxu0 %v3979
        %5014 = vmatpush.bf16.msra.mxu0 %v3963
        %5015 = vmatpush.bf16.msra.mxu0 %v3947
        %5016 = vmatpush.bf16.msra.mxu0 %v3931
        %5017 = vmatpush.bf16.msra.mxu0 %v3915
        %5018 = vmatpush.bf16.msra.mxu0 %v3899
        %5019 = vmatmul.bf16.gmra.mxu0 %v1026
        %v5020 = vpop.f32.mrf.mxu0
        %v5021 = vadd.f32 %v5008, %v5020
        %v5022 = vpop.f32.mrf.mxu0
        %5023 = vdwg.mxu0
        %5024 = vmatpush.bf16.msra.mxu0 %v4139
        %5025 = vmatpush.bf16.msra.mxu0 %v4123
        %5026 = vmatpush.bf16.msra.mxu0 %v4107
        %5027 = vmatpush.bf16.msra.mxu0 %v4091
        %5028 = vmatpush.bf16.msra.mxu0 %v4075
        %5029 = vmatpush.bf16.msra.mxu0 %v4059
        %5030 = vmatpush.bf16.msra.mxu0 %v4043
        %5031 = vmatpush.bf16.msra.mxu0 %v4027
        %5032 = vmatmul.bf16.gmra.mxu0 %v1027
        %v5033 = vpop.f32.mrf.mxu0
        %v5034 = vadd.f32 %v5021, %v5033
        %v5035 = vpop.f32.mrf.mxu0
        %5036 = vdwg.mxu0
        %5037 = vmatpush.bf16.msra.mxu0 0
        %5038 = vmatpush.bf16.msra.mxu0 0
        %5039 = vmatpush.bf16.msra.mxu0 0
        %5040 = vmatpush.bf16.msra.mxu0 0
        %5041 = vmatpush.bf16.msra.mxu0 0
        %5042 = vmatpush.bf16.msra.mxu0 0
        %5043 = vmatpush.bf16.msra.mxu0 0
        %5044 = vmatpush.bf16.msra.mxu0 %v4155
        %5045 = vmatmul.bf16.gmra.mxu0 %v4957
        %v5046 = vpop.f32.mrf.mxu0
        %v5047 = vadd.f32 %v5034, %v5046
        %v5048 = vpop.f32.mrf.mxu0
        %5049 = vdwg.mxu0
        %5050 = vmatpush.bf16.msra.mxu0 %v3500
        %5051 = vmatpush.bf16.msra.mxu0 %v3484
        %5052 = vmatpush.bf16.msra.mxu0 %v3468
        %5053 = vmatpush.bf16.msra.mxu0 %v3452
        %5054 = vmatpush.bf16.msra.mxu0 %v3436
        %5055 = vmatpush.bf16.msra.mxu0 %v3420
        %5056 = vmatpush.bf16.msra.mxu0 %v3404
        %5057 = vmatpush.bf16.msra.mxu0 %v3388
        %5058 = vmatmul.bf16.gmra.mxu0 %v1022
        %v5059 = vpop.f32.mrf.mxu0
        %v5060 = vadd.f32 0.0, %v5059
        %v5061 = vpop.f32.mrf.mxu0
        %5062 = vdwg.mxu0
        %5063 = vmatpush.bf16.msra.mxu0 %v3628
        %5064 = vmatpush.bf16.msra.mxu0 %v3612
        %5065 = vmatpush.bf16.msra.mxu0 %v3596
        %5066 = vmatpush.bf16.msra.mxu0 %v3580
        %5067 = vmatpush.bf16.msra.mxu0 %v3564
        %5068 = vmatpush.bf16.msra.mxu0 %v3548
        %5069 = vmatpush.bf16.msra.mxu0 %v3532
        %5070 = vmatpush.bf16.msra.mxu0 %v3516
        %5071 = vmatmul.bf16.gmra.mxu0 %v1023
        %v5072 = vpop.f32.mrf.mxu0
        %v5073 = vadd.f32 %v5060, %v5072
        %v5074 = vpop.f32.mrf.mxu0
        %5075 = vdwg.mxu0
        %5076 = vmatpush.bf16.msra.mxu0 %v3756
        %5077 = vmatpush.bf16.msra.mxu0 %v3740
        %5078 = vmatpush.bf16.msra.mxu0 %v3724
        %5079 = vmatpush.bf16.msra.mxu0 %v3708
        %5080 = vmatpush.bf16.msra.mxu0 %v3692
        %5081 = vmatpush.bf16.msra.mxu0 %v3676
        %5082 = vmatpush.bf16.msra.mxu0 %v3660
        %5083 = vmatpush.bf16.msra.mxu0 %v3644
        %5084 = vmatmul.bf16.gmra.mxu0 %v1024
        %v5085 = vpop.f32.mrf.mxu0
        %v5086 = vadd.f32 %v5073, %v5085
        %v5087 = vpop.f32.mrf.mxu0
        %5088 = vdwg.mxu0
        %5089 = vmatpush.bf16.msra.mxu0 %v3884
        %5090 = vmatpush.bf16.msra.mxu0 %v3868
        %5091 = vmatpush.bf16.msra.mxu0 %v3852
        %5092 = vmatpush.bf16.msra.mxu0 %v3836
        %5093 = vmatpush.bf16.msra.mxu0 %v3820
        %5094 = vmatpush.bf16.msra.mxu0 %v3804
        %5095 = vmatpush.bf16.msra.mxu0 %v3788
        %5096 = vmatpush.bf16.msra.mxu0 %v3772
        %5097 = vmatmul.bf16.gmra.mxu0 %v1025
        %v5098 = vpop.f32.mrf.mxu0
        %v5099 = vadd.f32 %v5086, %v5098
        %v5100 = vpop.f32.mrf.mxu0
        %5101 = vdwg.mxu0
        %5102 = vmatpush.bf16.msra.mxu0 %v4012
        %5103 = vmatpush.bf16.msra.mxu0 %v3996
        %5104 = vmatpush.bf16.msra.mxu0 %v3980
        %5105 = vmatpush.bf16.msra.mxu0 %v3964
        %5106 = vmatpush.bf16.msra.mxu0 %v3948
        %5107 = vmatpush.bf16.msra.mxu0 %v3932
        %5108 = vmatpush.bf16.msra.mxu0 %v3916
        %5109 = vmatpush.bf16.msra.mxu0 %v3900
        %5110 = vmatmul.bf16.gmra.mxu0 %v1026
        %v5111 = vpop.f32.mrf.mxu0
        %v5112 = vadd.f32 %v5099, %v5111
        %v5113 = vpop.f32.mrf.mxu0
        %5114 = vdwg.mxu0
        %5115 = vmatpush.bf16.msra.mxu0 %v4140
        %5116 = vmatpush.bf16.msra.mxu0 %v4124
        %5117 = vmatpush.bf16.msra.mxu0 %v4108
        %5118 = vmatpush.bf16.msra.mxu0 %v4092
        %5119 = vmatpush.bf16.msra.mxu0 %v4076
        %5120 = vmatpush.bf16.msra.mxu0 %v4060
        %5121 = vmatpush.bf16.msra.mxu0 %v4044
        %5122 = vmatpush.bf16.msra.mxu0 %v4028
        %5123 = vmatmul.bf16.gmra.mxu0 %v1027
        %v5124 = vpop.f32.mrf.mxu0
        %v5125 = vadd.f32 %v5112, %v5124
        %v5126 = vpop.f32.mrf.mxu0
        %5127 = vdwg.mxu0
        %5128 = vmatpush.bf16.msra.mxu0 0
        %5129 = vmatpush.bf16.msra.mxu0 0
        %5130 = vmatpush.bf16.msra.mxu0 0
        %5131 = vmatpush.bf16.msra.mxu0 0
        %5132 = vmatpush.bf16.msra.mxu0 0
        %5133 = vmatpush.bf16.msra.mxu0 0
        %5134 = vmatpush.bf16.msra.mxu0 0
        %5135 = vmatpush.bf16.msra.mxu0 %v4156
        %5136 = vmatmul.bf16.gmra.mxu0 %v4957
        %v5137 = vpop.f32.mrf.mxu0
        %v5138 = vadd.f32 %v5125, %v5137
        %v5139 = vpop.f32.mrf.mxu0
        %5140 = vdwg.mxu0
        %5141 = vmatpush.bf16.msra.mxu0 %v3501
        %5142 = vmatpush.bf16.msra.mxu0 %v3485
        %5143 = vmatpush.bf16.msra.mxu0 %v3469
        %5144 = vmatpush.bf16.msra.mxu0 %v3453
        %5145 = vmatpush.bf16.msra.mxu0 %v3437
        %5146 = vmatpush.bf16.msra.mxu0 %v3421
        %5147 = vmatpush.bf16.msra.mxu0 %v3405
        %5148 = vmatpush.bf16.msra.mxu0 %v3389
        %5149 = vmatmul.bf16.gmra.mxu0 %v1022
        %v5150 = vpop.f32.mrf.mxu0
        %v5151 = vadd.f32 0.0, %v5150
        %v5152 = vpop.f32.mrf.mxu0
        %5153 = vdwg.mxu0
        %5154 = vmatpush.bf16.msra.mxu0 %v3629
        %5155 = vmatpush.bf16.msra.mxu0 %v3613
        %5156 = vmatpush.bf16.msra.mxu0 %v3597
        %5157 = vmatpush.bf16.msra.mxu0 %v3581
        %5158 = vmatpush.bf16.msra.mxu0 %v3565
        %5159 = vmatpush.bf16.msra.mxu0 %v3549
        %5160 = vmatpush.bf16.msra.mxu0 %v3533
        %5161 = vmatpush.bf16.msra.mxu0 %v3517
        %5162 = vmatmul.bf16.gmra.mxu0 %v1023
        %v5163 = vpop.f32.mrf.mxu0
        %v5164 = vadd.f32 %v5151, %v5163
        %v5165 = vpop.f32.mrf.mxu0
        %5166 = vdwg.mxu0
        %5167 = vmatpush.bf16.msra.mxu0 %v3757
        %5168 = vmatpush.bf16.msra.mxu0 %v3741
        %5169 = vmatpush.bf16.msra.mxu0 %v3725
        %5170 = vmatpush.bf16.msra.mxu0 %v3709
        %5171 = vmatpush.bf16.msra.mxu0 %v3693
        %5172 = vmatpush.bf16.msra.mxu0 %v3677
        %5173 = vmatpush.bf16.msra.mxu0 %v3661
        %5174 = vmatpush.bf16.msra.mxu0 %v3645
        %5175 = vmatmul.bf16.gmra.mxu0 %v1024
        %v5176 = vpop.f32.mrf.mxu0
        %v5177 = vadd.f32 %v5164, %v5176
        %v5178 = vpop.f32.mrf.mxu0
        %5179 = vdwg.mxu0
        %5180 = vmatpush.bf16.msra.mxu0 %v3885
        %5181 = vmatpush.bf16.msra.mxu0 %v3869
        %5182 = vmatpush.bf16.msra.mxu0 %v3853
        %5183 = vmatpush.bf16.msra.mxu0 %v3837
        %5184 = vmatpush.bf16.msra.mxu0 %v3821
        %5185 = vmatpush.bf16.msra.mxu0 %v3805
        %5186 = vmatpush.bf16.msra.mxu0 %v3789
        %5187 = vmatpush.bf16.msra.mxu0 %v3773
        %5188 = vmatmul.bf16.gmra.mxu0 %v1025
        %v5189 = vpop.f32.mrf.mxu0
        %v5190 = vadd.f32 %v5177, %v5189
        %v5191 = vpop.f32.mrf.mxu0
        %5192 = vdwg.mxu0
        %5193 = vmatpush.bf16.msra.mxu0 %v4013
        %5194 = vmatpush.bf16.msra.mxu0 %v3997
        %5195 = vmatpush.bf16.msra.mxu0 %v3981
        %5196 = vmatpush.bf16.msra.mxu0 %v3965
        %5197 = vmatpush.bf16.msra.mxu0 %v3949
        %5198 = vmatpush.bf16.msra.mxu0 %v3933
        %5199 = vmatpush.bf16.msra.mxu0 %v3917
        %5200 = vmatpush.bf16.msra.mxu0 %v3901
        %5201 = vmatmul.bf16.gmra.mxu0 %v1026
        %v5202 = vpop.f32.mrf.mxu0
        %v5203 = vadd.f32 %v5190, %v5202
        %v5204 = vpop.f32.mrf.mxu0
        %5205 = vdwg.mxu0
        %5206 = vmatpush.bf16.msra.mxu0 %v4141
        %5207 = vmatpush.bf16.msra.mxu0 %v4125
        %5208 = vmatpush.bf16.msra.mxu0 %v4109
        %5209 = vmatpush.bf16.msra.mxu0 %v4093
        %5210 = vmatpush.bf16.msra.mxu0 %v4077
        %5211 = vmatpush.bf16.msra.mxu0 %v4061
        %5212 = vmatpush.bf16.msra.mxu0 %v4045
        %5213 = vmatpush.bf16.msra.mxu0 %v4029
        %5214 = vmatmul.bf16.gmra.mxu0 %v1027
        %v5215 = vpop.f32.mrf.mxu0
        %v5216 = vadd.f32 %v5203, %v5215
        %v5217 = vpop.f32.mrf.mxu0
        %5218 = vdwg.mxu0
        %5219 = vmatpush.bf16.msra.mxu0 0
        %5220 = vmatpush.bf16.msra.mxu0 0
        %5221 = vmatpush.bf16.msra.mxu0 0
        %5222 = vmatpush.bf16.msra.mxu0 0
        %5223 = vmatpush.bf16.msra.mxu0 0
        %5224 = vmatpush.bf16.msra.mxu0 0
        %5225 = vmatpush.bf16.msra.mxu0 0
        %5226 = vmatpush.bf16.msra.mxu0 %v4157
        %5227 = vmatmul.bf16.gmra.mxu0 %v4957
        %v5228 = vpop.f32.mrf.mxu0
        %v5229 = vadd.f32 %v5216, %v5228
        %v5230 = vpop.f32.mrf.mxu0
        %5231 = vdwg.mxu0
        %5232 = vmatpush.bf16.msra.mxu0 %v3502
        %5233 = vmatpush.bf16.msra.mxu0 %v3486
        %5234 = vmatpush.bf16.msra.mxu0 %v3470
        %5235 = vmatpush.bf16.msra.mxu0 %v3454
        %5236 = vmatpush.bf16.msra.mxu0 %v3438
        %5237 = vmatpush.bf16.msra.mxu0 %v3422
        %5238 = vmatpush.bf16.msra.mxu0 %v3406
        %5239 = vmatpush.bf16.msra.mxu0 %v3390
        %5240 = vmatmul.bf16.gmra.mxu0 %v1022
        %v5241 = vpop.f32.mrf.mxu0
        %v5242 = vadd.f32 0.0, %v5241
        %v5243 = vpop.f32.mrf.mxu0
        %5244 = vdwg.mxu0
        %5245 = vmatpush.bf16.msra.mxu0 %v3630
        %5246 = vmatpush.bf16.msra.mxu0 %v3614
        %5247 = vmatpush.bf16.msra.mxu0 %v3598
        %5248 = vmatpush.bf16.msra.mxu0 %v3582
        %5249 = vmatpush.bf16.msra.mxu0 %v3566
        %5250 = vmatpush.bf16.msra.mxu0 %v3550
        %5251 = vmatpush.bf16.msra.mxu0 %v3534
        %5252 = vmatpush.bf16.msra.mxu0 %v3518
        %5253 = vmatmul.bf16.gmra.mxu0 %v1023
        %v5254 = vpop.f32.mrf.mxu0
        %v5255 = vadd.f32 %v5242, %v5254
        %v5256 = vpop.f32.mrf.mxu0
        %5257 = vdwg.mxu0
        %5258 = vmatpush.bf16.msra.mxu0 %v3758
        %5259 = vmatpush.bf16.msra.mxu0 %v3742
        %5260 = vmatpush.bf16.msra.mxu0 %v3726
        %5261 = vmatpush.bf16.msra.mxu0 %v3710
        %5262 = vmatpush.bf16.msra.mxu0 %v3694
        %5263 = vmatpush.bf16.msra.mxu0 %v3678
        %5264 = vmatpush.bf16.msra.mxu0 %v3662
        %5265 = vmatpush.bf16.msra.mxu0 %v3646
        %5266 = vmatmul.bf16.gmra.mxu0 %v1024
        %v5267 = vpop.f32.mrf.mxu0
        %v5268 = vadd.f32 %v5255, %v5267
        %v5269 = vpop.f32.mrf.mxu0
        %5270 = vdwg.mxu0
        %5271 = vmatpush.bf16.msra.mxu0 %v3886
        %5272 = vmatpush.bf16.msra.mxu0 %v3870
        %5273 = vmatpush.bf16.msra.mxu0 %v3854
        %5274 = vmatpush.bf16.msra.mxu0 %v3838
        %5275 = vmatpush.bf16.msra.mxu0 %v3822
        %5276 = vmatpush.bf16.msra.mxu0 %v3806
        %5277 = vmatpush.bf16.msra.mxu0 %v3790
        %5278 = vmatpush.bf16.msra.mxu0 %v3774
        %5279 = vmatmul.bf16.gmra.mxu0 %v1025
        %v5280 = vpop.f32.mrf.mxu0
        %v5281 = vadd.f32 %v5268, %v5280
        %v5282 = vpop.f32.mrf.mxu0
        %5283 = vdwg.mxu0
        %5284 = vmatpush.bf16.msra.mxu0 %v4014
        %5285 = vmatpush.bf16.msra.mxu0 %v3998
        %5286 = vmatpush.bf16.msra.mxu0 %v3982
        %5287 = vmatpush.bf16.msra.mxu0 %v3966
        %5288 = vmatpush.bf16.msra.mxu0 %v3950
        %5289 = vmatpush.bf16.msra.mxu0 %v3934
        %5290 = vmatpush.bf16.msra.mxu0 %v3918
        %5291 = vmatpush.bf16.msra.mxu0 %v3902
        %5292 = vmatmul.bf16.gmra.mxu0 %v1026
        %v5293 = vpop.f32.mrf.mxu0
        %v5294 = vadd.f32 %v5281, %v5293
        %v5295 = vpop.f32.mrf.mxu0
        %5296 = vdwg.mxu0
        %5297 = vmatpush.bf16.msra.mxu0 %v4142
        %5298 = vmatpush.bf16.msra.mxu0 %v4126
        %5299 = vmatpush.bf16.msra.mxu0 %v4110
        %5300 = vmatpush.bf16.msra.mxu0 %v4094
        %5301 = vmatpush.bf16.msra.mxu0 %v4078
        %5302 = vmatpush.bf16.msra.mxu0 %v4062
        %5303 = vmatpush.bf16.msra.mxu0 %v4046
        %5304 = vmatpush.bf16.msra.mxu0 %v4030
        %5305 = vmatmul.bf16.gmra.mxu0 %v1027
        %v5306 = vpop.f32.mrf.mxu0
        %v5307 = vadd.f32 %v5294, %v5306
        %v5308 = vpop.f32.mrf.mxu0
        %5309 = vdwg.mxu0
        %5310 = vmatpush.bf16.msra.mxu0 0
        %5311 = vmatpush.bf16.msra.mxu0 0
        %5312 = vmatpush.bf16.msra.mxu0 0
        %5313 = vmatpush.bf16.msra.mxu0 0
        %5314 = vmatpush.bf16.msra.mxu0 0
        %5315 = vmatpush.bf16.msra.mxu0 0
        %5316 = vmatpush.bf16.msra.mxu0 0
        %5317 = vmatpush.bf16.msra.mxu0 %v4158
        %5318 = vmatmul.bf16.gmra.mxu0 %v4957
        %v5319 = vpop.f32.mrf.mxu0
        %v5320 = vadd.f32 %v5307, %v5319
        %v5321 = vpop.f32.mrf.mxu0
        %5322 = vdwg.mxu0
        %5323 = vmatpush.bf16.msra.mxu0 %v3503
        %5324 = vmatpush.bf16.msra.mxu0 %v3487
        %5325 = vmatpush.bf16.msra.mxu0 %v3471
        %5326 = vmatpush.bf16.msra.mxu0 %v3455
        %5327 = vmatpush.bf16.msra.mxu0 %v3439
        %5328 = vmatpush.bf16.msra.mxu0 %v3423
        %5329 = vmatpush.bf16.msra.mxu0 %v3407
        %5330 = vmatpush.bf16.msra.mxu0 %v3391
        %5331 = vmatmul.bf16.gmra.mxu0 %v1022
        %v5332 = vpop.f32.mrf.mxu0
        %v5333 = vadd.f32 0.0, %v5332
        %v5334 = vpop.f32.mrf.mxu0
        %5335 = vdwg.mxu0
        %5336 = vmatpush.bf16.msra.mxu0 %v3631
        %5337 = vmatpush.bf16.msra.mxu0 %v3615
        %5338 = vmatpush.bf16.msra.mxu0 %v3599
        %5339 = vmatpush.bf16.msra.mxu0 %v3583
        %5340 = vmatpush.bf16.msra.mxu0 %v3567
        %5341 = vmatpush.bf16.msra.mxu0 %v3551
        %5342 = vmatpush.bf16.msra.mxu0 %v3535
        %5343 = vmatpush.bf16.msra.mxu0 %v3519
        %5344 = vmatmul.bf16.gmra.mxu0 %v1023
        %v5345 = vpop.f32.mrf.mxu0
        %v5346 = vadd.f32 %v5333, %v5345
        %v5347 = vpop.f32.mrf.mxu0
        %5348 = vdwg.mxu0
        %5349 = vmatpush.bf16.msra.mxu0 %v3759
        %5350 = vmatpush.bf16.msra.mxu0 %v3743
        %5351 = vmatpush.bf16.msra.mxu0 %v3727
        %5352 = vmatpush.bf16.msra.mxu0 %v3711
        %5353 = vmatpush.bf16.msra.mxu0 %v3695
        %5354 = vmatpush.bf16.msra.mxu0 %v3679
        %5355 = vmatpush.bf16.msra.mxu0 %v3663
        %5356 = vmatpush.bf16.msra.mxu0 %v3647
        %5357 = vmatmul.bf16.gmra.mxu0 %v1024
        %v5358 = vpop.f32.mrf.mxu0
        %v5359 = vadd.f32 %v5346, %v5358
        %v5360 = vpop.f32.mrf.mxu0
        %5361 = vdwg.mxu0
        %5362 = vmatpush.bf16.msra.mxu0 %v3887
        %5363 = vmatpush.bf16.msra.mxu0 %v3871
        %5364 = vmatpush.bf16.msra.mxu0 %v3855
        %5365 = vmatpush.bf16.msra.mxu0 %v3839
        %5366 = vmatpush.bf16.msra.mxu0 %v3823
        %5367 = vmatpush.bf16.msra.mxu0 %v3807
        %5368 = vmatpush.bf16.msra.mxu0 %v3791
        %5369 = vmatpush.bf16.msra.mxu0 %v3775
        %5370 = vmatmul.bf16.gmra.mxu0 %v1025
        %v5371 = vpop.f32.mrf.mxu0
        %v5372 = vadd.f32 %v5359, %v5371
        %v5373 = vpop.f32.mrf.mxu0
        %5374 = vdwg.mxu0
        %5375 = vmatpush.bf16.msra.mxu0 %v4015
        %5376 = vmatpush.bf16.msra.mxu0 %v3999
        %5377 = vmatpush.bf16.msra.mxu0 %v3983
        %5378 = vmatpush.bf16.msra.mxu0 %v3967
        %5379 = vmatpush.bf16.msra.mxu0 %v3951
        %5380 = vmatpush.bf16.msra.mxu0 %v3935
        %5381 = vmatpush.bf16.msra.mxu0 %v3919
        %5382 = vmatpush.bf16.msra.mxu0 %v3903
        %5383 = vmatmul.bf16.gmra.mxu0 %v1026
        %v5384 = vpop.f32.mrf.mxu0
        %v5385 = vadd.f32 %v5372, %v5384
        %v5386 = vpop.f32.mrf.mxu0
        %5387 = vdwg.mxu0
        %5388 = vmatpush.bf16.msra.mxu0 %v4143
        %5389 = vmatpush.bf16.msra.mxu0 %v4127
        %5390 = vmatpush.bf16.msra.mxu0 %v4111
        %5391 = vmatpush.bf16.msra.mxu0 %v4095
        %5392 = vmatpush.bf16.msra.mxu0 %v4079
        %5393 = vmatpush.bf16.msra.mxu0 %v4063
        %5394 = vmatpush.bf16.msra.mxu0 %v4047
        %5395 = vmatpush.bf16.msra.mxu0 %v4031
        %5396 = vmatmul.bf16.gmra.mxu0 %v1027
        %v5397 = vpop.f32.mrf.mxu0
        %v5398 = vadd.f32 %v5385, %v5397
        %v5399 = vpop.f32.mrf.mxu0
        %5400 = vdwg.mxu0
        %5401 = vmatpush.bf16.msra.mxu0 0
        %5402 = vmatpush.bf16.msra.mxu0 0
        %5403 = vmatpush.bf16.msra.mxu0 0
        %5404 = vmatpush.bf16.msra.mxu0 0
        %5405 = vmatpush.bf16.msra.mxu0 0
        %5406 = vmatpush.bf16.msra.mxu0 0
        %5407 = vmatpush.bf16.msra.mxu0 0
        %5408 = vmatpush.bf16.msra.mxu0 %v4159
        %5409 = vmatmul.bf16.gmra.mxu0 %v4957
        %v5410 = vpop.f32.mrf.mxu0
        %v5411 = vadd.f32 %v5398, %v5410
        %v5412 = vpop.f32.mrf.mxu0
        %5413 = vdwg.mxu0
        %5414 = vmatpush.bf16.msra.mxu0 %v3504
        %5415 = vmatpush.bf16.msra.mxu0 %v3488
        %5416 = vmatpush.bf16.msra.mxu0 %v3472
        %5417 = vmatpush.bf16.msra.mxu0 %v3456
        %5418 = vmatpush.bf16.msra.mxu0 %v3440
        %5419 = vmatpush.bf16.msra.mxu0 %v3424
        %5420 = vmatpush.bf16.msra.mxu0 %v3408
        %5421 = vmatpush.bf16.msra.mxu0 %v3392
        %5422 = vmatmul.bf16.gmra.mxu0 %v1022
        %v5423 = vpop.f32.mrf.mxu0
        %v5424 = vadd.f32 0.0, %v5423
        %v5425 = vpop.f32.mrf.mxu0
        %5426 = vdwg.mxu0
        %5427 = vmatpush.bf16.msra.mxu0 %v3632
        %5428 = vmatpush.bf16.msra.mxu0 %v3616
        %5429 = vmatpush.bf16.msra.mxu0 %v3600
        %5430 = vmatpush.bf16.msra.mxu0 %v3584
        %5431 = vmatpush.bf16.msra.mxu0 %v3568
        %5432 = vmatpush.bf16.msra.mxu0 %v3552
        %5433 = vmatpush.bf16.msra.mxu0 %v3536
        %5434 = vmatpush.bf16.msra.mxu0 %v3520
        %5435 = vmatmul.bf16.gmra.mxu0 %v1023
        %v5436 = vpop.f32.mrf.mxu0
        %v5437 = vadd.f32 %v5424, %v5436
        %v5438 = vpop.f32.mrf.mxu0
        %5439 = vdwg.mxu0
        %5440 = vmatpush.bf16.msra.mxu0 %v3760
        %5441 = vmatpush.bf16.msra.mxu0 %v3744
        %5442 = vmatpush.bf16.msra.mxu0 %v3728
        %5443 = vmatpush.bf16.msra.mxu0 %v3712
        %5444 = vmatpush.bf16.msra.mxu0 %v3696
        %5445 = vmatpush.bf16.msra.mxu0 %v3680
        %5446 = vmatpush.bf16.msra.mxu0 %v3664
        %5447 = vmatpush.bf16.msra.mxu0 %v3648
        %5448 = vmatmul.bf16.gmra.mxu0 %v1024
        %v5449 = vpop.f32.mrf.mxu0
        %v5450 = vadd.f32 %v5437, %v5449
        %v5451 = vpop.f32.mrf.mxu0
        %5452 = vdwg.mxu0
        %5453 = vmatpush.bf16.msra.mxu0 %v3888
        %5454 = vmatpush.bf16.msra.mxu0 %v3872
        %5455 = vmatpush.bf16.msra.mxu0 %v3856
        %5456 = vmatpush.bf16.msra.mxu0 %v3840
        %5457 = vmatpush.bf16.msra.mxu0 %v3824
        %5458 = vmatpush.bf16.msra.mxu0 %v3808
        %5459 = vmatpush.bf16.msra.mxu0 %v3792
        %5460 = vmatpush.bf16.msra.mxu0 %v3776
        %5461 = vmatmul.bf16.gmra.mxu0 %v1025
        %v5462 = vpop.f32.mrf.mxu0
        %v5463 = vadd.f32 %v5450, %v5462
        %v5464 = vpop.f32.mrf.mxu0
        %5465 = vdwg.mxu0
        %5466 = vmatpush.bf16.msra.mxu0 %v4016
        %5467 = vmatpush.bf16.msra.mxu0 %v4000
        %5468 = vmatpush.bf16.msra.mxu0 %v3984
        %5469 = vmatpush.bf16.msra.mxu0 %v3968
        %5470 = vmatpush.bf16.msra.mxu0 %v3952
        %5471 = vmatpush.bf16.msra.mxu0 %v3936
        %5472 = vmatpush.bf16.msra.mxu0 %v3920
        %5473 = vmatpush.bf16.msra.mxu0 %v3904
        %5474 = vmatmul.bf16.gmra.mxu0 %v1026
        %v5475 = vpop.f32.mrf.mxu0
        %v5476 = vadd.f32 %v5463, %v5475
        %v5477 = vpop.f32.mrf.mxu0
        %5478 = vdwg.mxu0
        %5479 = vmatpush.bf16.msra.mxu0 %v4144
        %5480 = vmatpush.bf16.msra.mxu0 %v4128
        %5481 = vmatpush.bf16.msra.mxu0 %v4112
        %5482 = vmatpush.bf16.msra.mxu0 %v4096
        %5483 = vmatpush.bf16.msra.mxu0 %v4080
        %5484 = vmatpush.bf16.msra.mxu0 %v4064
        %5485 = vmatpush.bf16.msra.mxu0 %v4048
        %5486 = vmatpush.bf16.msra.mxu0 %v4032
        %5487 = vmatmul.bf16.gmra.mxu0 %v1027
        %v5488 = vpop.f32.mrf.mxu0
        %v5489 = vadd.f32 %v5476, %v5488
        %v5490 = vpop.f32.mrf.mxu0
        %5491 = vdwg.mxu0
        %5492 = vmatpush.bf16.msra.mxu0 0
        %5493 = vmatpush.bf16.msra.mxu0 0
        %5494 = vmatpush.bf16.msra.mxu0 0
        %5495 = vmatpush.bf16.msra.mxu0 0
        %5496 = vmatpush.bf16.msra.mxu0 0
        %5497 = vmatpush.bf16.msra.mxu0 0
        %5498 = vmatpush.bf16.msra.mxu0 0
        %5499 = vmatpush.bf16.msra.mxu0 %v4160
        %5500 = vmatmul.bf16.gmra.mxu0 %v4957
        %v5501 = vpop.f32.mrf.mxu0
        %v5502 = vadd.f32 %v5489, %v5501
        %v5503 = vpop.f32.mrf.mxu0
        %5504 = vdwg.mxu0
        %5505 = vmatpush.bf16.msra.mxu0 %v3505
        %5506 = vmatpush.bf16.msra.mxu0 %v3489
        %5507 = vmatpush.bf16.msra.mxu0 %v3473
        %5508 = vmatpush.bf16.msra.mxu0 %v3457
        %5509 = vmatpush.bf16.msra.mxu0 %v3441
        %5510 = vmatpush.bf16.msra.mxu0 %v3425
        %5511 = vmatpush.bf16.msra.mxu0 %v3409
        %5512 = vmatpush.bf16.msra.mxu0 %v3393
        %5513 = vmatmul.bf16.gmra.mxu0 %v1022
        %v5514 = vpop.f32.mrf.mxu0
        %v5515 = vadd.f32 0.0, %v5514
        %v5516 = vpop.f32.mrf.mxu0
        %5517 = vdwg.mxu0
        %5518 = vmatpush.bf16.msra.mxu0 %v3633
        %5519 = vmatpush.bf16.msra.mxu0 %v3617
        %5520 = vmatpush.bf16.msra.mxu0 %v3601
        %5521 = vmatpush.bf16.msra.mxu0 %v3585
        %5522 = vmatpush.bf16.msra.mxu0 %v3569
        %5523 = vmatpush.bf16.msra.mxu0 %v3553
        %5524 = vmatpush.bf16.msra.mxu0 %v3537
        %5525 = vmatpush.bf16.msra.mxu0 %v3521
        %5526 = vmatmul.bf16.gmra.mxu0 %v1023
        %v5527 = vpop.f32.mrf.mxu0
        %v5528 = vadd.f32 %v5515, %v5527
        %v5529 = vpop.f32.mrf.mxu0
        %5530 = vdwg.mxu0
        %5531 = vmatpush.bf16.msra.mxu0 %v3761
        %5532 = vmatpush.bf16.msra.mxu0 %v3745
        %5533 = vmatpush.bf16.msra.mxu0 %v3729
        %5534 = vmatpush.bf16.msra.mxu0 %v3713
        %5535 = vmatpush.bf16.msra.mxu0 %v3697
        %5536 = vmatpush.bf16.msra.mxu0 %v3681
        %5537 = vmatpush.bf16.msra.mxu0 %v3665
        %5538 = vmatpush.bf16.msra.mxu0 %v3649
        %5539 = vmatmul.bf16.gmra.mxu0 %v1024
        %v5540 = vpop.f32.mrf.mxu0
        %v5541 = vadd.f32 %v5528, %v5540
        %v5542 = vpop.f32.mrf.mxu0
        %5543 = vdwg.mxu0
        %5544 = vmatpush.bf16.msra.mxu0 %v3889
        %5545 = vmatpush.bf16.msra.mxu0 %v3873
        %5546 = vmatpush.bf16.msra.mxu0 %v3857
        %5547 = vmatpush.bf16.msra.mxu0 %v3841
        %5548 = vmatpush.bf16.msra.mxu0 %v3825
        %5549 = vmatpush.bf16.msra.mxu0 %v3809
        %5550 = vmatpush.bf16.msra.mxu0 %v3793
        %5551 = vmatpush.bf16.msra.mxu0 %v3777
        %5552 = vmatmul.bf16.gmra.mxu0 %v1025
        %v5553 = vpop.f32.mrf.mxu0
        %v5554 = vadd.f32 %v5541, %v5553
        %v5555 = vpop.f32.mrf.mxu0
        %5556 = vdwg.mxu0
        %5557 = vmatpush.bf16.msra.mxu0 %v4017
        %5558 = vmatpush.bf16.msra.mxu0 %v4001
        %5559 = vmatpush.bf16.msra.mxu0 %v3985
        %5560 = vmatpush.bf16.msra.mxu0 %v3969
        %5561 = vmatpush.bf16.msra.mxu0 %v3953
        %5562 = vmatpush.bf16.msra.mxu0 %v3937
        %5563 = vmatpush.bf16.msra.mxu0 %v3921
        %5564 = vmatpush.bf16.msra.mxu0 %v3905
        %5565 = vmatmul.bf16.gmra.mxu0 %v1026
        %v5566 = vpop.f32.mrf.mxu0
        %v5567 = vadd.f32 %v5554, %v5566
        %v5568 = vpop.f32.mrf.mxu0
        %5569 = vdwg.mxu0
        %5570 = vmatpush.bf16.msra.mxu0 %v4145
        %5571 = vmatpush.bf16.msra.mxu0 %v4129
        %5572 = vmatpush.bf16.msra.mxu0 %v4113
        %5573 = vmatpush.bf16.msra.mxu0 %v4097
        %5574 = vmatpush.bf16.msra.mxu0 %v4081
        %5575 = vmatpush.bf16.msra.mxu0 %v4065
        %5576 = vmatpush.bf16.msra.mxu0 %v4049
        %5577 = vmatpush.bf16.msra.mxu0 %v4033
        %5578 = vmatmul.bf16.gmra.mxu0 %v1027
        %v5579 = vpop.f32.mrf.mxu0
        %v5580 = vadd.f32 %v5567, %v5579
        %v5581 = vpop.f32.mrf.mxu0
        %5582 = vdwg.mxu0
        %5583 = vmatpush.bf16.msra.mxu0 0
        %5584 = vmatpush.bf16.msra.mxu0 0
        %5585 = vmatpush.bf16.msra.mxu0 0
        %5586 = vmatpush.bf16.msra.mxu0 0
        %5587 = vmatpush.bf16.msra.mxu0 0
        %5588 = vmatpush.bf16.msra.mxu0 0
        %5589 = vmatpush.bf16.msra.mxu0 0
        %5590 = vmatpush.bf16.msra.mxu0 %v4161
        %5591 = vmatmul.bf16.gmra.mxu0 %v4957
        %v5592 = vpop.f32.mrf.mxu0
        %v5593 = vadd.f32 %v5580, %v5592
        %v5594 = vpop.f32.mrf.mxu0
        %5595 = vdwg.mxu0
        %5596 = vmatpush.bf16.msra.mxu0 %v3506
        %5597 = vmatpush.bf16.msra.mxu0 %v3490
        %5598 = vmatpush.bf16.msra.mxu0 %v3474
        %5599 = vmatpush.bf16.msra.mxu0 %v3458
        %5600 = vmatpush.bf16.msra.mxu0 %v3442
        %5601 = vmatpush.bf16.msra.mxu0 %v3426
        %5602 = vmatpush.bf16.msra.mxu0 %v3410
        %5603 = vmatpush.bf16.msra.mxu0 %v3394
        %5604 = vmatmul.bf16.gmra.mxu0 %v1022
        %v5605 = vpop.f32.mrf.mxu0
        %v5606 = vadd.f32 0.0, %v5605
        %v5607 = vpop.f32.mrf.mxu0
        %5608 = vdwg.mxu0
        %5609 = vmatpush.bf16.msra.mxu0 %v3634
        %5610 = vmatpush.bf16.msra.mxu0 %v3618
        %5611 = vmatpush.bf16.msra.mxu0 %v3602
        %5612 = vmatpush.bf16.msra.mxu0 %v3586
        %5613 = vmatpush.bf16.msra.mxu0 %v3570
        %5614 = vmatpush.bf16.msra.mxu0 %v3554
        %5615 = vmatpush.bf16.msra.mxu0 %v3538
        %5616 = vmatpush.bf16.msra.mxu0 %v3522
        %5617 = vmatmul.bf16.gmra.mxu0 %v1023
        %v5618 = vpop.f32.mrf.mxu0
        %v5619 = vadd.f32 %v5606, %v5618
        %v5620 = vpop.f32.mrf.mxu0
        %5621 = vdwg.mxu0
        %5622 = vmatpush.bf16.msra.mxu0 %v3762
        %5623 = vmatpush.bf16.msra.mxu0 %v3746
        %5624 = vmatpush.bf16.msra.mxu0 %v3730
        %5625 = vmatpush.bf16.msra.mxu0 %v3714
        %5626 = vmatpush.bf16.msra.mxu0 %v3698
        %5627 = vmatpush.bf16.msra.mxu0 %v3682
        %5628 = vmatpush.bf16.msra.mxu0 %v3666
        %5629 = vmatpush.bf16.msra.mxu0 %v3650
        %5630 = vmatmul.bf16.gmra.mxu0 %v1024
        %v5631 = vpop.f32.mrf.mxu0
        %v5632 = vadd.f32 %v5619, %v5631
        %v5633 = vpop.f32.mrf.mxu0
        %5634 = vdwg.mxu0
        %5635 = vmatpush.bf16.msra.mxu0 %v3890
        %5636 = vmatpush.bf16.msra.mxu0 %v3874
        %5637 = vmatpush.bf16.msra.mxu0 %v3858
        %5638 = vmatpush.bf16.msra.mxu0 %v3842
        %5639 = vmatpush.bf16.msra.mxu0 %v3826
        %5640 = vmatpush.bf16.msra.mxu0 %v3810
        %5641 = vmatpush.bf16.msra.mxu0 %v3794
        %5642 = vmatpush.bf16.msra.mxu0 %v3778
        %5643 = vmatmul.bf16.gmra.mxu0 %v1025
        %v5644 = vpop.f32.mrf.mxu0
        %v5645 = vadd.f32 %v5632, %v5644
        %v5646 = vpop.f32.mrf.mxu0
        %5647 = vdwg.mxu0
        %5648 = vmatpush.bf16.msra.mxu0 %v4018
        %5649 = vmatpush.bf16.msra.mxu0 %v4002
        %5650 = vmatpush.bf16.msra.mxu0 %v3986
        %5651 = vmatpush.bf16.msra.mxu0 %v3970
        %5652 = vmatpush.bf16.msra.mxu0 %v3954
        %5653 = vmatpush.bf16.msra.mxu0 %v3938
        %5654 = vmatpush.bf16.msra.mxu0 %v3922
        %5655 = vmatpush.bf16.msra.mxu0 %v3906
        %5656 = vmatmul.bf16.gmra.mxu0 %v1026
        %v5657 = vpop.f32.mrf.mxu0
        %v5658 = vadd.f32 %v5645, %v5657
        %v5659 = vpop.f32.mrf.mxu0
        %5660 = vdwg.mxu0
        %5661 = vmatpush.bf16.msra.mxu0 %v4146
        %5662 = vmatpush.bf16.msra.mxu0 %v4130
        %5663 = vmatpush.bf16.msra.mxu0 %v4114
        %5664 = vmatpush.bf16.msra.mxu0 %v4098
        %5665 = vmatpush.bf16.msra.mxu0 %v4082
        %5666 = vmatpush.bf16.msra.mxu0 %v4066
        %5667 = vmatpush.bf16.msra.mxu0 %v4050
        %5668 = vmatpush.bf16.msra.mxu0 %v4034
        %5669 = vmatmul.bf16.gmra.mxu0 %v1027
        %v5670 = vpop.f32.mrf.mxu0
        %v5671 = vadd.f32 %v5658, %v5670
        %v5672 = vpop.f32.mrf.mxu0
        %5673 = vdwg.mxu0
        %5674 = vmatpush.bf16.msra.mxu0 0
        %5675 = vmatpush.bf16.msra.mxu0 0
        %5676 = vmatpush.bf16.msra.mxu0 0
        %5677 = vmatpush.bf16.msra.mxu0 0
        %5678 = vmatpush.bf16.msra.mxu0 0
        %5679 = vmatpush.bf16.msra.mxu0 0
        %5680 = vmatpush.bf16.msra.mxu0 0
        %5681 = vmatpush.bf16.msra.mxu0 %v4162
        %5682 = vmatmul.bf16.gmra.mxu0 %v4957
        %v5683 = vpop.f32.mrf.mxu0
        %v5684 = vadd.f32 %v5671, %v5683
        %v5685 = vpop.f32.mrf.mxu0
        %5686 = vdwg.mxu0
        %5687 = vmatpush.bf16.msra.mxu0 %v3507
        %5688 = vmatpush.bf16.msra.mxu0 %v3491
        %5689 = vmatpush.bf16.msra.mxu0 %v3475
        %5690 = vmatpush.bf16.msra.mxu0 %v3459
        %5691 = vmatpush.bf16.msra.mxu0 %v3443
        %5692 = vmatpush.bf16.msra.mxu0 %v3427
        %5693 = vmatpush.bf16.msra.mxu0 %v3411
        %5694 = vmatpush.bf16.msra.mxu0 %v3395
        %5695 = vmatmul.bf16.gmra.mxu0 %v1022
        %v5696 = vpop.f32.mrf.mxu0
        %v5697 = vadd.f32 0.0, %v5696
        %v5698 = vpop.f32.mrf.mxu0
        %5699 = vdwg.mxu0
        %5700 = vmatpush.bf16.msra.mxu0 %v3635
        %5701 = vmatpush.bf16.msra.mxu0 %v3619
        %5702 = vmatpush.bf16.msra.mxu0 %v3603
        %5703 = vmatpush.bf16.msra.mxu0 %v3587
        %5704 = vmatpush.bf16.msra.mxu0 %v3571
        %5705 = vmatpush.bf16.msra.mxu0 %v3555
        %5706 = vmatpush.bf16.msra.mxu0 %v3539
        %5707 = vmatpush.bf16.msra.mxu0 %v3523
        %5708 = vmatmul.bf16.gmra.mxu0 %v1023
        %v5709 = vpop.f32.mrf.mxu0
        %v5710 = vadd.f32 %v5697, %v5709
        %v5711 = vpop.f32.mrf.mxu0
        %5712 = vdwg.mxu0
        %5713 = vmatpush.bf16.msra.mxu0 %v3763
        %5714 = vmatpush.bf16.msra.mxu0 %v3747
        %5715 = vmatpush.bf16.msra.mxu0 %v3731
        %5716 = vmatpush.bf16.msra.mxu0 %v3715
        %5717 = vmatpush.bf16.msra.mxu0 %v3699
        %5718 = vmatpush.bf16.msra.mxu0 %v3683
        %5719 = vmatpush.bf16.msra.mxu0 %v3667
        %5720 = vmatpush.bf16.msra.mxu0 %v3651
        %5721 = vmatmul.bf16.gmra.mxu0 %v1024
        %v5722 = vpop.f32.mrf.mxu0
        %v5723 = vadd.f32 %v5710, %v5722
        %v5724 = vpop.f32.mrf.mxu0
        %5725 = vdwg.mxu0
        %5726 = vmatpush.bf16.msra.mxu0 %v3891
        %5727 = vmatpush.bf16.msra.mxu0 %v3875
        %5728 = vmatpush.bf16.msra.mxu0 %v3859
        %5729 = vmatpush.bf16.msra.mxu0 %v3843
        %5730 = vmatpush.bf16.msra.mxu0 %v3827
        %5731 = vmatpush.bf16.msra.mxu0 %v3811
        %5732 = vmatpush.bf16.msra.mxu0 %v3795
        %5733 = vmatpush.bf16.msra.mxu0 %v3779
        %5734 = vmatmul.bf16.gmra.mxu0 %v1025
        %v5735 = vpop.f32.mrf.mxu0
        %v5736 = vadd.f32 %v5723, %v5735
        %v5737 = vpop.f32.mrf.mxu0
        %5738 = vdwg.mxu0
        %5739 = vmatpush.bf16.msra.mxu0 %v4019
        %5740 = vmatpush.bf16.msra.mxu0 %v4003
        %5741 = vmatpush.bf16.msra.mxu0 %v3987
        %5742 = vmatpush.bf16.msra.mxu0 %v3971
        %5743 = vmatpush.bf16.msra.mxu0 %v3955
        %5744 = vmatpush.bf16.msra.mxu0 %v3939
        %5745 = vmatpush.bf16.msra.mxu0 %v3923
        %5746 = vmatpush.bf16.msra.mxu0 %v3907
        %5747 = vmatmul.bf16.gmra.mxu0 %v1026
        %v5748 = vpop.f32.mrf.mxu0
        %v5749 = vadd.f32 %v5736, %v5748
        %v5750 = vpop.f32.mrf.mxu0
        %5751 = vdwg.mxu0
        %5752 = vmatpush.bf16.msra.mxu0 %v4147
        %5753 = vmatpush.bf16.msra.mxu0 %v4131
        %5754 = vmatpush.bf16.msra.mxu0 %v4115
        %5755 = vmatpush.bf16.msra.mxu0 %v4099
        %5756 = vmatpush.bf16.msra.mxu0 %v4083
        %5757 = vmatpush.bf16.msra.mxu0 %v4067
        %5758 = vmatpush.bf16.msra.mxu0 %v4051
        %5759 = vmatpush.bf16.msra.mxu0 %v4035
        %5760 = vmatmul.bf16.gmra.mxu0 %v1027
        %v5761 = vpop.f32.mrf.mxu0
        %v5762 = vadd.f32 %v5749, %v5761
        %v5763 = vpop.f32.mrf.mxu0
        %5764 = vdwg.mxu0
        %5765 = vmatpush.bf16.msra.mxu0 0
        %5766 = vmatpush.bf16.msra.mxu0 0
        %5767 = vmatpush.bf16.msra.mxu0 0
        %5768 = vmatpush.bf16.msra.mxu0 0
        %5769 = vmatpush.bf16.msra.mxu0 0
        %5770 = vmatpush.bf16.msra.mxu0 0
        %5771 = vmatpush.bf16.msra.mxu0 0
        %5772 = vmatpush.bf16.msra.mxu0 %v4163
        %5773 = vmatmul.bf16.gmra.mxu0 %v4957
        %v5774 = vpop.f32.mrf.mxu0
        %v5775 = vadd.f32 %v5762, %v5774
        %v5776 = vpop.f32.mrf.mxu0
        %5777 = vdwg.mxu0
        %5778 = vmatpush.bf16.msra.mxu0 %v3508
        %5779 = vmatpush.bf16.msra.mxu0 %v3492
        %5780 = vmatpush.bf16.msra.mxu0 %v3476
        %5781 = vmatpush.bf16.msra.mxu0 %v3460
        %5782 = vmatpush.bf16.msra.mxu0 %v3444
        %5783 = vmatpush.bf16.msra.mxu0 %v3428
        %5784 = vmatpush.bf16.msra.mxu0 %v3412
        %5785 = vmatpush.bf16.msra.mxu0 %v3396
        %5786 = vmatmul.bf16.gmra.mxu0 %v1022
        %v5787 = vpop.f32.mrf.mxu0
        %v5788 = vadd.f32 0.0, %v5787
        %v5789 = vpop.f32.mrf.mxu0
        %5790 = vdwg.mxu0
        %5791 = vmatpush.bf16.msra.mxu0 %v3636
        %5792 = vmatpush.bf16.msra.mxu0 %v3620
        %5793 = vmatpush.bf16.msra.mxu0 %v3604
        %5794 = vmatpush.bf16.msra.mxu0 %v3588
        %5795 = vmatpush.bf16.msra.mxu0 %v3572
        %5796 = vmatpush.bf16.msra.mxu0 %v3556
        %5797 = vmatpush.bf16.msra.mxu0 %v3540
        %5798 = vmatpush.bf16.msra.mxu0 %v3524
        %5799 = vmatmul.bf16.gmra.mxu0 %v1023
        %v5800 = vpop.f32.mrf.mxu0
        %v5801 = vadd.f32 %v5788, %v5800
        %v5802 = vpop.f32.mrf.mxu0
        %5803 = vdwg.mxu0
        %5804 = vmatpush.bf16.msra.mxu0 %v3764
        %5805 = vmatpush.bf16.msra.mxu0 %v3748
        %5806 = vmatpush.bf16.msra.mxu0 %v3732
        %5807 = vmatpush.bf16.msra.mxu0 %v3716
        %5808 = vmatpush.bf16.msra.mxu0 %v3700
        %5809 = vmatpush.bf16.msra.mxu0 %v3684
        %5810 = vmatpush.bf16.msra.mxu0 %v3668
        %5811 = vmatpush.bf16.msra.mxu0 %v3652
        %5812 = vmatmul.bf16.gmra.mxu0 %v1024
        %v5813 = vpop.f32.mrf.mxu0
        %v5814 = vadd.f32 %v5801, %v5813
        %v5815 = vpop.f32.mrf.mxu0
        %5816 = vdwg.mxu0
        %5817 = vmatpush.bf16.msra.mxu0 %v3892
        %5818 = vmatpush.bf16.msra.mxu0 %v3876
        %5819 = vmatpush.bf16.msra.mxu0 %v3860
        %5820 = vmatpush.bf16.msra.mxu0 %v3844
        %5821 = vmatpush.bf16.msra.mxu0 %v3828
        %5822 = vmatpush.bf16.msra.mxu0 %v3812
        %5823 = vmatpush.bf16.msra.mxu0 %v3796
        %5824 = vmatpush.bf16.msra.mxu0 %v3780
        %5825 = vmatmul.bf16.gmra.mxu0 %v1025
        %v5826 = vpop.f32.mrf.mxu0
        %v5827 = vadd.f32 %v5814, %v5826
        %v5828 = vpop.f32.mrf.mxu0
        %5829 = vdwg.mxu0
        %5830 = vmatpush.bf16.msra.mxu0 %v4020
        %5831 = vmatpush.bf16.msra.mxu0 %v4004
        %5832 = vmatpush.bf16.msra.mxu0 %v3988
        %5833 = vmatpush.bf16.msra.mxu0 %v3972
        %5834 = vmatpush.bf16.msra.mxu0 %v3956
        %5835 = vmatpush.bf16.msra.mxu0 %v3940
        %5836 = vmatpush.bf16.msra.mxu0 %v3924
        %5837 = vmatpush.bf16.msra.mxu0 %v3908
        %5838 = vmatmul.bf16.gmra.mxu0 %v1026
        %v5839 = vpop.f32.mrf.mxu0
        %v5840 = vadd.f32 %v5827, %v5839
        %v5841 = vpop.f32.mrf.mxu0
        %5842 = vdwg.mxu0
        %5843 = vmatpush.bf16.msra.mxu0 %v4148
        %5844 = vmatpush.bf16.msra.mxu0 %v4132
        %5845 = vmatpush.bf16.msra.mxu0 %v4116
        %5846 = vmatpush.bf16.msra.mxu0 %v4100
        %5847 = vmatpush.bf16.msra.mxu0 %v4084
        %5848 = vmatpush.bf16.msra.mxu0 %v4068
        %5849 = vmatpush.bf16.msra.mxu0 %v4052
        %5850 = vmatpush.bf16.msra.mxu0 %v4036
        %5851 = vmatmul.bf16.gmra.mxu0 %v1027
        %v5852 = vpop.f32.mrf.mxu0
        %v5853 = vadd.f32 %v5840, %v5852
        %v5854 = vpop.f32.mrf.mxu0
        %5855 = vdwg.mxu0
        %5856 = vmatpush.bf16.msra.mxu0 0
        %5857 = vmatpush.bf16.msra.mxu0 0
        %5858 = vmatpush.bf16.msra.mxu0 0
        %5859 = vmatpush.bf16.msra.mxu0 0
        %5860 = vmatpush.bf16.msra.mxu0 0
        %5861 = vmatpush.bf16.msra.mxu0 0
        %5862 = vmatpush.bf16.msra.mxu0 0
        %5863 = vmatpush.bf16.msra.mxu0 %v4164
        %5864 = vmatmul.bf16.gmra.mxu0 %v4957
        %v5865 = vpop.f32.mrf.mxu0
        %v5866 = vadd.f32 %v5853, %v5865
        %v5867 = vpop.f32.mrf.mxu0
        %5868 = vdwg.mxu0
        %5869 = vmatpush.bf16.msra.mxu0 %v3509
        %5870 = vmatpush.bf16.msra.mxu0 %v3493
        %5871 = vmatpush.bf16.msra.mxu0 %v3477
        %5872 = vmatpush.bf16.msra.mxu0 %v3461
        %5873 = vmatpush.bf16.msra.mxu0 %v3445
        %5874 = vmatpush.bf16.msra.mxu0 %v3429
        %5875 = vmatpush.bf16.msra.mxu0 %v3413
        %5876 = vmatpush.bf16.msra.mxu0 %v3397
        %5877 = vmatmul.bf16.gmra.mxu0 %v1022
        %v5878 = vpop.f32.mrf.mxu0
        %v5879 = vadd.f32 0.0, %v5878
        %v5880 = vpop.f32.mrf.mxu0
        %5881 = vdwg.mxu0
        %5882 = vmatpush.bf16.msra.mxu0 %v3637
        %5883 = vmatpush.bf16.msra.mxu0 %v3621
        %5884 = vmatpush.bf16.msra.mxu0 %v3605
        %5885 = vmatpush.bf16.msra.mxu0 %v3589
        %5886 = vmatpush.bf16.msra.mxu0 %v3573
        %5887 = vmatpush.bf16.msra.mxu0 %v3557
        %5888 = vmatpush.bf16.msra.mxu0 %v3541
        %5889 = vmatpush.bf16.msra.mxu0 %v3525
        %5890 = vmatmul.bf16.gmra.mxu0 %v1023
        %v5891 = vpop.f32.mrf.mxu0
        %v5892 = vadd.f32 %v5879, %v5891
        %v5893 = vpop.f32.mrf.mxu0
        %5894 = vdwg.mxu0
        %5895 = vmatpush.bf16.msra.mxu0 %v3765
        %5896 = vmatpush.bf16.msra.mxu0 %v3749
        %5897 = vmatpush.bf16.msra.mxu0 %v3733
        %5898 = vmatpush.bf16.msra.mxu0 %v3717
        %5899 = vmatpush.bf16.msra.mxu0 %v3701
        %5900 = vmatpush.bf16.msra.mxu0 %v3685
        %5901 = vmatpush.bf16.msra.mxu0 %v3669
        %5902 = vmatpush.bf16.msra.mxu0 %v3653
        %5903 = vmatmul.bf16.gmra.mxu0 %v1024
        %v5904 = vpop.f32.mrf.mxu0
        %v5905 = vadd.f32 %v5892, %v5904
        %v5906 = vpop.f32.mrf.mxu0
        %5907 = vdwg.mxu0
        %5908 = vmatpush.bf16.msra.mxu0 %v3893
        %5909 = vmatpush.bf16.msra.mxu0 %v3877
        %5910 = vmatpush.bf16.msra.mxu0 %v3861
        %5911 = vmatpush.bf16.msra.mxu0 %v3845
        %5912 = vmatpush.bf16.msra.mxu0 %v3829
        %5913 = vmatpush.bf16.msra.mxu0 %v3813
        %5914 = vmatpush.bf16.msra.mxu0 %v3797
        %5915 = vmatpush.bf16.msra.mxu0 %v3781
        %5916 = vmatmul.bf16.gmra.mxu0 %v1025
        %v5917 = vpop.f32.mrf.mxu0
        %v5918 = vadd.f32 %v5905, %v5917
        %v5919 = vpop.f32.mrf.mxu0
        %5920 = vdwg.mxu0
        %5921 = vmatpush.bf16.msra.mxu0 %v4021
        %5922 = vmatpush.bf16.msra.mxu0 %v4005
        %5923 = vmatpush.bf16.msra.mxu0 %v3989
        %5924 = vmatpush.bf16.msra.mxu0 %v3973
        %5925 = vmatpush.bf16.msra.mxu0 %v3957
        %5926 = vmatpush.bf16.msra.mxu0 %v3941
        %5927 = vmatpush.bf16.msra.mxu0 %v3925
        %5928 = vmatpush.bf16.msra.mxu0 %v3909
        %5929 = vmatmul.bf16.gmra.mxu0 %v1026
        %v5930 = vpop.f32.mrf.mxu0
        %v5931 = vadd.f32 %v5918, %v5930
        %v5932 = vpop.f32.mrf.mxu0
        %5933 = vdwg.mxu0
        %5934 = vmatpush.bf16.msra.mxu0 %v4149
        %5935 = vmatpush.bf16.msra.mxu0 %v4133
        %5936 = vmatpush.bf16.msra.mxu0 %v4117
        %5937 = vmatpush.bf16.msra.mxu0 %v4101
        %5938 = vmatpush.bf16.msra.mxu0 %v4085
        %5939 = vmatpush.bf16.msra.mxu0 %v4069
        %5940 = vmatpush.bf16.msra.mxu0 %v4053
        %5941 = vmatpush.bf16.msra.mxu0 %v4037
        %5942 = vmatmul.bf16.gmra.mxu0 %v1027
        %v5943 = vpop.f32.mrf.mxu0
        %v5944 = vadd.f32 %v5931, %v5943
        %v5945 = vpop.f32.mrf.mxu0
        %5946 = vdwg.mxu0
        %5947 = vmatpush.bf16.msra.mxu0 0
        %5948 = vmatpush.bf16.msra.mxu0 0
        %5949 = vmatpush.bf16.msra.mxu0 0
        %5950 = vmatpush.bf16.msra.mxu0 0
        %5951 = vmatpush.bf16.msra.mxu0 0
        %5952 = vmatpush.bf16.msra.mxu0 0
        %5953 = vmatpush.bf16.msra.mxu0 0
        %5954 = vmatpush.bf16.msra.mxu0 %v4165
        %5955 = vmatmul.bf16.gmra.mxu0 %v4957
        %v5956 = vpop.f32.mrf.mxu0
        %v5957 = vadd.f32 %v5944, %v5956
        %v5958 = vpop.f32.mrf.mxu0
        %5959 = vdwg.mxu0
        %5960 = vmatpush.bf16.msra.mxu0 %v3510
        %5961 = vmatpush.bf16.msra.mxu0 %v3494
        %5962 = vmatpush.bf16.msra.mxu0 %v3478
        %5963 = vmatpush.bf16.msra.mxu0 %v3462
        %5964 = vmatpush.bf16.msra.mxu0 %v3446
        %5965 = vmatpush.bf16.msra.mxu0 %v3430
        %5966 = vmatpush.bf16.msra.mxu0 %v3414
        %5967 = vmatpush.bf16.msra.mxu0 %v3398
        %5968 = vmatmul.bf16.gmra.mxu0 %v1022
        %v5969 = vpop.f32.mrf.mxu0
        %v5970 = vadd.f32 0.0, %v5969
        %v5971 = vpop.f32.mrf.mxu0
        %5972 = vdwg.mxu0
        %5973 = vmatpush.bf16.msra.mxu0 %v3638
        %5974 = vmatpush.bf16.msra.mxu0 %v3622
        %5975 = vmatpush.bf16.msra.mxu0 %v3606
        %5976 = vmatpush.bf16.msra.mxu0 %v3590
        %5977 = vmatpush.bf16.msra.mxu0 %v3574
        %5978 = vmatpush.bf16.msra.mxu0 %v3558
        %5979 = vmatpush.bf16.msra.mxu0 %v3542
        %5980 = vmatpush.bf16.msra.mxu0 %v3526
        %5981 = vmatmul.bf16.gmra.mxu0 %v1023
        %v5982 = vpop.f32.mrf.mxu0
        %v5983 = vadd.f32 %v5970, %v5982
        %v5984 = vpop.f32.mrf.mxu0
        %5985 = vdwg.mxu0
        %5986 = vmatpush.bf16.msra.mxu0 %v3766
        %5987 = vmatpush.bf16.msra.mxu0 %v3750
        %5988 = vmatpush.bf16.msra.mxu0 %v3734
        %5989 = vmatpush.bf16.msra.mxu0 %v3718
        %5990 = vmatpush.bf16.msra.mxu0 %v3702
        %5991 = vmatpush.bf16.msra.mxu0 %v3686
        %5992 = vmatpush.bf16.msra.mxu0 %v3670
        %5993 = vmatpush.bf16.msra.mxu0 %v3654
        %5994 = vmatmul.bf16.gmra.mxu0 %v1024
        %v5995 = vpop.f32.mrf.mxu0
        %v5996 = vadd.f32 %v5983, %v5995
        %v5997 = vpop.f32.mrf.mxu0
        %5998 = vdwg.mxu0
        %5999 = vmatpush.bf16.msra.mxu0 %v3894
        %6000 = vmatpush.bf16.msra.mxu0 %v3878
        %6001 = vmatpush.bf16.msra.mxu0 %v3862
        %6002 = vmatpush.bf16.msra.mxu0 %v3846
        %6003 = vmatpush.bf16.msra.mxu0 %v3830
        %6004 = vmatpush.bf16.msra.mxu0 %v3814
        %6005 = vmatpush.bf16.msra.mxu0 %v3798
        %6006 = vmatpush.bf16.msra.mxu0 %v3782
        %6007 = vmatmul.bf16.gmra.mxu0 %v1025
        %v6008 = vpop.f32.mrf.mxu0
        %v6009 = vadd.f32 %v5996, %v6008
        %v6010 = vpop.f32.mrf.mxu0
        %6011 = vdwg.mxu0
        %6012 = vmatpush.bf16.msra.mxu0 %v4022
        %6013 = vmatpush.bf16.msra.mxu0 %v4006
        %6014 = vmatpush.bf16.msra.mxu0 %v3990
        %6015 = vmatpush.bf16.msra.mxu0 %v3974
        %6016 = vmatpush.bf16.msra.mxu0 %v3958
        %6017 = vmatpush.bf16.msra.mxu0 %v3942
        %6018 = vmatpush.bf16.msra.mxu0 %v3926
        %6019 = vmatpush.bf16.msra.mxu0 %v3910
        %6020 = vmatmul.bf16.gmra.mxu0 %v1026
        %v6021 = vpop.f32.mrf.mxu0
        %v6022 = vadd.f32 %v6009, %v6021
        %v6023 = vpop.f32.mrf.mxu0
        %6024 = vdwg.mxu0
        %6025 = vmatpush.bf16.msra.mxu0 %v4150
        %6026 = vmatpush.bf16.msra.mxu0 %v4134
        %6027 = vmatpush.bf16.msra.mxu0 %v4118
        %6028 = vmatpush.bf16.msra.mxu0 %v4102
        %6029 = vmatpush.bf16.msra.mxu0 %v4086
        %6030 = vmatpush.bf16.msra.mxu0 %v4070
        %6031 = vmatpush.bf16.msra.mxu0 %v4054
        %6032 = vmatpush.bf16.msra.mxu0 %v4038
        %6033 = vmatmul.bf16.gmra.mxu0 %v1027
        %v6034 = vpop.f32.mrf.mxu0
        %v6035 = vadd.f32 %v6022, %v6034
        %v6036 = vpop.f32.mrf.mxu0
        %6037 = vdwg.mxu0
        %6038 = vmatpush.bf16.msra.mxu0 0
        %6039 = vmatpush.bf16.msra.mxu0 0
        %6040 = vmatpush.bf16.msra.mxu0 0
        %6041 = vmatpush.bf16.msra.mxu0 0
        %6042 = vmatpush.bf16.msra.mxu0 0
        %6043 = vmatpush.bf16.msra.mxu0 0
        %6044 = vmatpush.bf16.msra.mxu0 0
        %6045 = vmatpush.bf16.msra.mxu0 %v4166
        %6046 = vmatmul.bf16.gmra.mxu0 %v4957
        %v6047 = vpop.f32.mrf.mxu0
        %v6048 = vadd.f32 %v6035, %v6047
        %v6049 = vpop.f32.mrf.mxu0
        %6050 = vdwg.mxu0
        %6051 = vmatpush.bf16.msra.mxu0 %v3511
        %6052 = vmatpush.bf16.msra.mxu0 %v3495
        %6053 = vmatpush.bf16.msra.mxu0 %v3479
        %6054 = vmatpush.bf16.msra.mxu0 %v3463
        %6055 = vmatpush.bf16.msra.mxu0 %v3447
        %6056 = vmatpush.bf16.msra.mxu0 %v3431
        %6057 = vmatpush.bf16.msra.mxu0 %v3415
        %6058 = vmatpush.bf16.msra.mxu0 %v3399
        %6059 = vmatmul.bf16.gmra.mxu0 %v1022
        %v6060 = vpop.f32.mrf.mxu0
        %v6061 = vadd.f32 0.0, %v6060
        %v6062 = vpop.f32.mrf.mxu0
        %6063 = vdwg.mxu0
        %6064 = vmatpush.bf16.msra.mxu0 %v3639
        %6065 = vmatpush.bf16.msra.mxu0 %v3623
        %6066 = vmatpush.bf16.msra.mxu0 %v3607
        %6067 = vmatpush.bf16.msra.mxu0 %v3591
        %6068 = vmatpush.bf16.msra.mxu0 %v3575
        %6069 = vmatpush.bf16.msra.mxu0 %v3559
        %6070 = vmatpush.bf16.msra.mxu0 %v3543
        %6071 = vmatpush.bf16.msra.mxu0 %v3527
        %6072 = vmatmul.bf16.gmra.mxu0 %v1023
        %v6073 = vpop.f32.mrf.mxu0
        %v6074 = vadd.f32 %v6061, %v6073
        %v6075 = vpop.f32.mrf.mxu0
        %6076 = vdwg.mxu0
        %6077 = vmatpush.bf16.msra.mxu0 %v3767
        %6078 = vmatpush.bf16.msra.mxu0 %v3751
        %6079 = vmatpush.bf16.msra.mxu0 %v3735
        %6080 = vmatpush.bf16.msra.mxu0 %v3719
        %6081 = vmatpush.bf16.msra.mxu0 %v3703
        %6082 = vmatpush.bf16.msra.mxu0 %v3687
        %6083 = vmatpush.bf16.msra.mxu0 %v3671
        %6084 = vmatpush.bf16.msra.mxu0 %v3655
        %6085 = vmatmul.bf16.gmra.mxu0 %v1024
        %v6086 = vpop.f32.mrf.mxu0
        %v6087 = vadd.f32 %v6074, %v6086
        %v6088 = vpop.f32.mrf.mxu0
        %6089 = vdwg.mxu0
        %6090 = vmatpush.bf16.msra.mxu0 %v3895
        %6091 = vmatpush.bf16.msra.mxu0 %v3879
        %6092 = vmatpush.bf16.msra.mxu0 %v3863
        %6093 = vmatpush.bf16.msra.mxu0 %v3847
        %6094 = vmatpush.bf16.msra.mxu0 %v3831
        %6095 = vmatpush.bf16.msra.mxu0 %v3815
        %6096 = vmatpush.bf16.msra.mxu0 %v3799
        %6097 = vmatpush.bf16.msra.mxu0 %v3783
        %6098 = vmatmul.bf16.gmra.mxu0 %v1025
        %v6099 = vpop.f32.mrf.mxu0
        %v6100 = vadd.f32 %v6087, %v6099
        %v6101 = vpop.f32.mrf.mxu0
        %6102 = vdwg.mxu0
        %6103 = vmatpush.bf16.msra.mxu0 %v4023
        %6104 = vmatpush.bf16.msra.mxu0 %v4007
        %6105 = vmatpush.bf16.msra.mxu0 %v3991
        %6106 = vmatpush.bf16.msra.mxu0 %v3975
        %6107 = vmatpush.bf16.msra.mxu0 %v3959
        %6108 = vmatpush.bf16.msra.mxu0 %v3943
        %6109 = vmatpush.bf16.msra.mxu0 %v3927
        %6110 = vmatpush.bf16.msra.mxu0 %v3911
        %6111 = vmatmul.bf16.gmra.mxu0 %v1026
        %v6112 = vpop.f32.mrf.mxu0
        %v6113 = vadd.f32 %v6100, %v6112
        %v6114 = vpop.f32.mrf.mxu0
        %6115 = vdwg.mxu0
        %6116 = vmatpush.bf16.msra.mxu0 %v4151
        %6117 = vmatpush.bf16.msra.mxu0 %v4135
        %6118 = vmatpush.bf16.msra.mxu0 %v4119
        %6119 = vmatpush.bf16.msra.mxu0 %v4103
        %6120 = vmatpush.bf16.msra.mxu0 %v4087
        %6121 = vmatpush.bf16.msra.mxu0 %v4071
        %6122 = vmatpush.bf16.msra.mxu0 %v4055
        %6123 = vmatpush.bf16.msra.mxu0 %v4039
        %6124 = vmatmul.bf16.gmra.mxu0 %v1027
        %v6125 = vpop.f32.mrf.mxu0
        %v6126 = vadd.f32 %v6113, %v6125
        %v6127 = vpop.f32.mrf.mxu0
        %6128 = vdwg.mxu0
        %6129 = vmatpush.bf16.msra.mxu0 0
        %6130 = vmatpush.bf16.msra.mxu0 0
        %6131 = vmatpush.bf16.msra.mxu0 0
        %6132 = vmatpush.bf16.msra.mxu0 0
        %6133 = vmatpush.bf16.msra.mxu0 0
        %6134 = vmatpush.bf16.msra.mxu0 0
        %6135 = vmatpush.bf16.msra.mxu0 0
        %6136 = vmatpush.bf16.msra.mxu0 %v4167
        %6137 = vmatmul.bf16.gmra.mxu0 %v4957
        %v6138 = vpop.f32.mrf.mxu0
        %v6139 = vadd.f32 %v6126, %v6138
        %v6140 = vpop.f32.mrf.mxu0
        %6141 = vdwg.mxu0
        %6142 = vmatpush.bf16.msra.mxu0 %v3512
        %6143 = vmatpush.bf16.msra.mxu0 %v3496
        %6144 = vmatpush.bf16.msra.mxu0 %v3480
        %6145 = vmatpush.bf16.msra.mxu0 %v3464
        %6146 = vmatpush.bf16.msra.mxu0 %v3448
        %6147 = vmatpush.bf16.msra.mxu0 %v3432
        %6148 = vmatpush.bf16.msra.mxu0 %v3416
        %6149 = vmatpush.bf16.msra.mxu0 %v3400
        %6150 = vmatmul.bf16.gmra.mxu0 %v1022
        %v6151 = vpop.f32.mrf.mxu0
        %v6152 = vadd.f32 0.0, %v6151
        %v6153 = vpop.f32.mrf.mxu0
        %6154 = vdwg.mxu0
        %6155 = vmatpush.bf16.msra.mxu0 %v3640
        %6156 = vmatpush.bf16.msra.mxu0 %v3624
        %6157 = vmatpush.bf16.msra.mxu0 %v3608
        %6158 = vmatpush.bf16.msra.mxu0 %v3592
        %6159 = vmatpush.bf16.msra.mxu0 %v3576
        %6160 = vmatpush.bf16.msra.mxu0 %v3560
        %6161 = vmatpush.bf16.msra.mxu0 %v3544
        %6162 = vmatpush.bf16.msra.mxu0 %v3528
        %6163 = vmatmul.bf16.gmra.mxu0 %v1023
        %v6164 = vpop.f32.mrf.mxu0
        %v6165 = vadd.f32 %v6152, %v6164
        %v6166 = vpop.f32.mrf.mxu0
        %6167 = vdwg.mxu0
        %6168 = vmatpush.bf16.msra.mxu0 %v3768
        %6169 = vmatpush.bf16.msra.mxu0 %v3752
        %6170 = vmatpush.bf16.msra.mxu0 %v3736
        %6171 = vmatpush.bf16.msra.mxu0 %v3720
        %6172 = vmatpush.bf16.msra.mxu0 %v3704
        %6173 = vmatpush.bf16.msra.mxu0 %v3688
        %6174 = vmatpush.bf16.msra.mxu0 %v3672
        %6175 = vmatpush.bf16.msra.mxu0 %v3656
        %6176 = vmatmul.bf16.gmra.mxu0 %v1024
        %v6177 = vpop.f32.mrf.mxu0
        %v6178 = vadd.f32 %v6165, %v6177
        %v6179 = vpop.f32.mrf.mxu0
        %6180 = vdwg.mxu0
        %6181 = vmatpush.bf16.msra.mxu0 %v3896
        %6182 = vmatpush.bf16.msra.mxu0 %v3880
        %6183 = vmatpush.bf16.msra.mxu0 %v3864
        %6184 = vmatpush.bf16.msra.mxu0 %v3848
        %6185 = vmatpush.bf16.msra.mxu0 %v3832
        %6186 = vmatpush.bf16.msra.mxu0 %v3816
        %6187 = vmatpush.bf16.msra.mxu0 %v3800
        %6188 = vmatpush.bf16.msra.mxu0 %v3784
        %6189 = vmatmul.bf16.gmra.mxu0 %v1025
        %v6190 = vpop.f32.mrf.mxu0
        %v6191 = vadd.f32 %v6178, %v6190
        %v6192 = vpop.f32.mrf.mxu0
        %6193 = vdwg.mxu0
        %6194 = vmatpush.bf16.msra.mxu0 %v4024
        %6195 = vmatpush.bf16.msra.mxu0 %v4008
        %6196 = vmatpush.bf16.msra.mxu0 %v3992
        %6197 = vmatpush.bf16.msra.mxu0 %v3976
        %6198 = vmatpush.bf16.msra.mxu0 %v3960
        %6199 = vmatpush.bf16.msra.mxu0 %v3944
        %6200 = vmatpush.bf16.msra.mxu0 %v3928
        %6201 = vmatpush.bf16.msra.mxu0 %v3912
        %6202 = vmatmul.bf16.gmra.mxu0 %v1026
        %v6203 = vpop.f32.mrf.mxu0
        %v6204 = vadd.f32 %v6191, %v6203
        %v6205 = vpop.f32.mrf.mxu0
        %6206 = vdwg.mxu0
        %6207 = vmatpush.bf16.msra.mxu0 %v4152
        %6208 = vmatpush.bf16.msra.mxu0 %v4136
        %6209 = vmatpush.bf16.msra.mxu0 %v4120
        %6210 = vmatpush.bf16.msra.mxu0 %v4104
        %6211 = vmatpush.bf16.msra.mxu0 %v4088
        %6212 = vmatpush.bf16.msra.mxu0 %v4072
        %6213 = vmatpush.bf16.msra.mxu0 %v4056
        %6214 = vmatpush.bf16.msra.mxu0 %v4040
        %6215 = vmatmul.bf16.gmra.mxu0 %v1027
        %v6216 = vpop.f32.mrf.mxu0
        %v6217 = vadd.f32 %v6204, %v6216
        %v6218 = vpop.f32.mrf.mxu0
        %6219 = vdwg.mxu0
        %6220 = vmatpush.bf16.msra.mxu0 0
        %6221 = vmatpush.bf16.msra.mxu0 0
        %6222 = vmatpush.bf16.msra.mxu0 0
        %6223 = vmatpush.bf16.msra.mxu0 0
        %6224 = vmatpush.bf16.msra.mxu0 0
        %6225 = vmatpush.bf16.msra.mxu0 0
        %6226 = vmatpush.bf16.msra.mxu0 0
        %6227 = vmatpush.bf16.msra.mxu0 %v4168
        %6228 = vmatmul.bf16.gmra.mxu0 %v4957
        %v6229 = vpop.f32.mrf.mxu0
        %v6230 = vadd.f32 %v6217, %v6229
        %v6231 = vpop.f32.mrf.mxu0
        %6232 = vdwg.mxu0
        %6233 = vmatpush.bf16.msra.mxu0 %v3513
        %6234 = vmatpush.bf16.msra.mxu0 %v3497
        %6235 = vmatpush.bf16.msra.mxu0 %v3481
        %6236 = vmatpush.bf16.msra.mxu0 %v3465
        %6237 = vmatpush.bf16.msra.mxu0 %v3449
        %6238 = vmatpush.bf16.msra.mxu0 %v3433
        %6239 = vmatpush.bf16.msra.mxu0 %v3417
        %6240 = vmatpush.bf16.msra.mxu0 %v3401
        %6241 = vmatmul.bf16.gmra.mxu0 %v1022
        %v6242 = vpop.f32.mrf.mxu0
        %v6243 = vadd.f32 0.0, %v6242
        %v6244 = vpop.f32.mrf.mxu0
        %6245 = vdwg.mxu0
        %6246 = vmatpush.bf16.msra.mxu0 %v3641
        %6247 = vmatpush.bf16.msra.mxu0 %v3625
        %6248 = vmatpush.bf16.msra.mxu0 %v3609
        %6249 = vmatpush.bf16.msra.mxu0 %v3593
        %6250 = vmatpush.bf16.msra.mxu0 %v3577
        %6251 = vmatpush.bf16.msra.mxu0 %v3561
        %6252 = vmatpush.bf16.msra.mxu0 %v3545
        %6253 = vmatpush.bf16.msra.mxu0 %v3529
        %6254 = vmatmul.bf16.gmra.mxu0 %v1023
        %v6255 = vpop.f32.mrf.mxu0
        %v6256 = vadd.f32 %v6243, %v6255
        %v6257 = vpop.f32.mrf.mxu0
        %6258 = vdwg.mxu0
        %6259 = vmatpush.bf16.msra.mxu0 %v3769
        %6260 = vmatpush.bf16.msra.mxu0 %v3753
        %6261 = vmatpush.bf16.msra.mxu0 %v3737
        %6262 = vmatpush.bf16.msra.mxu0 %v3721
        %6263 = vmatpush.bf16.msra.mxu0 %v3705
        %6264 = vmatpush.bf16.msra.mxu0 %v3689
        %6265 = vmatpush.bf16.msra.mxu0 %v3673
        %6266 = vmatpush.bf16.msra.mxu0 %v3657
        %6267 = vmatmul.bf16.gmra.mxu0 %v1024
        %v6268 = vpop.f32.mrf.mxu0
        %v6269 = vadd.f32 %v6256, %v6268
        %v6270 = vpop.f32.mrf.mxu0
        %6271 = vdwg.mxu0
        %6272 = vmatpush.bf16.msra.mxu0 %v3897
        %6273 = vmatpush.bf16.msra.mxu0 %v3881
        %6274 = vmatpush.bf16.msra.mxu0 %v3865
        %6275 = vmatpush.bf16.msra.mxu0 %v3849
        %6276 = vmatpush.bf16.msra.mxu0 %v3833
        %6277 = vmatpush.bf16.msra.mxu0 %v3817
        %6278 = vmatpush.bf16.msra.mxu0 %v3801
        %6279 = vmatpush.bf16.msra.mxu0 %v3785
        %6280 = vmatmul.bf16.gmra.mxu0 %v1025
        %v6281 = vpop.f32.mrf.mxu0
        %v6282 = vadd.f32 %v6269, %v6281
        %v6283 = vpop.f32.mrf.mxu0
        %6284 = vdwg.mxu0
        %6285 = vmatpush.bf16.msra.mxu0 %v4025
        %6286 = vmatpush.bf16.msra.mxu0 %v4009
        %6287 = vmatpush.bf16.msra.mxu0 %v3993
        %6288 = vmatpush.bf16.msra.mxu0 %v3977
        %6289 = vmatpush.bf16.msra.mxu0 %v3961
        %6290 = vmatpush.bf16.msra.mxu0 %v3945
        %6291 = vmatpush.bf16.msra.mxu0 %v3929
        %6292 = vmatpush.bf16.msra.mxu0 %v3913
        %6293 = vmatmul.bf16.gmra.mxu0 %v1026
        %v6294 = vpop.f32.mrf.mxu0
        %v6295 = vadd.f32 %v6282, %v6294
        %v6296 = vpop.f32.mrf.mxu0
        %6297 = vdwg.mxu0
        %6298 = vmatpush.bf16.msra.mxu0 %v4153
        %6299 = vmatpush.bf16.msra.mxu0 %v4137
        %6300 = vmatpush.bf16.msra.mxu0 %v4121
        %6301 = vmatpush.bf16.msra.mxu0 %v4105
        %6302 = vmatpush.bf16.msra.mxu0 %v4089
        %6303 = vmatpush.bf16.msra.mxu0 %v4073
        %6304 = vmatpush.bf16.msra.mxu0 %v4057
        %6305 = vmatpush.bf16.msra.mxu0 %v4041
        %6306 = vmatmul.bf16.gmra.mxu0 %v1027
        %v6307 = vpop.f32.mrf.mxu0
        %v6308 = vadd.f32 %v6295, %v6307
        %v6309 = vpop.f32.mrf.mxu0
        %6310 = vdwg.mxu0
        %6311 = vmatpush.bf16.msra.mxu0 0
        %6312 = vmatpush.bf16.msra.mxu0 0
        %6313 = vmatpush.bf16.msra.mxu0 0
        %6314 = vmatpush.bf16.msra.mxu0 0
        %6315 = vmatpush.bf16.msra.mxu0 0
        %6316 = vmatpush.bf16.msra.mxu0 0
        %6317 = vmatpush.bf16.msra.mxu0 0
        %6318 = vmatpush.bf16.msra.mxu0 %v4169
        %6319 = vmatmul.bf16.gmra.mxu0 %v4957
        %v6320 = vpop.f32.mrf.mxu0
        %v6321 = vadd.f32 %v6308, %v6320
        %v6322 = vpop.f32.mrf.mxu0
        %6323 = vdwg.mxu0
        %6324 = vmatpush.bf16.msra.mxu0 %v3514
        %6325 = vmatpush.bf16.msra.mxu0 %v3498
        %6326 = vmatpush.bf16.msra.mxu0 %v3482
        %6327 = vmatpush.bf16.msra.mxu0 %v3466
        %6328 = vmatpush.bf16.msra.mxu0 %v3450
        %6329 = vmatpush.bf16.msra.mxu0 %v3434
        %6330 = vmatpush.bf16.msra.mxu0 %v3418
        %6331 = vmatpush.bf16.msra.mxu0 %v3402
        %6332 = vmatmul.bf16.gmra.mxu0 %v1022
        %v6333 = vpop.f32.mrf.mxu0
        %v6334 = vadd.f32 0.0, %v6333
        %v6335 = vpop.f32.mrf.mxu0
        %6336 = vdwg.mxu0
        %6337 = vmatpush.bf16.msra.mxu0 %v3642
        %6338 = vmatpush.bf16.msra.mxu0 %v3626
        %6339 = vmatpush.bf16.msra.mxu0 %v3610
        %6340 = vmatpush.bf16.msra.mxu0 %v3594
        %6341 = vmatpush.bf16.msra.mxu0 %v3578
        %6342 = vmatpush.bf16.msra.mxu0 %v3562
        %6343 = vmatpush.bf16.msra.mxu0 %v3546
        %6344 = vmatpush.bf16.msra.mxu0 %v3530
        %6345 = vmatmul.bf16.gmra.mxu0 %v1023
        %v6346 = vpop.f32.mrf.mxu0
        %v6347 = vadd.f32 %v6334, %v6346
        %v6348 = vpop.f32.mrf.mxu0
        %6349 = vdwg.mxu0
        %6350 = vmatpush.bf16.msra.mxu0 %v3770
        %6351 = vmatpush.bf16.msra.mxu0 %v3754
        %6352 = vmatpush.bf16.msra.mxu0 %v3738
        %6353 = vmatpush.bf16.msra.mxu0 %v3722
        %6354 = vmatpush.bf16.msra.mxu0 %v3706
        %6355 = vmatpush.bf16.msra.mxu0 %v3690
        %6356 = vmatpush.bf16.msra.mxu0 %v3674
        %6357 = vmatpush.bf16.msra.mxu0 %v3658
        %6358 = vmatmul.bf16.gmra.mxu0 %v1024
        %v6359 = vpop.f32.mrf.mxu0
        %v6360 = vadd.f32 %v6347, %v6359
        %v6361 = vpop.f32.mrf.mxu0
        %6362 = vdwg.mxu0
        %6363 = vmatpush.bf16.msra.mxu0 %v3898
        %6364 = vmatpush.bf16.msra.mxu0 %v3882
        %6365 = vmatpush.bf16.msra.mxu0 %v3866
        %6366 = vmatpush.bf16.msra.mxu0 %v3850
        %6367 = vmatpush.bf16.msra.mxu0 %v3834
        %6368 = vmatpush.bf16.msra.mxu0 %v3818
        %6369 = vmatpush.bf16.msra.mxu0 %v3802
        %6370 = vmatpush.bf16.msra.mxu0 %v3786
        %6371 = vmatmul.bf16.gmra.mxu0 %v1025
        %v6372 = vpop.f32.mrf.mxu0
        %v6373 = vadd.f32 %v6360, %v6372
        %v6374 = vpop.f32.mrf.mxu0
        %6375 = vdwg.mxu0
        %6376 = vmatpush.bf16.msra.mxu0 %v4026
        %6377 = vmatpush.bf16.msra.mxu0 %v4010
        %6378 = vmatpush.bf16.msra.mxu0 %v3994
        %6379 = vmatpush.bf16.msra.mxu0 %v3978
        %6380 = vmatpush.bf16.msra.mxu0 %v3962
        %6381 = vmatpush.bf16.msra.mxu0 %v3946
        %6382 = vmatpush.bf16.msra.mxu0 %v3930
        %6383 = vmatpush.bf16.msra.mxu0 %v3914
        %6384 = vmatmul.bf16.gmra.mxu0 %v1026
        %v6385 = vpop.f32.mrf.mxu0
        %v6386 = vadd.f32 %v6373, %v6385
        %v6387 = vpop.f32.mrf.mxu0
        %6388 = vdwg.mxu0
        %6389 = vmatpush.bf16.msra.mxu0 %v4154
        %6390 = vmatpush.bf16.msra.mxu0 %v4138
        %6391 = vmatpush.bf16.msra.mxu0 %v4122
        %6392 = vmatpush.bf16.msra.mxu0 %v4106
        %6393 = vmatpush.bf16.msra.mxu0 %v4090
        %6394 = vmatpush.bf16.msra.mxu0 %v4074
        %6395 = vmatpush.bf16.msra.mxu0 %v4058
        %6396 = vmatpush.bf16.msra.mxu0 %v4042
        %6397 = vmatmul.bf16.gmra.mxu0 %v1027
        %v6398 = vpop.f32.mrf.mxu0
        %v6399 = vadd.f32 %v6386, %v6398
        %v6400 = vpop.f32.mrf.mxu0
        %6401 = vdwg.mxu0
        %6402 = vmatpush.bf16.msra.mxu0 0
        %6403 = vmatpush.bf16.msra.mxu0 0
        %6404 = vmatpush.bf16.msra.mxu0 0
        %6405 = vmatpush.bf16.msra.mxu0 0
        %6406 = vmatpush.bf16.msra.mxu0 0
        %6407 = vmatpush.bf16.msra.mxu0 0
        %6408 = vmatpush.bf16.msra.mxu0 0
        %6409 = vmatpush.bf16.msra.mxu0 %v4170
        %6410 = vmatmul.bf16.gmra.mxu0 %v4957
        %v6411 = vpop.f32.mrf.mxu0
        %v6412 = vadd.f32 %v6399, %v6411
        %v6413 = vpop.f32.mrf.mxu0
        %6414 = vdwg.mxu0
        %v6415 = vmul.f32 %v5047, 0.5
        %v6416 = vmul.f32 %v5138, 0.5
        %v6417 = vmul.f32 %v5229, 0.5
        %v6418 = vmul.f32 %v5320, 0.5
        %v6419 = vmul.f32 %v5411, 0.5
        %v6420 = vmul.f32 %v5502, 0.5
        %v6421 = vmul.f32 %v5593, 0.5
        %v6422 = vmul.f32 %v5684, 0.5
        %v6423 = vmul.f32 %v5047, 0.7978846
        %v6424 = vmul.f32 %v5138, 0.7978846
        %v6425 = vmul.f32 %v5229, 0.7978846
        %v6426 = vmul.f32 %v5320, 0.7978846
        %v6427 = vmul.f32 %v5411, 0.7978846
        %v6428 = vmul.f32 %v5502, 0.7978846
        %v6429 = vmul.f32 %v5593, 0.7978846
        %v6430 = vmul.f32 %v5684, 0.7978846
        %v6431 = vmul.f32 %v5047, 0.044715
        %v6432 = vmul.f32 %v5138, 0.044715
        %v6433 = vmul.f32 %v5229, 0.044715
        %v6434 = vmul.f32 %v5320, 0.044715
        %v6435 = vmul.f32 %v5411, 0.044715
        %v6436 = vmul.f32 %v5502, 0.044715
        %v6437 = vmul.f32 %v5593, 0.044715
        %v6438 = vmul.f32 %v5684, 0.044715
        %v6439 = vmul.f32 %v6431, %v5047
        %v6440 = vmul.f32 %v6432, %v5138
        %v6441 = vmul.f32 %v6433, %v5229
        %v6442 = vmul.f32 %v6434, %v5320
        %v6443 = vmul.f32 %v6435, %v5411
        %v6444 = vmul.f32 %v6436, %v5502
        %v6445 = vmul.f32 %v6437, %v5593
        %v6446 = vmul.f32 %v6438, %v5684
        %v6447 = vadd.f32 %v6439, 1.0
        %v6448 = vadd.f32 %v6440, 1.0
        %v6449 = vadd.f32 %v6441, 1.0
        %v6450 = vadd.f32 %v6442, 1.0
        %v6451 = vadd.f32 %v6443, 1.0
        %v6452 = vadd.f32 %v6444, 1.0
        %v6453 = vadd.f32 %v6445, 1.0
        %v6454 = vadd.f32 %v6446, 1.0
        %v6455 = vmul.f32 %v6423, %v6447
        %v6456 = vmul.f32 %v6424, %v6448
        %v6457 = vmul.f32 %v6425, %v6449
        %v6458 = vmul.f32 %v6426, %v6450
        %v6459 = vmul.f32 %v6427, %v6451
        %v6460 = vmul.f32 %v6428, %v6452
        %v6461 = vmul.f32 %v6429, %v6453
        %v6462 = vmul.f32 %v6430, %v6454
        %v6463 = vtanh.pop %v6455
        %v6464 = vtanh.pop %v6456
        %v6465 = vtanh.pop %v6457
        %v6466 = vtanh.pop %v6458
        %v6467 = vtanh.pop %v6459
        %v6468 = vtanh.pop %v6460
        %v6469 = vtanh.pop %v6461
        %v6470 = vtanh.pop %v6462
        %v6471 = vadd.f32 %v6463, 1.0
        %v6472 = vadd.f32 %v6464, 1.0
        %v6473 = vadd.f32 %v6465, 1.0
        %v6474 = vadd.f32 %v6466, 1.0
        %v6475 = vadd.f32 %v6467, 1.0
        %v6476 = vadd.f32 %v6468, 1.0
        %v6477 = vadd.f32 %v6469, 1.0
        %v6478 = vadd.f32 %v6470, 1.0
        %v6479 = vmul.f32 %v6415, %v6471
        %v6480 = vmul.f32 %v6416, %v6472
        %v6481 = vmul.f32 %v6417, %v6473
        %v6482 = vmul.f32 %v6418, %v6474
        %v6483 = vmul.f32 %v6419, %v6475
        %v6484 = vmul.f32 %v6420, %v6476
        %v6485 = vmul.f32 %v6421, %v6477
        %v6486 = vmul.f32 %v6422, %v6478
        %v6487 = vmul.f32 %v6479, %v5775
        %v6488 = vmul.f32 %v6480, %v5866
        %v6489 = vmul.f32 %v6481, %v5957
        %v6490 = vmul.f32 %v6482, %v6048
        %v6491 = vmul.f32 %v6483, %v6139
        %v6492 = vmul.f32 %v6484, %v6230
        %v6493 = vmul.f32 %v6485, %v6321
        %v6494 = vmul.f32 %v6486, %v6412
        %v6495 = vld [vmem:[#allocation7] sm:$0xff]
        %v6496 = vld [vmem:[%s214] sm:$0xff]
        %v6497 = vld [vmem:[%s214 + $0x8] sm:$0xff]
        %v6498 = vld [vmem:[%s214 + $0x10] sm:$0xff]
        %v6499 = vld [vmem:[%s214 + $0x18] sm:$0xff]
        %v6500 = vld [vmem:[%s214 + $0x20] sm:$0xff]
        %v6501 = vld [vmem:[%s214 + $0x28] sm:$0xff]
        %v6502 = vld [vmem:[%s214 + $0x30] sm:$0xff]
        %v6503 = vld [vmem:[%s214 + $0x38] sm:$0xff]
        %v6504 = vld [vmem:[%s214 + $0x40] sm:$0xff]
        %v6505 = vld [vmem:[%s214 + $0x48] sm:$0xff]
        %v6506 = vld [vmem:[%s214 + $0x50] sm:$0xff]
        %v6507 = vld [vmem:[%s214 + $0x58] sm:$0xff]
        %v6508 = vld [vmem:[%s214 + $0x60] sm:$0xff]
        %v6509 = vld [vmem:[%s214 + $0x68] sm:$0xff]
        %v6510 = vld [vmem:[%s214 + $0x70] sm:$0xff]
        %v6511 = vld [vmem:[%s214 + $0x78] sm:$0xff]
        %v6512 = vld [vmem:[%s214 + $0x80] sm:$0xff]
        %v6513 = vld [vmem:[%s214 + $0x88] sm:$0xff]
        %v6514 = vld [vmem:[%s214 + $0x90] sm:$0xff]
        %v6515 = vld [vmem:[%s214 + $0x98] sm:$0xff]
        %v6516 = vld [vmem:[%s214 + $0xa0] sm:$0xff]
        %v6517 = vld [vmem:[%s214 + $0xa8] sm:$0xff]
        %v6518 = vld [vmem:[%s214 + $0xb0] sm:$0xff]
        %v6519 = vld [vmem:[%s214 + $0xb8] sm:$0xff]
        %v6520 = vld [vmem:[%s214 + $0xc0] sm:$0xff]
        %v6521 = vld [vmem:[%s214 + $0xc8] sm:$0xff]
        %v6522 = vld [vmem:[%s214 + $0xd0] sm:$0xff]
        %v6523 = vld [vmem:[%s214 + $0xd8] sm:$0xff]
        %v6524 = vld [vmem:[%s214 + $0xe0] sm:$0xff]
        %v6525 = vld [vmem:[%s214 + $0xe8] sm:$0xff]
        %v6526 = vld [vmem:[%s214 + $0xf0] sm:$0xff]
        %v6527 = vld [vmem:[%s214 + $0xf8] sm:$0xff]
        %v6528 = vld [vmem:[%s214 + $0x100] sm:$0xff]
        %v6529 = vld [vmem:[%s214 + $0x108] sm:$0xff]
        %v6530 = vld [vmem:[%s214 + $0x110] sm:$0xff]
        %v6531 = vld [vmem:[%s214 + $0x118] sm:$0xff]
        %v6532 = vld [vmem:[%s214 + $0x120] sm:$0xff]
        %v6533 = vld [vmem:[%s214 + $0x128] sm:$0xff]
        %v6534 = vld [vmem:[%s214 + $0x130] sm:$0xff]
        %v6535 = vld [vmem:[%s214 + $0x138] sm:$0xff]
        %v6536 = vld [vmem:[%s214 + $0x140] sm:$0xff]
        %v6537 = vld [vmem:[%s214 + $0x148] sm:$0xff]
        %v6538 = vld [vmem:[%s214 + $0x150] sm:$0xff]
        %v6539 = vld [vmem:[%s214 + $0x158] sm:$0xff]
        %v6540 = vld [vmem:[%s214 + $0x160] sm:$0xff]
        %v6541 = vld [vmem:[%s214 + $0x168] sm:$0xff]
        %v6542 = vld [vmem:[%s214 + $0x170] sm:$0xff]
        %v6543 = vld [vmem:[%s214 + $0x178] sm:$0xff]
        %v6544 = vld [vmem:[%s214 + $0x180] sm:$0xff]
        %v6545 = vld [vmem:[%s214 + $0x188] sm:$0xff]
        %v6546 = vld [vmem:[%s214 + $0x190] sm:$0xff]
        %v6547 = vld [vmem:[%s214 + $0x198] sm:$0xff]
        %v6548 = vld [vmem:[%s214 + $0x1a0] sm:$0xff]
        %v6549 = vld [vmem:[%s214 + $0x1a8] sm:$0xff]
        %v6550 = vld [vmem:[%s214 + $0x1b0] sm:$0xff]
        %v6551 = vld [vmem:[%s214 + $0x1b8] sm:$0xff]
        %v6552 = vld [vmem:[%s214 + $0x1c0] sm:$0xff]
        %v6553 = vld [vmem:[%s214 + $0x1c8] sm:$0xff]
        %v6554 = vld [vmem:[%s214 + $0x1d0] sm:$0xff]
        %v6555 = vld [vmem:[%s214 + $0x1d8] sm:$0xff]
        %v6556 = vld [vmem:[%s214 + $0x1e0] sm:$0xff]
        %v6557 = vld [vmem:[%s214 + $0x1e8] sm:$0xff]
        %v6558 = vld [vmem:[%s214 + $0x1f0] sm:$0xff]
        %v6559 = vld [vmem:[%s214 + $0x1f8] sm:$0xff]
        %v6560 = vld [vmem:[%s214 + $0x200] sm:$0xff]
        %v6561 = vld [vmem:[%s214 + $0x208] sm:$0xff]
        %v6562 = vld [vmem:[%s214 + $0x210] sm:$0xff]
        %v6563 = vld [vmem:[%s214 + $0x218] sm:$0xff]
        %v6564 = vld [vmem:[%s214 + $0x220] sm:$0xff]
        %v6565 = vld [vmem:[%s214 + $0x228] sm:$0xff]
        %v6566 = vld [vmem:[%s214 + $0x230] sm:$0xff]
        %v6567 = vld [vmem:[%s214 + $0x238] sm:$0xff]
        %v6568 = vld [vmem:[%s214 + $0x240] sm:$0xff]
        %v6569 = vld [vmem:[%s214 + $0x248] sm:$0xff]
        %v6570 = vld [vmem:[%s214 + $0x250] sm:$0xff]
        %v6571 = vld [vmem:[%s214 + $0x258] sm:$0xff]
        %v6572 = vld [vmem:[%s214 + $0x260] sm:$0xff]
        %v6573 = vld [vmem:[%s214 + $0x268] sm:$0xff]
        %v6574 = vld [vmem:[%s214 + $0x270] sm:$0xff]
        %v6575 = vld [vmem:[%s214 + $0x278] sm:$0xff]
        %v6576 = vld [vmem:[%s214 + $0x280] sm:$0xff]
        %v6577 = vld [vmem:[%s214 + $0x288] sm:$0xff]
        %v6578 = vld [vmem:[%s214 + $0x290] sm:$0xff]
        %v6579 = vld [vmem:[%s214 + $0x298] sm:$0xff]
        %v6580 = vld [vmem:[%s214 + $0x2a0] sm:$0xff]
        %v6581 = vld [vmem:[%s214 + $0x2a8] sm:$0xff]
        %v6582 = vld [vmem:[%s214 + $0x2b0] sm:$0xff]
        %v6583 = vld [vmem:[%s214 + $0x2b8] sm:$0xff]
        %v6584 = vld [vmem:[%s214 + $0x2c0] sm:$0xff]
        %v6585 = vld [vmem:[%s214 + $0x2c8] sm:$0xff]
        %v6586 = vld [vmem:[%s214 + $0x2d0] sm:$0xff]
        %v6587 = vld [vmem:[%s214 + $0x2d8] sm:$0xff]
        %v6588 = vld [vmem:[%s214 + $0x2e0] sm:$0xff]
        %v6589 = vld [vmem:[%s214 + $0x2e8] sm:$0xff]
        %v6590 = vld [vmem:[%s214 + $0x2f0] sm:$0xff]
        %v6591 = vld [vmem:[%s214 + $0x2f8] sm:$0xff]
        %v6592 = vld [vmem:[%s214 + $0x300] sm:$0xff]
        %v6593 = vld [vmem:[%s214 + $0x308] sm:$0xff]
        %v6594 = vld [vmem:[%s214 + $0x310] sm:$0xff]
        %v6595 = vld [vmem:[%s214 + $0x318] sm:$0xff]
        %v6596 = vld [vmem:[%s214 + $0x320] sm:$0xff]
        %v6597 = vld [vmem:[%s214 + $0x328] sm:$0xff]
        %v6598 = vld [vmem:[%s214 + $0x330] sm:$0xff]
        %v6599 = vld [vmem:[%s214 + $0x338] sm:$0xff]
        %v6600 = vld [vmem:[%s214 + $0x340] sm:$0xff]
        %v6601 = vld [vmem:[%s214 + $0x348] sm:$0xff]
        %v6602 = vld [vmem:[%s214 + $0x350] sm:$0xff]
        %v6603 = vld [vmem:[%s214 + $0x358] sm:$0xff]
        %v6604 = vld [vmem:[%s214 + $0x360] sm:$0xff]
        %v6605 = vld [vmem:[%s214 + $0x368] sm:$0xff]
        %v6606 = vld [vmem:[%s214 + $0x370] sm:$0xff]
        %v6607 = vld [vmem:[%s214 + $0x378] sm:$0xff]
        %v6608 = vld [vmem:[%s214 + $0x380] sm:$0xff]
        %v6609 = vld [vmem:[%s214 + $0x388] sm:$0xff]
        %v6610 = vld [vmem:[%s214 + $0x390] sm:$0xff]
        %v6611 = vld [vmem:[%s214 + $0x398] sm:$0xff]
        %v6612 = vld [vmem:[%s214 + $0x3a0] sm:$0xff]
        %v6613 = vld [vmem:[%s214 + $0x3a8] sm:$0xff]
        %v6614 = vld [vmem:[%s214 + $0x3b0] sm:$0xff]
        %v6615 = vld [vmem:[%s214 + $0x3b8] sm:$0xff]
        %v6616 = vld [vmem:[%s214 + $0x3c0] sm:$0xff]
        %v6617 = vld [vmem:[%s214 + $0x3c8] sm:$0xff]
        %v6618 = vld [vmem:[%s214 + $0x3d0] sm:$0xff]
        %v6619 = vld [vmem:[%s214 + $0x3d8] sm:$0xff]
        %v6620 = vld [vmem:[%s214 + $0x3e0] sm:$0xff]
        %v6621 = vld [vmem:[%s214 + $0x3e8] sm:$0xff]
        %v6622 = vld [vmem:[%s214 + $0x3f0] sm:$0xff]
        %v6623 = vld [vmem:[%s214 + $0x3f8] sm:$0xff]
        %6624 = vmatpush.msra.mxu0 %v6511
        %6625 = vmatpush.msra.mxu0 %v6510
        %6626 = vmatpush.msra.mxu0 %v6509
        %6627 = vmatpush.msra.mxu0 %v6508
        %6628 = vmatpush.msra.mxu0 %v6507
        %6629 = vmatpush.msra.mxu0 %v6506
        %6630 = vmatpush.msra.mxu0 %v6505
        %6631 = vmatpush.msra.mxu0 %v6504
        %6632 = vmatpush.msra.mxu0 %v6503
        %6633 = vmatpush.msra.mxu0 %v6502
        %6634 = vmatpush.msra.mxu0 %v6501
        %6635 = vmatpush.msra.mxu0 %v6500
        %6636 = vmatpush.msra.mxu0 %v6499
        %6637 = vmatpush.msra.mxu0 %v6498
        %6638 = vmatpush.msra.mxu0 %v6497
        %6639 = vmatpush.msra.mxu0 %v6496
        %6640 = vmatmul.f32.gmra.mxu0 %v6487
        %v6641 = vpop.f32.mrf.mxu0
        %v6642 = vadd.f32 0.0, %v6641
        %6643 = vdwg.mxu0
        %6644 = vmatpush.msra.mxu0 %v6527
        %6645 = vmatpush.msra.mxu0 %v6526
        %6646 = vmatpush.msra.mxu0 %v6525
        %6647 = vmatpush.msra.mxu0 %v6524
        %6648 = vmatpush.msra.mxu0 %v6523
        %6649 = vmatpush.msra.mxu0 %v6522
        %6650 = vmatpush.msra.mxu0 %v6521
        %6651 = vmatpush.msra.mxu0 %v6520
        %6652 = vmatpush.msra.mxu0 %v6519
        %6653 = vmatpush.msra.mxu0 %v6518
        %6654 = vmatpush.msra.mxu0 %v6517
        %6655 = vmatpush.msra.mxu0 %v6516
        %6656 = vmatpush.msra.mxu0 %v6515
        %6657 = vmatpush.msra.mxu0 %v6514
        %6658 = vmatpush.msra.mxu0 %v6513
        %6659 = vmatpush.msra.mxu0 %v6512
        %6660 = vmatmul.f32.gmra.mxu0 %v6488
        %v6661 = vpop.f32.mrf.mxu0
        %v6662 = vadd.f32 %v6642, %v6661
        %6663 = vdwg.mxu0
        %6664 = vmatpush.msra.mxu0 %v6543
        %6665 = vmatpush.msra.mxu0 %v6542
        %6666 = vmatpush.msra.mxu0 %v6541
        %6667 = vmatpush.msra.mxu0 %v6540
        %6668 = vmatpush.msra.mxu0 %v6539
        %6669 = vmatpush.msra.mxu0 %v6538
        %6670 = vmatpush.msra.mxu0 %v6537
        %6671 = vmatpush.msra.mxu0 %v6536
        %6672 = vmatpush.msra.mxu0 %v6535
        %6673 = vmatpush.msra.mxu0 %v6534
        %6674 = vmatpush.msra.mxu0 %v6533
        %6675 = vmatpush.msra.mxu0 %v6532
        %6676 = vmatpush.msra.mxu0 %v6531
        %6677 = vmatpush.msra.mxu0 %v6530
        %6678 = vmatpush.msra.mxu0 %v6529
        %6679 = vmatpush.msra.mxu0 %v6528
        %6680 = vmatmul.f32.gmra.mxu0 %v6489
        %v6681 = vpop.f32.mrf.mxu0
        %v6682 = vadd.f32 %v6662, %v6681
        %6683 = vdwg.mxu0
        %6684 = vmatpush.msra.mxu0 %v6559
        %6685 = vmatpush.msra.mxu0 %v6558
        %6686 = vmatpush.msra.mxu0 %v6557
        %6687 = vmatpush.msra.mxu0 %v6556
        %6688 = vmatpush.msra.mxu0 %v6555
        %6689 = vmatpush.msra.mxu0 %v6554
        %6690 = vmatpush.msra.mxu0 %v6553
        %6691 = vmatpush.msra.mxu0 %v6552
        %6692 = vmatpush.msra.mxu0 %v6551
        %6693 = vmatpush.msra.mxu0 %v6550
        %6694 = vmatpush.msra.mxu0 %v6549
        %6695 = vmatpush.msra.mxu0 %v6548
        %6696 = vmatpush.msra.mxu0 %v6547
        %6697 = vmatpush.msra.mxu0 %v6546
        %6698 = vmatpush.msra.mxu0 %v6545
        %6699 = vmatpush.msra.mxu0 %v6544
        %6700 = vmatmul.f32.gmra.mxu0 %v6490
        %v6701 = vpop.f32.mrf.mxu0
        %v6702 = vadd.f32 %v6682, %v6701
        %6703 = vdwg.mxu0
        %6704 = vmatpush.msra.mxu0 %v6575
        %6705 = vmatpush.msra.mxu0 %v6574
        %6706 = vmatpush.msra.mxu0 %v6573
        %6707 = vmatpush.msra.mxu0 %v6572
        %6708 = vmatpush.msra.mxu0 %v6571
        %6709 = vmatpush.msra.mxu0 %v6570
        %6710 = vmatpush.msra.mxu0 %v6569
        %6711 = vmatpush.msra.mxu0 %v6568
        %6712 = vmatpush.msra.mxu0 %v6567
        %6713 = vmatpush.msra.mxu0 %v6566
        %6714 = vmatpush.msra.mxu0 %v6565
        %6715 = vmatpush.msra.mxu0 %v6564
        %6716 = vmatpush.msra.mxu0 %v6563
        %6717 = vmatpush.msra.mxu0 %v6562
        %6718 = vmatpush.msra.mxu0 %v6561
        %6719 = vmatpush.msra.mxu0 %v6560
        %6720 = vmatmul.f32.gmra.mxu0 %v6491
        %v6721 = vpop.f32.mrf.mxu0
        %v6722 = vadd.f32 %v6702, %v6721
        %6723 = vdwg.mxu0
        %6724 = vmatpush.msra.mxu0 %v6591
        %6725 = vmatpush.msra.mxu0 %v6590
        %6726 = vmatpush.msra.mxu0 %v6589
        %6727 = vmatpush.msra.mxu0 %v6588
        %6728 = vmatpush.msra.mxu0 %v6587
        %6729 = vmatpush.msra.mxu0 %v6586
        %6730 = vmatpush.msra.mxu0 %v6585
        %6731 = vmatpush.msra.mxu0 %v6584
        %6732 = vmatpush.msra.mxu0 %v6583
        %6733 = vmatpush.msra.mxu0 %v6582
        %6734 = vmatpush.msra.mxu0 %v6581
        %6735 = vmatpush.msra.mxu0 %v6580
        %6736 = vmatpush.msra.mxu0 %v6579
        %6737 = vmatpush.msra.mxu0 %v6578
        %6738 = vmatpush.msra.mxu0 %v6577
        %6739 = vmatpush.msra.mxu0 %v6576
        %6740 = vmatmul.f32.gmra.mxu0 %v6492
        %v6741 = vpop.f32.mrf.mxu0
        %v6742 = vadd.f32 %v6722, %v6741
        %6743 = vdwg.mxu0
        %6744 = vmatpush.msra.mxu0 %v6607
        %6745 = vmatpush.msra.mxu0 %v6606
        %6746 = vmatpush.msra.mxu0 %v6605
        %6747 = vmatpush.msra.mxu0 %v6604
        %6748 = vmatpush.msra.mxu0 %v6603
        %6749 = vmatpush.msra.mxu0 %v6602
        %6750 = vmatpush.msra.mxu0 %v6601
        %6751 = vmatpush.msra.mxu0 %v6600
        %6752 = vmatpush.msra.mxu0 %v6599
        %6753 = vmatpush.msra.mxu0 %v6598
        %6754 = vmatpush.msra.mxu0 %v6597
        %6755 = vmatpush.msra.mxu0 %v6596
        %6756 = vmatpush.msra.mxu0 %v6595
        %6757 = vmatpush.msra.mxu0 %v6594
        %6758 = vmatpush.msra.mxu0 %v6593
        %6759 = vmatpush.msra.mxu0 %v6592
        %6760 = vmatmul.f32.gmra.mxu0 %v6493
        %v6761 = vpop.f32.mrf.mxu0
        %v6762 = vadd.f32 %v6742, %v6761
        %6763 = vdwg.mxu0
        %6764 = vmatpush.msra.mxu0 %v6623
        %6765 = vmatpush.msra.mxu0 %v6622
        %6766 = vmatpush.msra.mxu0 %v6621
        %6767 = vmatpush.msra.mxu0 %v6620
        %6768 = vmatpush.msra.mxu0 %v6619
        %6769 = vmatpush.msra.mxu0 %v6618
        %6770 = vmatpush.msra.mxu0 %v6617
        %6771 = vmatpush.msra.mxu0 %v6616
        %6772 = vmatpush.msra.mxu0 %v6615
        %6773 = vmatpush.msra.mxu0 %v6614
        %6774 = vmatpush.msra.mxu0 %v6613
        %6775 = vmatpush.msra.mxu0 %v6612
        %6776 = vmatpush.msra.mxu0 %v6611
        %6777 = vmatpush.msra.mxu0 %v6610
        %6778 = vmatpush.msra.mxu0 %v6609
        %6779 = vmatpush.msra.mxu0 %v6608
        %6780 = vmatmul.f32.gmra.mxu0 %v6494
        %v6781 = vpop.f32.mrf.mxu0
        %v6782 = vadd.f32 %v6762, %v6781
        %6783 = vdwg.mxu0
        %v6784 = vadd.f32 %v6495, %v6782
        %vm6785 = vcmask 80896
        %6786 = vst.msk [vmem:[#allocation7] sm:$0xff] %vm6785, %v6784
        %p6787 = scmp.eq.s32.totalorder %s19, 3
        // Predicated region
        $region45: #{tpu_custom_call.1} parent=31 // pred_check
          %p6788 = pneg %p6787
        $region46: #{tpu_custom_call.1} parent=31 // pred_check_branch
          %6790 = sbr.rel (%p6788) target = $region48
        $region47: #{tpu_custom_call.1} parent=31 // pred_region
          %v6791 = vld [vmem:[#allocation7] sm:$0xff]
          %v6792 = vsel %vm6785, %v6791, -inf
          %6793 = vmax.xlane.f32.xlu0 %v6792
          %v6794 = vpop.xlane.xlu0 %6793
          %v6795 = vsub.f32 %v6791, %v6794
          %v6796 = vmul.f32 %v6795, 1.442695
          %v6797 = vpow.pop %v6796
          %v6798 = vsel %vm6785, %v6797, 0.0
          %6799 = vadd.xlane.f32.xlu0 %v6798
          %v6800 = vpop.xlane.xlu0 %6799
          %v6801 = vlog2.pop %v6800
          %v6802 = vmul.f32 %v6801, 0.6931472
          %v6803 = vadd.f32 %v6794, %v6802
          %v6804 = vsub.f32 %v6791, %v6803
          %6805 = vst.msk [vmem:[#allocation7] sm:$0xff] %vm6785, %v6804
        $region48: #{tpu_custom_call.1} parent=31 // pred_fallthru
          _
        // Predicated region
        $region49: #{tpu_custom_call.1} parent=31 // pred_check
          %p6806 = pneg %p105
        $region50: #{tpu_custom_call.1} parent=31 // pred_check_branch
          %6808 = sbr.rel (%p6806) target = $region52
        $region51: #{tpu_custom_call.1} parent=31 // pred_region
          %6810 = vsyncadd [#allocation4], 0
          %s6812 = sshll.u32 [#allocation7], 4
          %s6813 = int_to_ptr.vmem [resolvable:$true] %s6812
          %s6814 = sshll.u32 %s3, 4
          %s6815 = int_to_ptr.hbm [resolvable:$true] %s6814
          %6817 = dma.vmem_to_hbm [thread:$0]  %s6813, 128, %s6815, [#allocation4]
        $region52: #{tpu_custom_call.1} parent=31 // pred_fallthru
          _
        // Predicated region
        $region53: #{tpu_custom_call.1} parent=31 // pred_check
          %p6818 = pneg %p105
        $region54: #{tpu_custom_call.1} parent=31 // pred_check_branch
          %6820 = sbr.rel (%p6818) target = $region56
        $region55: #{tpu_custom_call.1} parent=31 // pred_region
          %6822 = dma.done [#allocation4], 128
        $region56: #{tpu_custom_call.1} parent=31 // pred_fallthru
          _
      $region32: #{tpu_custom_call.1} parent=5 // pred_fallthru
        _
      %p6823 = scmp.le.s32.totalorder 2, %s14
      // Predicated region
      $region57: #{tpu_custom_call.1} parent=5 // pred_check
        %p6824 = pneg %p6823
      $region58: #{tpu_custom_call.1} parent=5 // pred_check_branch
        %6826 = sbr.rel (%p6824) target = $region60
      $region59: #{tpu_custom_call.1} parent=5 // pred_region
        %s6827 = ssub.s32 %s14, 2
      $region60: #{tpu_custom_call.1} parent=5 // pred_fallthru
        _
    $region6: #{tpu_custom_call.1} parent=1 // loop_footer
      %s18 = sadd.s32 1, %s14
    $region7: #{tpu_custom_call.1} parent=1 // loop_footer_branch
      %13 = sbr.rel target = $region3
    $region8: #{tpu_custom_call.1} parent=1 // loop_exit
      _
    %6828 = vsyncpa [#allocation3], 1
    %s6829 = scalar_lea.sflag [#allocation3], 1
    %6830 = vsyncpa %s6829, 1
    %6831 = vsyncpa [#allocation6], 1
    %s6832 = scalar_lea.sflag [#allocation6], 1
    %6833 = vsyncpa %s6832, 1
    %6834 = vsyncpa [#allocation4], 1
    %s6835 = scalar_lea.sflag [#allocation4], 1
    %6836 = vsyncpa %s6835, 1

</llo_original>
